<compile_context>
chip_gen: v7x
topology: tpu7x:2x2x1
jax: 0.10.0
libtpu: 0.0.40
codegen_flags: <defaults>
</compile_context>

<pallas_src>
import functools

import jax
import jax.numpy as jnp
from jax.experimental import pallas as pl
from jax.experimental.pallas import tpu as pltpu  # noqa: F401  (kept for TPU-specific tuning hooks)

# ---------------- small DistilBERT-like config ----------------
VOCAB = 128
MAX_POS = 32
HIDDEN = 128
N_HEADS = 4
HEAD_DIM = HIDDEN // N_HEADS
FFN = 256
N_LAYERS = 2
NUM_LABELS = 4
LN_EPS = 1e-12
CLF_PAD = 128          # classifier output padded to a lane-dense 128-wide slab
NEG_INF = -1e9


# ---------------- fused Pallas kernel ----------------
def _layernorm(x, g, b):
    """LayerNorm in f32 (x, g, b all f32)."""
    mean = jnp.mean(x, axis=-1, keepdims=True)
    c = x - mean
    var = jnp.mean(c * c, axis=-1, keepdims=True)
    return c * jax.lax.rsqrt(var + LN_EPS) * g + b


def _fused_bert_kernel(emb_ref, bias_ref, gvec_ref,
                       wqkv_ref, bqkv_ref, wo_ref, lvec_ref,
                       w1_ref, b1_ref, w2_ref, clf_w_ref,
                       logits_ref, *, batch, seq):
    """Whole forward in one invocation; everything resident in VMEM.

    emb_ref   : (B*S, H)      f32   embeddings (gather + pos add done on host)
    bias_ref  : (B*S, B*S)    f32   block-diagonal + key-padding additive mask
    gvec_ref  : (3, H)        f32   [emb_ln_g, emb_ln_b, clf_bias(padded)]
    wqkv_ref  : (L, H, 3H)    bf16
    bqkv_ref  : (L, 1, 3H)    f32
    wo_ref    : (L, H, H)     bf16
    lvec_ref  : (L, 6, H)     f32   [bo, ln1_g, ln1_b, b2, ln2_g, ln2_b]
    w1_ref    : (L, H, FFN)   bf16
    b1_ref    : (L, 1, FFN)   f32
    w2_ref    : (L, FFN, H)   bf16
    clf_w_ref : (H, CLF_PAD)  bf16
    logits_ref: (B, CLF_PAD)  f32
    """
    scale = 1.0 / (HEAD_DIM ** 0.5)
    bias = bias_ref[...]                                     # (B*S, B*S), loaded once

    gv = gvec_ref[...]                                       # (3, H) f32
    # Embedding LayerNorm (f32 stats) -> bf16 hidden state.
    h = _layernorm(emb_ref[...], gv[0:1], gv[1:2]).astype(jnp.bfloat16)   # (B*S, H)

    for l in range(N_LAYERS):
        lv = lvec_ref[l]                                     # (6, H) f32

        # ---- fused QKV projection: one bf16 (B*S,H)@(H,3H) MXU matmul, f32 acc ----
        qkv = jnp.dot(h, wqkv_ref[l], preferred_element_type=jnp.float32) + bqkv_ref[l]
        qkv = qkv.astype(jnp.bfloat16)                       # (B*S, 3H)

        # ---- multi-head attention over the folded batch ----
        # Per-batch separation is enforced purely by the block-diagonal bias, so
        # every matmul spans all B*S rows (better MXU row occupancy, zero reshapes).
        # TODO(synk): heads remain a static 4-way loop; a fully head-batched
        # dot_general would need minor-dim-splitting reshapes that are riskier to
        # lower.  No k.T, no per-head mask broadcasts, no per-head list transposes.
        ctx_heads = []
        for hd in range(N_HEADS):
            q = qkv[:, hd * HEAD_DIM:(hd + 1) * HEAD_DIM]                        # (B*S, dH)
            k = qkv[:, HIDDEN + hd * HEAD_DIM:HIDDEN + (hd + 1) * HEAD_DIM]
            v = qkv[:, 2 * HIDDEN + hd * HEAD_DIM:2 * HIDDEN + (hd + 1) * HEAD_DIM]
            s = jax.lax.dot_general(q, k, (((1,), (1,)), ((), ())),
                                    preferred_element_type=jnp.float32)          # (B*S, B*S)
            s = s * scale + bias
            m = jnp.max(s, axis=-1, keepdims=True)
            p = jnp.exp(s - m)
            p = p * pl.reciprocal(jnp.sum(p, axis=-1, keepdims=True), approx=True)
            ctx_heads.append(jnp.dot(p.astype(jnp.bfloat16), v,
                                     preferred_element_type=jnp.float32))        # (B*S, dH)
        ctx = jnp.concatenate(ctx_heads, axis=-1).astype(jnp.bfloat16)           # (B*S, H)

        # ---- output projection + residual + LayerNorm ----
        attn_out = jnp.dot(ctx, wo_ref[l], preferred_element_type=jnp.float32) + lv[0:1]
        h = _layernorm(attn_out + h.astype(jnp.float32), lv[1:2], lv[2:3]).astype(jnp.bfloat16)

        # ---- feed-forward (GELU) + residual + LayerNorm ----
        f = jnp.dot(h, w1_ref[l], preferred_element_type=jnp.float32) + b1_ref[l]
        # TODO(synk): HF DistilBERT uses exact (erf) GELU; tanh approximation used
        # here for robust Mosaic lowering (numerically ~1e-3 close).
        f = jax.nn.gelu(f, approximate=True).astype(jnp.bfloat16)
        f = jnp.dot(f, w2_ref[l], preferred_element_type=jnp.float32) + lv[3:4]
        h = _layernorm(f + h.astype(jnp.float32), lv[4:5], lv[5:6]).astype(jnp.bfloat16)

    # ---- classifier only on the CLS row of each sequence (rows b*seq) ----
    cls = jnp.concatenate([h[b * seq:b * seq + 1, :] for b in range(batch)], axis=0)   # (B, H)
    logits = jnp.dot(cls, clf_w_ref[...], preferred_element_type=jnp.float32) + gv[2:3]
    logits_ref[...] = logits.astype(logits_ref.dtype)


# ---------------- parameter init (deterministic, synthetic) ----------------
def init_params(key):
    def nrm(k, shape, scale=0.02):
        return jax.random.normal(k, shape, jnp.float32) * scale

    keys = iter(jax.random.split(key, 8 + N_LAYERS * 16))
    params = {
        "word_emb": nrm(next(keys), (VOCAB, HIDDEN)),
        "pos_emb": nrm(next(keys), (MAX_POS, HIDDEN)),
        "emb_ln_g": jnp.ones((HIDDEN,), jnp.float32),
        "emb_ln_b": jnp.zeros((HIDDEN,), jnp.float32),
        "layers": [],
        "clf_w": nrm(next(keys), (HIDDEN, NUM_LABELS)),
        "clf_b": jnp.zeros((NUM_LABELS,), jnp.float32),
    }
    for _ in range(N_LAYERS):
        layer = {
            "wq": nrm(next(keys), (HIDDEN, HIDDEN)), "bq": jnp.zeros((HIDDEN,), jnp.float32),
            "wk": nrm(next(keys), (HIDDEN, HIDDEN)), "bk": jnp.zeros((HIDDEN,), jnp.float32),
            "wv": nrm(next(keys), (HIDDEN, HIDDEN)), "bv": jnp.zeros((HIDDEN,), jnp.float32),
            "wo": nrm(next(keys), (HIDDEN, HIDDEN)), "bo": jnp.zeros((HIDDEN,), jnp.float32),
            "sa_ln_g": jnp.ones((HIDDEN,), jnp.float32),
            "sa_ln_b": jnp.zeros((HIDDEN,), jnp.float32),
            "w1": nrm(next(keys), (HIDDEN, FFN)), "b1": jnp.zeros((FFN,), jnp.float32),
            "w2": nrm(next(keys), (FFN, HIDDEN)), "b2": jnp.zeros((HIDDEN,), jnp.float32),
            "out_ln_g": jnp.ones((HIDDEN,), jnp.float32),
            "out_ln_b": jnp.zeros((HIDDEN,), jnp.float32),
        }
        params["layers"].append(layer)
    return params


# ---------------- model forward (single fused, grid-free pallas_call) ----------------
def my_model_forward(params, input_ids, attention_mask):
    B, S = input_ids.shape
    BS = B * S
    bf16 = jnp.bfloat16

    # Embedding gather + position add is glue; LN onwards runs in the kernel.
    pos = jnp.arange(S)
    emb = (params["word_emb"][input_ids] + params["pos_emb"][pos][None, :, :]).reshape(BS, HIDDEN)

    # Block-diagonal additive attention bias over the folded (B*S) rows:
    #   bias[bq*S+i, bk*S+j] = 0 if bq == bk and attention_mask[bk, j] == 1 else -1e9
    am = attention_mask.astype(jnp.float32)                            # (B, S)
    key_bias = (1.0 - am) * NEG_INF                                    # (B, S)
    block = (1.0 - jnp.eye(B, dtype=jnp.float32)) * NEG_INF            # (B, B)
    bias = block[:, None, :, None] + key_bias[None, None, :, :]        # (B, 1, B, S)
    bias = jnp.broadcast_to(bias, (B, S, B, S)).reshape(BS, BS)        # (B*S, B*S)

    # Pack per-layer weights with a leading layer axis; matmul weights in bf16.
    Ls = params["layers"]
    wqkv = jnp.stack([jnp.concatenate([L["wq"], L["wk"], L["wv"]], axis=1) for L in Ls]).astype(bf16)
    bqkv = jnp.stack([jnp.concatenate([L["bq"], L["bk"], L["bv"]])[None, :] for L in Ls])
    wo = jnp.stack([L["wo"] for L in Ls]).astype(bf16)
    lvec = jnp.stack([jnp.stack([L["bo"], L["sa_ln_g"], L["sa_ln_b"],
                                 L["b2"], L["out_ln_g"], L["out_ln_b"]]) for L in Ls])   # (L,6,H) f32
    w1 = jnp.stack([L["w1"] for L in Ls]).astype(bf16)
    b1 = jnp.stack([L["b1"][None, :] for L in Ls])
    w2 = jnp.stack([L["w2"] for L in Ls]).astype(bf16)

    # Classifier padded to a lane-dense 128-wide output; slice 4 real logits after.
    clf_w = jnp.zeros((HIDDEN, CLF_PAD), jnp.float32).at[:, :NUM_LABELS].set(params["clf_w"]).astype(bf16)
    clf_b_pad = jnp.zeros((CLF_PAD,), jnp.float32).at[:NUM_LABELS].set(params["clf_b"])
    gvec = jnp.stack([params["emb_ln_g"], params["emb_ln_b"], clf_b_pad])                 # (3, H) f32

    kernel = functools.partial(_fused_bert_kernel, batch=B, seq=S)

    # Grid-free call: all inputs land fully in VMEM exactly once (no double buffering),
    # no per-grid-step overhead on single-TC v5e/v6e.
    # TODO(synk): on v7x (2 TCs) a blocked (B,)-grid with 'parallel' would use the
    # second core; at B=2 / S=16 the fixed grid overhead outweighs that.
    logits_pad = pl.pallas_call(
        kernel,
        out_shape=jax.ShapeDtypeStruct((B, CLF_PAD), jnp.float32),
    )(emb, bias, gvec, wqkv, bqkv, wo, lvec, w1, b1, w2, clf_w)

    return logits_pad[:, :NUM_LABELS]


if __name__ == "__main__":
    key = jax.random.PRNGKey(0)
    pkey, idkey = jax.random.split(key)

    params = init_params(pkey)

    B, S = 2, 16
    input_ids = jax.random.randint(idkey, (B, S), 0, VOCAB, dtype=jnp.int32)
    # second sequence has last 6 tokens padded out
    attention_mask = jnp.array(
        [[1] * S, [1] * (S - 6) + [0] * 6], dtype=jnp.int32
    )

    forward = jax.jit(my_model_forward)
    logits = forward(params, input_ids, attention_mask)
    logits = jax.block_until_ready(logits)
    assert logits.shape == (B, NUM_LABELS) and logits.dtype == jnp.float32
    print("KERNEL_OK")
</pallas_src>

<mosaic_0001>
module attributes {stable_mosaic.version = 11 : i64} {
  func.func @_fused_bert_kernel(%arg0: memref<32x128xf32, #tpu.memory_space<vmem>>, %arg1: memref<32x32xf32, #tpu.memory_space<vmem>>, %arg2: memref<3x128xf32, #tpu.memory_space<vmem>>, %arg3: memref<2x128x384xbf16, #tpu.memory_space<vmem>>, %arg4: memref<2x1x384xf32, #tpu.memory_space<vmem>>, %arg5: memref<2x128x128xbf16, #tpu.memory_space<vmem>>, %arg6: memref<2x6x128xf32, #tpu.memory_space<vmem>>, %arg7: memref<2x128x256xbf16, #tpu.memory_space<vmem>>, %arg8: memref<2x1x256xf32, #tpu.memory_space<vmem>>, %arg9: memref<2x256x128xbf16, #tpu.memory_space<vmem>>, %arg10: memref<128x128xbf16, #tpu.memory_space<vmem>>, %arg11: memref<2x128xf32, #tpu.memory_space<vmem>>) attributes {dimension_semantics = [], scalar_prefetch = 0 : i64, scratch_operands = 0 : i64, tpu.core_type = #tpu.core_type<tc>} {
    %c0 = arith.constant 0 : index
    %c0_0 = arith.constant 0 : index
    %0 = vector.load %arg1[%c0, %c0_0] : memref<32x32xf32, #tpu.memory_space<vmem>>, vector<32x32xf32>
    %c0_1 = arith.constant 0 : index
    %c0_2 = arith.constant 0 : index
    %1 = vector.load %arg2[%c0_1, %c0_2] : memref<3x128xf32, #tpu.memory_space<vmem>>, vector<3x128xf32>
    %c0_3 = arith.constant 0 : index
    %c0_4 = arith.constant 0 : index
    %2 = vector.load %arg0[%c0_3, %c0_4] : memref<32x128xf32, #tpu.memory_space<vmem>>, vector<32x128xf32>
    %3 = vector.extract_strided_slice %1 {offsets = [0, 0], sizes = [1, 128], strides = [1, 1]} : vector<3x128xf32> to vector<1x128xf32>
    %4 = vector.extract_strided_slice %1 {offsets = [1, 0], sizes = [1, 128], strides = [1, 1]} : vector<3x128xf32> to vector<1x128xf32>
    %cst = arith.constant dense<0.000000e+00> : vector<32xf32>
    %5 = vector.multi_reduction <add>, %2, %cst [1] : vector<32x128xf32> to vector<32xf32>
    %6 = vector.shape_cast %5 : vector<32xf32> to vector<32x1xf32>
    %cst_5 = arith.constant 1.280000e+02 : f32
    %7 = vector.broadcast %cst_5 : f32 to vector<32x1xf32>
    %8 = arith.divf %6, %7 : vector<32x1xf32>
    %9 = vector.broadcast %8 : vector<32x1xf32> to vector<32x128xf32>
    %10 = arith.subf %2, %9 : vector<32x128xf32>
    %11 = arith.mulf %10, %10 : vector<32x128xf32>
    %cst_6 = arith.constant dense<0.000000e+00> : vector<32xf32>
    %12 = vector.multi_reduction <add>, %11, %cst_6 [1] : vector<32x128xf32> to vector<32xf32>
    %13 = vector.shape_cast %12 : vector<32xf32> to vector<32x1xf32>
    %cst_7 = arith.constant 1.280000e+02 : f32
    %14 = vector.broadcast %cst_7 : f32 to vector<32x1xf32>
    %15 = arith.divf %13, %14 : vector<32x1xf32>
    %cst_8 = arith.constant 9.99999996E-13 : f32
    %16 = vector.broadcast %cst_8 : f32 to vector<32x1xf32>
    %17 = arith.addf %15, %16 : vector<32x1xf32>
    %18 = math.rsqrt %17 : vector<32x1xf32>
    %19 = vector.broadcast %18 : vector<32x1xf32> to vector<32x128xf32>
    %20 = arith.mulf %10, %19 : vector<32x128xf32>
    %21 = vector.broadcast %3 : vector<1x128xf32> to vector<32x128xf32>
    %22 = arith.mulf %20, %21 : vector<32x128xf32>
    %23 = vector.broadcast %4 : vector<1x128xf32> to vector<32x128xf32>
    %24 = arith.addf %22, %23 : vector<32x128xf32>
    %25 = arith.truncf %24 : vector<32x128xf32> to vector<32x128xbf16>
    %c0_9 = arith.constant 0 : index
    %c0_10 = arith.constant 0 : index
    %c0_11 = arith.constant 0 : index
    %26 = vector.load %arg6[%c0_9, %c0_10, %c0_11] : memref<2x6x128xf32, #tpu.memory_space<vmem>>, vector<1x6x128xf32>
    %27 = vector.shape_cast %26 : vector<1x6x128xf32> to vector<6x128xf32>
    %c0_12 = arith.constant 0 : index
    %c0_13 = arith.constant 0 : index
    %c0_14 = arith.constant 0 : index
    %28 = vector.load %arg3[%c0_12, %c0_13, %c0_14] : memref<2x128x384xbf16, #tpu.memory_space<vmem>>, vector<1x128x384xbf16>
    %29 = vector.shape_cast %28 : vector<1x128x384xbf16> to vector<128x384xbf16>
    %cst_15 = arith.constant dense<0.000000e+00> : vector<32x384xf32>
    %30 = tpu.matmul %25, %29, %cst_15 {dimension_numbers = #tpu.dot_dimension_numbers<[1], [0], [0], [1], [0, 0, 1, 1], [], []>} : vector<32x128xbf16>, vector<128x384xbf16>, vector<32x384xf32> -> vector<32x384xf32>
    %c0_16 = arith.constant 0 : index
    %c0_17 = arith.constant 0 : index
    %c0_18 = arith.constant 0 : index
    %31 = vector.load %arg4[%c0_16, %c0_17, %c0_18] : memref<2x1x384xf32, #tpu.memory_space<vmem>>, vector<1x1x384xf32>
    %32 = vector.shape_cast %31 : vector<1x1x384xf32> to vector<1x384xf32>
    %33 = vector.broadcast %32 : vector<1x384xf32> to vector<32x384xf32>
    %34 = arith.addf %30, %33 : vector<32x384xf32>
    %35 = arith.truncf %34 : vector<32x384xf32> to vector<32x384xbf16>
    %36 = vector.extract_strided_slice %35 {offsets = [0, 0], sizes = [32, 32], strides = [1, 1]} : vector<32x384xbf16> to vector<32x32xbf16>
    %37 = vector.extract_strided_slice %35 {offsets = [0, 128], sizes = [32, 32], strides = [1, 1]} : vector<32x384xbf16> to vector<32x32xbf16>
    %38 = vector.extract_strided_slice %35 {offsets = [0, 256], sizes = [32, 32], strides = [1, 1]} : vector<32x384xbf16> to vector<32x32xbf16>
    %cst_19 = arith.constant dense<0.000000e+00> : vector<32x32xf32>
    %39 = tpu.matmul %36, %37, %cst_19 {dimension_numbers = #tpu.dot_dimension_numbers<[1], [1], [0], [0], [0, 0, 1, 0], [], []>} : vector<32x32xbf16>, vector<32x32xbf16>, vector<32x32xf32> -> vector<32x32xf32>
    %cst_20 = arith.constant 0.176776692 : f32
    %40 = vector.broadcast %cst_20 : f32 to vector<32x32xf32>
    %41 = arith.mulf %39, %40 : vector<32x32xf32>
    %42 = arith.addf %41, %0 : vector<32x32xf32>
    %cst_21 = arith.constant dense<0xFF800000> : vector<32xf32>
    %43 = vector.multi_reduction <maximumf>, %42, %cst_21 [1] : vector<32x32xf32> to vector<32xf32>
    %44 = vector.shape_cast %43 : vector<32xf32> to vector<32x1xf32>
    %45 = vector.broadcast %44 : vector<32x1xf32> to vector<32x32xf32>
    %46 = arith.subf %42, %45 : vector<32x32xf32>
    %47 = math.exp %46 : vector<32x32xf32>
    %cst_22 = arith.constant dense<0.000000e+00> : vector<32xf32>
    %48 = vector.multi_reduction <add>, %47, %cst_22 [1] : vector<32x32xf32> to vector<32xf32>
    %49 = vector.shape_cast %48 : vector<32xf32> to vector<32x1xf32>
    %50 = tpu.reciprocal %49 {approx = true} : vector<32x1xf32> -> vector<32x1xf32>
    %51 = vector.broadcast %50 : vector<32x1xf32> to vector<32x32xf32>
    %52 = arith.mulf %47, %51 : vector<32x32xf32>
    %53 = arith.truncf %52 : vector<32x32xf32> to vector<32x32xbf16>
    %cst_23 = arith.constant dense<0.000000e+00> : vector<32x32xf32>
    %54 = tpu.matmul %53, %38, %cst_23 {dimension_numbers = #tpu.dot_dimension_numbers<[1], [0], [0], [1], [0, 0, 1, 1], [], []>} : vector<32x32xbf16>, vector<32x32xbf16>, vector<32x32xf32> -> vector<32x32xf32>
    %55 = vector.extract_strided_slice %35 {offsets = [0, 32], sizes = [32, 32], strides = [1, 1]} : vector<32x384xbf16> to vector<32x32xbf16>
    %56 = vector.extract_strided_slice %35 {offsets = [0, 160], sizes = [32, 32], strides = [1, 1]} : vector<32x384xbf16> to vector<32x32xbf16>
    %57 = vector.extract_strided_slice %35 {offsets = [0, 288], sizes = [32, 32], strides = [1, 1]} : vector<32x384xbf16> to vector<32x32xbf16>
    %cst_24 = arith.constant dense<0.000000e+00> : vector<32x32xf32>
    %58 = tpu.matmul %55, %56, %cst_24 {dimension_numbers = #tpu.dot_dimension_numbers<[1], [1], [0], [0], [0, 0, 1, 0], [], []>} : vector<32x32xbf16>, vector<32x32xbf16>, vector<32x32xf32> -> vector<32x32xf32>
    %cst_25 = arith.constant 0.176776692 : f32
    %59 = vector.broadcast %cst_25 : f32 to vector<32x32xf32>
    %60 = arith.mulf %58, %59 : vector<32x32xf32>
    %61 = arith.addf %60, %0 : vector<32x32xf32>
    %cst_26 = arith.constant dense<0xFF800000> : vector<32xf32>
    %62 = vector.multi_reduction <maximumf>, %61, %cst_26 [1] : vector<32x32xf32> to vector<32xf32>
    %63 = vector.shape_cast %62 : vector<32xf32> to vector<32x1xf32>
    %64 = vector.broadcast %63 : vector<32x1xf32> to vector<32x32xf32>
    %65 = arith.subf %61, %64 : vector<32x32xf32>
    %66 = math.exp %65 : vector<32x32xf32>
    %cst_27 = arith.constant dense<0.000000e+00> : vector<32xf32>
    %67 = vector.multi_reduction <add>, %66, %cst_27 [1] : vector<32x32xf32> to vector<32xf32>
    %68 = vector.shape_cast %67 : vector<32xf32> to vector<32x1xf32>
    %69 = tpu.reciprocal %68 {approx = true} : vector<32x1xf32> -> vector<32x1xf32>
    %70 = vector.broadcast %69 : vector<32x1xf32> to vector<32x32xf32>
    %71 = arith.mulf %66, %70 : vector<32x32xf32>
    %72 = arith.truncf %71 : vector<32x32xf32> to vector<32x32xbf16>
    %cst_28 = arith.constant dense<0.000000e+00> : vector<32x32xf32>
    %73 = tpu.matmul %72, %57, %cst_28 {dimension_numbers = #tpu.dot_dimension_numbers<[1], [0], [0], [1], [0, 0, 1, 1], [], []>} : vector<32x32xbf16>, vector<32x32xbf16>, vector<32x32xf32> -> vector<32x32xf32>
    %74 = vector.extract_strided_slice %35 {offsets = [0, 64], sizes = [32, 32], strides = [1, 1]} : vector<32x384xbf16> to vector<32x32xbf16>
    %75 = vector.extract_strided_slice %35 {offsets = [0, 192], sizes = [32, 32], strides = [1, 1]} : vector<32x384xbf16> to vector<32x32xbf16>
    %76 = vector.extract_strided_slice %35 {offsets = [0, 320], sizes = [32, 32], strides = [1, 1]} : vector<32x384xbf16> to vector<32x32xbf16>
    %cst_29 = arith.constant dense<0.000000e+00> : vector<32x32xf32>
    %77 = tpu.matmul %74, %75, %cst_29 {dimension_numbers = #tpu.dot_dimension_numbers<[1], [1], [0], [0], [0, 0, 1, 0], [], []>} : vector<32x32xbf16>, vector<32x32xbf16>, vector<32x32xf32> -> vector<32x32xf32>
    %cst_30 = arith.constant 0.176776692 : f32
    %78 = vector.broadcast %cst_30 : f32 to vector<32x32xf32>
    %79 = arith.mulf %77, %78 : vector<32x32xf32>
    %80 = arith.addf %79, %0 : vector<32x32xf32>
    %cst_31 = arith.constant dense<0xFF800000> : vector<32xf32>
    %81 = vector.multi_reduction <maximumf>, %80, %cst_31 [1] : vector<32x32xf32> to vector<32xf32>
    %82 = vector.shape_cast %81 : vector<32xf32> to vector<32x1xf32>
    %83 = vector.broadcast %82 : vector<32x1xf32> to vector<32x32xf32>
    %84 = arith.subf %80, %83 : vector<32x32xf32>
    %85 = math.exp %84 : vector<32x32xf32>
    %cst_32 = arith.constant dense<0.000000e+00> : vector<32xf32>
    %86 = vector.multi_reduction <add>, %85, %cst_32 [1] : vector<32x32xf32> to vector<32xf32>
    %87 = vector.shape_cast %86 : vector<32xf32> to vector<32x1xf32>
    %88 = tpu.reciprocal %87 {approx = true} : vector<32x1xf32> -> vector<32x1xf32>
    %89 = vector.broadcast %88 : vector<32x1xf32> to vector<32x32xf32>
    %90 = arith.mulf %85, %89 : vector<32x32xf32>
    %91 = arith.truncf %90 : vector<32x32xf32> to vector<32x32xbf16>
    %cst_33 = arith.constant dense<0.000000e+00> : vector<32x32xf32>
    %92 = tpu.matmul %91, %76, %cst_33 {dimension_numbers = #tpu.dot_dimension_numbers<[1], [0], [0], [1], [0, 0, 1, 1], [], []>} : vector<32x32xbf16>, vector<32x32xbf16>, vector<32x32xf32> -> vector<32x32xf32>
    %93 = vector.extract_strided_slice %35 {offsets = [0, 96], sizes = [32, 32], strides = [1, 1]} : vector<32x384xbf16> to vector<32x32xbf16>
    %94 = vector.extract_strided_slice %35 {offsets = [0, 224], sizes = [32, 32], strides = [1, 1]} : vector<32x384xbf16> to vector<32x32xbf16>
    %95 = vector.extract_strided_slice %35 {offsets = [0, 352], sizes = [32, 32], strides = [1, 1]} : vector<32x384xbf16> to vector<32x32xbf16>
    %cst_34 = arith.constant dense<0.000000e+00> : vector<32x32xf32>
    %96 = tpu.matmul %93, %94, %cst_34 {dimension_numbers = #tpu.dot_dimension_numbers<[1], [1], [0], [0], [0, 0, 1, 0], [], []>} : vector<32x32xbf16>, vector<32x32xbf16>, vector<32x32xf32> -> vector<32x32xf32>
    %cst_35 = arith.constant 0.176776692 : f32
    %97 = vector.broadcast %cst_35 : f32 to vector<32x32xf32>
    %98 = arith.mulf %96, %97 : vector<32x32xf32>
    %99 = arith.addf %98, %0 : vector<32x32xf32>
    %cst_36 = arith.constant dense<0xFF800000> : vector<32xf32>
    %100 = vector.multi_reduction <maximumf>, %99, %cst_36 [1] : vector<32x32xf32> to vector<32xf32>
    %101 = vector.shape_cast %100 : vector<32xf32> to vector<32x1xf32>
    %102 = vector.broadcast %101 : vector<32x1xf32> to vector<32x32xf32>
    %103 = arith.subf %99, %102 : vector<32x32xf32>
    %104 = math.exp %103 : vector<32x32xf32>
    %cst_37 = arith.constant dense<0.000000e+00> : vector<32xf32>
    %105 = vector.multi_reduction <add>, %104, %cst_37 [1] : vector<32x32xf32> to vector<32xf32>
    %106 = vector.shape_cast %105 : vector<32xf32> to vector<32x1xf32>
    %107 = tpu.reciprocal %106 {approx = true} : vector<32x1xf32> -> vector<32x1xf32>
    %108 = vector.broadcast %107 : vector<32x1xf32> to vector<32x32xf32>
    %109 = arith.mulf %104, %108 : vector<32x32xf32>
    %110 = arith.truncf %109 : vector<32x32xf32> to vector<32x32xbf16>
    %cst_38 = arith.constant dense<0.000000e+00> : vector<32x32xf32>
    %111 = tpu.matmul %110, %95, %cst_38 {dimension_numbers = #tpu.dot_dimension_numbers<[1], [0], [0], [1], [0, 0, 1, 1], [], []>} : vector<32x32xbf16>, vector<32x32xbf16>, vector<32x32xf32> -> vector<32x32xf32>
    %112 = tpu.concatenate %54, %73, %92, %111 in 1 : vector<32x32xf32>, vector<32x32xf32>, vector<32x32xf32>, vector<32x32xf32> -> vector<32x128xf32>
    %113 = arith.truncf %112 : vector<32x128xf32> to vector<32x128xbf16>
    %c0_39 = arith.constant 0 : index
    %c0_40 = arith.constant 0 : index
    %c0_41 = arith.constant 0 : index
    %114 = vector.load %arg5[%c0_39, %c0_40, %c0_41] : memref<2x128x128xbf16, #tpu.memory_space<vmem>>, vector<1x128x128xbf16>
    %115 = vector.shape_cast %114 : vector<1x128x128xbf16> to vector<128x128xbf16>
    %cst_42 = arith.constant dense<0.000000e+00> : vector<32x128xf32>
    %116 = tpu.matmul %113, %115, %cst_42 {dimension_numbers = #tpu.dot_dimension_numbers<[1], [0], [0], [1], [0, 0, 1, 1], [], []>} : vector<32x128xbf16>, vector<128x128xbf16>, vector<32x128xf32> -> vector<32x128xf32>
    %117 = vector.extract_strided_slice %27 {offsets = [0, 0], sizes = [1, 128], strides = [1, 1]} : vector<6x128xf32> to vector<1x128xf32>
    %118 = vector.broadcast %117 : vector<1x128xf32> to vector<32x128xf32>
    %119 = arith.addf %116, %118 : vector<32x128xf32>
    %120 = arith.extf %25 : vector<32x128xbf16> to vector<32x128xf32>
    %121 = arith.addf %119, %120 : vector<32x128xf32>
    %122 = vector.extract_strided_slice %27 {offsets = [1, 0], sizes = [1, 128], strides = [1, 1]} : vector<6x128xf32> to vector<1x128xf32>
    %123 = vector.extract_strided_slice %27 {offsets = [2, 0], sizes = [1, 128], strides = [1, 1]} : vector<6x128xf32> to vector<1x128xf32>
    %cst_43 = arith.constant dense<0.000000e+00> : vector<32xf32>
    %124 = vector.multi_reduction <add>, %121, %cst_43 [1] : vector<32x128xf32> to vector<32xf32>
    %125 = vector.shape_cast %124 : vector<32xf32> to vector<32x1xf32>
    %cst_44 = arith.constant 1.280000e+02 : f32
    %126 = vector.broadcast %cst_44 : f32 to vector<32x1xf32>
    %127 = arith.divf %125, %126 : vector<32x1xf32>
    %128 = vector.broadcast %127 : vector<32x1xf32> to vector<32x128xf32>
    %129 = arith.subf %121, %128 : vector<32x128xf32>
    %130 = arith.mulf %129, %129 : vector<32x128xf32>
    %cst_45 = arith.constant dense<0.000000e+00> : vector<32xf32>
    %131 = vector.multi_reduction <add>, %130, %cst_45 [1] : vector<32x128xf32> to vector<32xf32>
    %132 = vector.shape_cast %131 : vector<32xf32> to vector<32x1xf32>
    %cst_46 = arith.constant 1.280000e+02 : f32
    %133 = vector.broadcast %cst_46 : f32 to vector<32x1xf32>
    %134 = arith.divf %132, %133 : vector<32x1xf32>
    %cst_47 = arith.constant 9.99999996E-13 : f32
    %135 = vector.broadcast %cst_47 : f32 to vector<32x1xf32>
    %136 = arith.addf %134, %135 : vector<32x1xf32>
    %137 = math.rsqrt %136 : vector<32x1xf32>
    %138 = vector.broadcast %137 : vector<32x1xf32> to vector<32x128xf32>
    %139 = arith.mulf %129, %138 : vector<32x128xf32>
    %140 = vector.broadcast %122 : vector<1x128xf32> to vector<32x128xf32>
    %141 = arith.mulf %139, %140 : vector<32x128xf32>
    %142 = vector.broadcast %123 : vector<1x128xf32> to vector<32x128xf32>
    %143 = arith.addf %141, %142 : vector<32x128xf32>
    %144 = arith.truncf %143 : vector<32x128xf32> to vector<32x128xbf16>
    %c0_48 = arith.constant 0 : index
    %c0_49 = arith.constant 0 : index
    %c0_50 = arith.constant 0 : index
    %145 = vector.load %arg7[%c0_48, %c0_49, %c0_50] : memref<2x128x256xbf16, #tpu.memory_space<vmem>>, vector<1x128x256xbf16>
    %146 = vector.shape_cast %145 : vector<1x128x256xbf16> to vector<128x256xbf16>
    %cst_51 = arith.constant dense<0.000000e+00> : vector<32x256xf32>
    %147 = tpu.matmul %144, %146, %cst_51 {dimension_numbers = #tpu.dot_dimension_numbers<[1], [0], [0], [1], [0, 0, 1, 1], [], []>} : vector<32x128xbf16>, vector<128x256xbf16>, vector<32x256xf32> -> vector<32x256xf32>
    %c0_52 = arith.constant 0 : index
    %c0_53 = arith.constant 0 : index
    %c0_54 = arith.constant 0 : index
    %148 = vector.load %arg8[%c0_52, %c0_53, %c0_54] : memref<2x1x256xf32, #tpu.memory_space<vmem>>, vector<1x1x256xf32>
    %149 = vector.shape_cast %148 : vector<1x1x256xf32> to vector<1x256xf32>
    %150 = vector.broadcast %149 : vector<1x256xf32> to vector<32x256xf32>
    %151 = arith.addf %147, %150 : vector<32x256xf32>
    %152 = arith.mulf %151, %151 : vector<32x256xf32>
    %153 = arith.mulf %151, %152 : vector<32x256xf32>
    %cst_55 = arith.constant 4.471500e-02 : f32
    %154 = vector.broadcast %cst_55 : f32 to vector<32x256xf32>
    %155 = arith.mulf %154, %153 : vector<32x256xf32>
    %156 = arith.addf %151, %155 : vector<32x256xf32>
    %cst_56 = arith.constant 0.797884583 : f32
    %157 = vector.broadcast %cst_56 : f32 to vector<32x256xf32>
    %158 = arith.mulf %157, %156 : vector<32x256xf32>
    %159 = math.tanh %158 : vector<32x256xf32>
    %cst_57 = arith.constant 1.000000e+00 : f32
    %160 = vector.broadcast %cst_57 : f32 to vector<32x256xf32>
    %161 = arith.addf %160, %159 : vector<32x256xf32>
    %cst_58 = arith.constant 5.000000e-01 : f32
    %162 = vector.broadcast %cst_58 : f32 to vector<32x256xf32>
    %163 = arith.mulf %162, %161 : vector<32x256xf32>
    %164 = arith.mulf %151, %163 : vector<32x256xf32>
    %165 = arith.truncf %164 : vector<32x256xf32> to vector<32x256xbf16>
    %c0_59 = arith.constant 0 : index
    %c0_60 = arith.constant 0 : index
    %c0_61 = arith.constant 0 : index
    %166 = vector.load %arg9[%c0_59, %c0_60, %c0_61] : memref<2x256x128xbf16, #tpu.memory_space<vmem>>, vector<1x256x128xbf16>
    %167 = vector.shape_cast %166 : vector<1x256x128xbf16> to vector<256x128xbf16>
    %cst_62 = arith.constant dense<0.000000e+00> : vector<32x128xf32>
    %168 = tpu.matmul %165, %167, %cst_62 {dimension_numbers = #tpu.dot_dimension_numbers<[1], [0], [0], [1], [0, 0, 1, 1], [], []>} : vector<32x256xbf16>, vector<256x128xbf16>, vector<32x128xf32> -> vector<32x128xf32>
    %169 = vector.extract_strided_slice %27 {offsets = [3, 0], sizes = [1, 128], strides = [1, 1]} : vector<6x128xf32> to vector<1x128xf32>
    %170 = vector.broadcast %169 : vector<1x128xf32> to vector<32x128xf32>
    %171 = arith.addf %168, %170 : vector<32x128xf32>
    %172 = arith.extf %144 : vector<32x128xbf16> to vector<32x128xf32>
    %173 = arith.addf %171, %172 : vector<32x128xf32>
    %174 = vector.extract_strided_slice %27 {offsets = [4, 0], sizes = [1, 128], strides = [1, 1]} : vector<6x128xf32> to vector<1x128xf32>
    %175 = vector.extract_strided_slice %27 {offsets = [5, 0], sizes = [1, 128], strides = [1, 1]} : vector<6x128xf32> to vector<1x128xf32>
    %cst_63 = arith.constant dense<0.000000e+00> : vector<32xf32>
    %176 = vector.multi_reduction <add>, %173, %cst_63 [1] : vector<32x128xf32> to vector<32xf32>
    %177 = vector.shape_cast %176 : vector<32xf32> to vector<32x1xf32>
    %cst_64 = arith.constant 1.280000e+02 : f32
    %178 = vector.broadcast %cst_64 : f32 to vector<32x1xf32>
    %179 = arith.divf %177, %178 : vector<32x1xf32>
    %180 = vector.broadcast %179 : vector<32x1xf32> to vector<32x128xf32>
    %181 = arith.subf %173, %180 : vector<32x128xf32>
    %182 = arith.mulf %181, %181 : vector<32x128xf32>
    %cst_65 = arith.constant dense<0.000000e+00> : vector<32xf32>
    %183 = vector.multi_reduction <add>, %182, %cst_65 [1] : vector<32x128xf32> to vector<32xf32>
    %184 = vector.shape_cast %183 : vector<32xf32> to vector<32x1xf32>
    %cst_66 = arith.constant 1.280000e+02 : f32
    %185 = vector.broadcast %cst_66 : f32 to vector<32x1xf32>
    %186 = arith.divf %184, %185 : vector<32x1xf32>
    %cst_67 = arith.constant 9.99999996E-13 : f32
    %187 = vector.broadcast %cst_67 : f32 to vector<32x1xf32>
    %188 = arith.addf %186, %187 : vector<32x1xf32>
    %189 = math.rsqrt %188 : vector<32x1xf32>
    %190 = vector.broadcast %189 : vector<32x1xf32> to vector<32x128xf32>
    %191 = arith.mulf %181, %190 : vector<32x128xf32>
    %192 = vector.broadcast %174 : vector<1x128xf32> to vector<32x128xf32>
    %193 = arith.mulf %191, %192 : vector<32x128xf32>
    %194 = vector.broadcast %175 : vector<1x128xf32> to vector<32x128xf32>
    %195 = arith.addf %193, %194 : vector<32x128xf32>
    %196 = arith.truncf %195 : vector<32x128xf32> to vector<32x128xbf16>
    %c1 = arith.constant 1 : index
    %c0_68 = arith.constant 0 : index
    %c0_69 = arith.constant 0 : index
    %197 = vector.load %arg6[%c1, %c0_68, %c0_69] : memref<2x6x128xf32, #tpu.memory_space<vmem>>, vector<1x6x128xf32>
    %198 = vector.shape_cast %197 : vector<1x6x128xf32> to vector<6x128xf32>
    %c1_70 = arith.constant 1 : index
    %c0_71 = arith.constant 0 : index
    %c0_72 = arith.constant 0 : index
    %199 = vector.load %arg3[%c1_70, %c0_71, %c0_72] : memref<2x128x384xbf16, #tpu.memory_space<vmem>>, vector<1x128x384xbf16>
    %200 = vector.shape_cast %199 : vector<1x128x384xbf16> to vector<128x384xbf16>
    %cst_73 = arith.constant dense<0.000000e+00> : vector<32x384xf32>
    %201 = tpu.matmul %196, %200, %cst_73 {dimension_numbers = #tpu.dot_dimension_numbers<[1], [0], [0], [1], [0, 0, 1, 1], [], []>} : vector<32x128xbf16>, vector<128x384xbf16>, vector<32x384xf32> -> vector<32x384xf32>
    %c1_74 = arith.constant 1 : index
    %c0_75 = arith.constant 0 : index
    %c0_76 = arith.constant 0 : index
    %202 = vector.load %arg4[%c1_74, %c0_75, %c0_76] : memref<2x1x384xf32, #tpu.memory_space<vmem>>, vector<1x1x384xf32>
    %203 = vector.shape_cast %202 : vector<1x1x384xf32> to vector<1x384xf32>
    %204 = vector.broadcast %203 : vector<1x384xf32> to vector<32x384xf32>
    %205 = arith.addf %201, %204 : vector<32x384xf32>
    %206 = arith.truncf %205 : vector<32x384xf32> to vector<32x384xbf16>
    %207 = vector.extract_strided_slice %206 {offsets = [0, 0], sizes = [32, 32], strides = [1, 1]} : vector<32x384xbf16> to vector<32x32xbf16>
    %208 = vector.extract_strided_slice %206 {offsets = [0, 128], sizes = [32, 32], strides = [1, 1]} : vector<32x384xbf16> to vector<32x32xbf16>
    %209 = vector.extract_strided_slice %206 {offsets = [0, 256], sizes = [32, 32], strides = [1, 1]} : vector<32x384xbf16> to vector<32x32xbf16>
    %cst_77 = arith.constant dense<0.000000e+00> : vector<32x32xf32>
    %210 = tpu.matmul %207, %208, %cst_77 {dimension_numbers = #tpu.dot_dimension_numbers<[1], [1], [0], [0], [0, 0, 1, 0], [], []>} : vector<32x32xbf16>, vector<32x32xbf16>, vector<32x32xf32> -> vector<32x32xf32>
    %cst_78 = arith.constant 0.176776692 : f32
    %211 = vector.broadcast %cst_78 : f32 to vector<32x32xf32>
    %212 = arith.mulf %210, %211 : vector<32x32xf32>
    %213 = arith.addf %212, %0 : vector<32x32xf32>
    %cst_79 = arith.constant dense<0xFF800000> : vector<32xf32>
    %214 = vector.multi_reduction <maximumf>, %213, %cst_79 [1] : vector<32x32xf32> to vector<32xf32>
    %215 = vector.shape_cast %214 : vector<32xf32> to vector<32x1xf32>
    %216 = vector.broadcast %215 : vector<32x1xf32> to vector<32x32xf32>
    %217 = arith.subf %213, %216 : vector<32x32xf32>
    %218 = math.exp %217 : vector<32x32xf32>
    %cst_80 = arith.constant dense<0.000000e+00> : vector<32xf32>
    %219 = vector.multi_reduction <add>, %218, %cst_80 [1] : vector<32x32xf32> to vector<32xf32>
    %220 = vector.shape_cast %219 : vector<32xf32> to vector<32x1xf32>
    %221 = tpu.reciprocal %220 {approx = true} : vector<32x1xf32> -> vector<32x1xf32>
    %222 = vector.broadcast %221 : vector<32x1xf32> to vector<32x32xf32>
    %223 = arith.mulf %218, %222 : vector<32x32xf32>
    %224 = arith.truncf %223 : vector<32x32xf32> to vector<32x32xbf16>
    %cst_81 = arith.constant dense<0.000000e+00> : vector<32x32xf32>
    %225 = tpu.matmul %224, %209, %cst_81 {dimension_numbers = #tpu.dot_dimension_numbers<[1], [0], [0], [1], [0, 0, 1, 1], [], []>} : vector<32x32xbf16>, vector<32x32xbf16>, vector<32x32xf32> -> vector<32x32xf32>
    %226 = vector.extract_strided_slice %206 {offsets = [0, 32], sizes = [32, 32], strides = [1, 1]} : vector<32x384xbf16> to vector<32x32xbf16>
    %227 = vector.extract_strided_slice %206 {offsets = [0, 160], sizes = [32, 32], strides = [1, 1]} : vector<32x384xbf16> to vector<32x32xbf16>
    %228 = vector.extract_strided_slice %206 {offsets = [0, 288], sizes = [32, 32], strides = [1, 1]} : vector<32x384xbf16> to vector<32x32xbf16>
    %cst_82 = arith.constant dense<0.000000e+00> : vector<32x32xf32>
    %229 = tpu.matmul %226, %227, %cst_82 {dimension_numbers = #tpu.dot_dimension_numbers<[1], [1], [0], [0], [0, 0, 1, 0], [], []>} : vector<32x32xbf16>, vector<32x32xbf16>, vector<32x32xf32> -> vector<32x32xf32>
    %cst_83 = arith.constant 0.176776692 : f32
    %230 = vector.broadcast %cst_83 : f32 to vector<32x32xf32>
    %231 = arith.mulf %229, %230 : vector<32x32xf32>
    %232 = arith.addf %231, %0 : vector<32x32xf32>
    %cst_84 = arith.constant dense<0xFF800000> : vector<32xf32>
    %233 = vector.multi_reduction <maximumf>, %232, %cst_84 [1] : vector<32x32xf32> to vector<32xf32>
    %234 = vector.shape_cast %233 : vector<32xf32> to vector<32x1xf32>
    %235 = vector.broadcast %234 : vector<32x1xf32> to vector<32x32xf32>
    %236 = arith.subf %232, %235 : vector<32x32xf32>
    %237 = math.exp %236 : vector<32x32xf32>
    %cst_85 = arith.constant dense<0.000000e+00> : vector<32xf32>
    %238 = vector.multi_reduction <add>, %237, %cst_85 [1] : vector<32x32xf32> to vector<32xf32>
    %239 = vector.shape_cast %238 : vector<32xf32> to vector<32x1xf32>
    %240 = tpu.reciprocal %239 {approx = true} : vector<32x1xf32> -> vector<32x1xf32>
    %241 = vector.broadcast %240 : vector<32x1xf32> to vector<32x32xf32>
    %242 = arith.mulf %237, %241 : vector<32x32xf32>
    %243 = arith.truncf %242 : vector<32x32xf32> to vector<32x32xbf16>
    %cst_86 = arith.constant dense<0.000000e+00> : vector<32x32xf32>
    %244 = tpu.matmul %243, %228, %cst_86 {dimension_numbers = #tpu.dot_dimension_numbers<[1], [0], [0], [1], [0, 0, 1, 1], [], []>} : vector<32x32xbf16>, vector<32x32xbf16>, vector<32x32xf32> -> vector<32x32xf32>
    %245 = vector.extract_strided_slice %206 {offsets = [0, 64], sizes = [32, 32], strides = [1, 1]} : vector<32x384xbf16> to vector<32x32xbf16>
    %246 = vector.extract_strided_slice %206 {offsets = [0, 192], sizes = [32, 32], strides = [1, 1]} : vector<32x384xbf16> to vector<32x32xbf16>
    %247 = vector.extract_strided_slice %206 {offsets = [0, 320], sizes = [32, 32], strides = [1, 1]} : vector<32x384xbf16> to vector<32x32xbf16>
    %cst_87 = arith.constant dense<0.000000e+00> : vector<32x32xf32>
    %248 = tpu.matmul %245, %246, %cst_87 {dimension_numbers = #tpu.dot_dimension_numbers<[1], [1], [0], [0], [0, 0, 1, 0], [], []>} : vector<32x32xbf16>, vector<32x32xbf16>, vector<32x32xf32> -> vector<32x32xf32>
    %cst_88 = arith.constant 0.176776692 : f32
    %249 = vector.broadcast %cst_88 : f32 to vector<32x32xf32>
    %250 = arith.mulf %248, %249 : vector<32x32xf32>
    %251 = arith.addf %250, %0 : vector<32x32xf32>
    %cst_89 = arith.constant dense<0xFF800000> : vector<32xf32>
    %252 = vector.multi_reduction <maximumf>, %251, %cst_89 [1] : vector<32x32xf32> to vector<32xf32>
    %253 = vector.shape_cast %252 : vector<32xf32> to vector<32x1xf32>
    %254 = vector.broadcast %253 : vector<32x1xf32> to vector<32x32xf32>
    %255 = arith.subf %251, %254 : vector<32x32xf32>
    %256 = math.exp %255 : vector<32x32xf32>
    %cst_90 = arith.constant dense<0.000000e+00> : vector<32xf32>
    %257 = vector.multi_reduction <add>, %256, %cst_90 [1] : vector<32x32xf32> to vector<32xf32>
    %258 = vector.shape_cast %257 : vector<32xf32> to vector<32x1xf32>
    %259 = tpu.reciprocal %258 {approx = true} : vector<32x1xf32> -> vector<32x1xf32>
    %260 = vector.broadcast %259 : vector<32x1xf32> to vector<32x32xf32>
    %261 = arith.mulf %256, %260 : vector<32x32xf32>
    %262 = arith.truncf %261 : vector<32x32xf32> to vector<32x32xbf16>
    %cst_91 = arith.constant dense<0.000000e+00> : vector<32x32xf32>
    %263 = tpu.matmul %262, %247, %cst_91 {dimension_numbers = #tpu.dot_dimension_numbers<[1], [0], [0], [1], [0, 0, 1, 1], [], []>} : vector<32x32xbf16>, vector<32x32xbf16>, vector<32x32xf32> -> vector<32x32xf32>
    %264 = vector.extract_strided_slice %206 {offsets = [0, 96], sizes = [32, 32], strides = [1, 1]} : vector<32x384xbf16> to vector<32x32xbf16>
    %265 = vector.extract_strided_slice %206 {offsets = [0, 224], sizes = [32, 32], strides = [1, 1]} : vector<32x384xbf16> to vector<32x32xbf16>
    %266 = vector.extract_strided_slice %206 {offsets = [0, 352], sizes = [32, 32], strides = [1, 1]} : vector<32x384xbf16> to vector<32x32xbf16>
    %cst_92 = arith.constant dense<0.000000e+00> : vector<32x32xf32>
    %267 = tpu.matmul %264, %265, %cst_92 {dimension_numbers = #tpu.dot_dimension_numbers<[1], [1], [0], [0], [0, 0, 1, 0], [], []>} : vector<32x32xbf16>, vector<32x32xbf16>, vector<32x32xf32> -> vector<32x32xf32>
    %cst_93 = arith.constant 0.176776692 : f32
    %268 = vector.broadcast %cst_93 : f32 to vector<32x32xf32>
    %269 = arith.mulf %267, %268 : vector<32x32xf32>
    %270 = arith.addf %269, %0 : vector<32x32xf32>
    %cst_94 = arith.constant dense<0xFF800000> : vector<32xf32>
    %271 = vector.multi_reduction <maximumf>, %270, %cst_94 [1] : vector<32x32xf32> to vector<32xf32>
    %272 = vector.shape_cast %271 : vector<32xf32> to vector<32x1xf32>
    %273 = vector.broadcast %272 : vector<32x1xf32> to vector<32x32xf32>
    %274 = arith.subf %270, %273 : vector<32x32xf32>
    %275 = math.exp %274 : vector<32x32xf32>
    %cst_95 = arith.constant dense<0.000000e+00> : vector<32xf32>
    %276 = vector.multi_reduction <add>, %275, %cst_95 [1] : vector<32x32xf32> to vector<32xf32>
    %277 = vector.shape_cast %276 : vector<32xf32> to vector<32x1xf32>
    %278 = tpu.reciprocal %277 {approx = true} : vector<32x1xf32> -> vector<32x1xf32>
    %279 = vector.broadcast %278 : vector<32x1xf32> to vector<32x32xf32>
    %280 = arith.mulf %275, %279 : vector<32x32xf32>
    %281 = arith.truncf %280 : vector<32x32xf32> to vector<32x32xbf16>
    %cst_96 = arith.constant dense<0.000000e+00> : vector<32x32xf32>
    %282 = tpu.matmul %281, %266, %cst_96 {dimension_numbers = #tpu.dot_dimension_numbers<[1], [0], [0], [1], [0, 0, 1, 1], [], []>} : vector<32x32xbf16>, vector<32x32xbf16>, vector<32x32xf32> -> vector<32x32xf32>
    %283 = tpu.concatenate %225, %244, %263, %282 in 1 : vector<32x32xf32>, vector<32x32xf32>, vector<32x32xf32>, vector<32x32xf32> -> vector<32x128xf32>
    %284 = arith.truncf %283 : vector<32x128xf32> to vector<32x128xbf16>
    %c1_97 = arith.constant 1 : index
    %c0_98 = arith.constant 0 : index
    %c0_99 = arith.constant 0 : index
    %285 = vector.load %arg5[%c1_97, %c0_98, %c0_99] : memref<2x128x128xbf16, #tpu.memory_space<vmem>>, vector<1x128x128xbf16>
    %286 = vector.shape_cast %285 : vector<1x128x128xbf16> to vector<128x128xbf16>
    %cst_100 = arith.constant dense<0.000000e+00> : vector<32x128xf32>
    %287 = tpu.matmul %284, %286, %cst_100 {dimension_numbers = #tpu.dot_dimension_numbers<[1], [0], [0], [1], [0, 0, 1, 1], [], []>} : vector<32x128xbf16>, vector<128x128xbf16>, vector<32x128xf32> -> vector<32x128xf32>
    %288 = vector.extract_strided_slice %198 {offsets = [0, 0], sizes = [1, 128], strides = [1, 1]} : vector<6x128xf32> to vector<1x128xf32>
    %289 = vector.broadcast %288 : vector<1x128xf32> to vector<32x128xf32>
    %290 = arith.addf %287, %289 : vector<32x128xf32>
    %291 = arith.extf %196 : vector<32x128xbf16> to vector<32x128xf32>
    %292 = arith.addf %290, %291 : vector<32x128xf32>
    %293 = vector.extract_strided_slice %198 {offsets = [1, 0], sizes = [1, 128], strides = [1, 1]} : vector<6x128xf32> to vector<1x128xf32>
    %294 = vector.extract_strided_slice %198 {offsets = [2, 0], sizes = [1, 128], strides = [1, 1]} : vector<6x128xf32> to vector<1x128xf32>
    %cst_101 = arith.constant dense<0.000000e+00> : vector<32xf32>
    %295 = vector.multi_reduction <add>, %292, %cst_101 [1] : vector<32x128xf32> to vector<32xf32>
    %296 = vector.shape_cast %295 : vector<32xf32> to vector<32x1xf32>
    %cst_102 = arith.constant 1.280000e+02 : f32
    %297 = vector.broadcast %cst_102 : f32 to vector<32x1xf32>
    %298 = arith.divf %296, %297 : vector<32x1xf32>
    %299 = vector.broadcast %298 : vector<32x1xf32> to vector<32x128xf32>
    %300 = arith.subf %292, %299 : vector<32x128xf32>
    %301 = arith.mulf %300, %300 : vector<32x128xf32>
    %cst_103 = arith.constant dense<0.000000e+00> : vector<32xf32>
    %302 = vector.multi_reduction <add>, %301, %cst_103 [1] : vector<32x128xf32> to vector<32xf32>
    %303 = vector.shape_cast %302 : vector<32xf32> to vector<32x1xf32>
    %cst_104 = arith.constant 1.280000e+02 : f32
    %304 = vector.broadcast %cst_104 : f32 to vector<32x1xf32>
    %305 = arith.divf %303, %304 : vector<32x1xf32>
    %cst_105 = arith.constant 9.99999996E-13 : f32
    %306 = vector.broadcast %cst_105 : f32 to vector<32x1xf32>
    %307 = arith.addf %305, %306 : vector<32x1xf32>
    %308 = math.rsqrt %307 : vector<32x1xf32>
    %309 = vector.broadcast %308 : vector<32x1xf32> to vector<32x128xf32>
    %310 = arith.mulf %300, %309 : vector<32x128xf32>
    %311 = vector.broadcast %293 : vector<1x128xf32> to vector<32x128xf32>
    %312 = arith.mulf %310, %311 : vector<32x128xf32>
    %313 = vector.broadcast %294 : vector<1x128xf32> to vector<32x128xf32>
    %314 = arith.addf %312, %313 : vector<32x128xf32>
    %315 = arith.truncf %314 : vector<32x128xf32> to vector<32x128xbf16>
    %c1_106 = arith.constant 1 : index
    %c0_107 = arith.constant 0 : index
    %c0_108 = arith.constant 0 : index
    %316 = vector.load %arg7[%c1_106, %c0_107, %c0_108] : memref<2x128x256xbf16, #tpu.memory_space<vmem>>, vector<1x128x256xbf16>
    %317 = vector.shape_cast %316 : vector<1x128x256xbf16> to vector<128x256xbf16>
    %cst_109 = arith.constant dense<0.000000e+00> : vector<32x256xf32>
    %318 = tpu.matmul %315, %317, %cst_109 {dimension_numbers = #tpu.dot_dimension_numbers<[1], [0], [0], [1], [0, 0, 1, 1], [], []>} : vector<32x128xbf16>, vector<128x256xbf16>, vector<32x256xf32> -> vector<32x256xf32>
    %c1_110 = arith.constant 1 : index
    %c0_111 = arith.constant 0 : index
    %c0_112 = arith.constant 0 : index
    %319 = vector.load %arg8[%c1_110, %c0_111, %c0_112] : memref<2x1x256xf32, #tpu.memory_space<vmem>>, vector<1x1x256xf32>
    %320 = vector.shape_cast %319 : vector<1x1x256xf32> to vector<1x256xf32>
    %321 = vector.broadcast %320 : vector<1x256xf32> to vector<32x256xf32>
    %322 = arith.addf %318, %321 : vector<32x256xf32>
    %323 = arith.mulf %322, %322 : vector<32x256xf32>
    %324 = arith.mulf %322, %323 : vector<32x256xf32>
    %cst_113 = arith.constant 4.471500e-02 : f32
    %325 = vector.broadcast %cst_113 : f32 to vector<32x256xf32>
    %326 = arith.mulf %325, %324 : vector<32x256xf32>
    %327 = arith.addf %322, %326 : vector<32x256xf32>
    %cst_114 = arith.constant 0.797884583 : f32
    %328 = vector.broadcast %cst_114 : f32 to vector<32x256xf32>
    %329 = arith.mulf %328, %327 : vector<32x256xf32>
    %330 = math.tanh %329 : vector<32x256xf32>
    %cst_115 = arith.constant 1.000000e+00 : f32
    %331 = vector.broadcast %cst_115 : f32 to vector<32x256xf32>
    %332 = arith.addf %331, %330 : vector<32x256xf32>
    %cst_116 = arith.constant 5.000000e-01 : f32
    %333 = vector.broadcast %cst_116 : f32 to vector<32x256xf32>
    %334 = arith.mulf %333, %332 : vector<32x256xf32>
    %335 = arith.mulf %322, %334 : vector<32x256xf32>
    %336 = arith.truncf %335 : vector<32x256xf32> to vector<32x256xbf16>
    %c1_117 = arith.constant 1 : index
    %c0_118 = arith.constant 0 : index
    %c0_119 = arith.constant 0 : index
    %337 = vector.load %arg9[%c1_117, %c0_118, %c0_119] : memref<2x256x128xbf16, #tpu.memory_space<vmem>>, vector<1x256x128xbf16>
    %338 = vector.shape_cast %337 : vector<1x256x128xbf16> to vector<256x128xbf16>
    %cst_120 = arith.constant dense<0.000000e+00> : vector<32x128xf32>
    %339 = tpu.matmul %336, %338, %cst_120 {dimension_numbers = #tpu.dot_dimension_numbers<[1], [0], [0], [1], [0, 0, 1, 1], [], []>} : vector<32x256xbf16>, vector<256x128xbf16>, vector<32x128xf32> -> vector<32x128xf32>
    %340 = vector.extract_strided_slice %198 {offsets = [3, 0], sizes = [1, 128], strides = [1, 1]} : vector<6x128xf32> to vector<1x128xf32>
    %341 = vector.broadcast %340 : vector<1x128xf32> to vector<32x128xf32>
    %342 = arith.addf %339, %341 : vector<32x128xf32>
    %343 = arith.extf %315 : vector<32x128xbf16> to vector<32x128xf32>
    %344 = arith.addf %342, %343 : vector<32x128xf32>
    %345 = vector.extract_strided_slice %198 {offsets = [4, 0], sizes = [1, 128], strides = [1, 1]} : vector<6x128xf32> to vector<1x128xf32>
    %346 = vector.extract_strided_slice %198 {offsets = [5, 0], sizes = [1, 128], strides = [1, 1]} : vector<6x128xf32> to vector<1x128xf32>
    %cst_121 = arith.constant dense<0.000000e+00> : vector<32xf32>
    %347 = vector.multi_reduction <add>, %344, %cst_121 [1] : vector<32x128xf32> to vector<32xf32>
    %348 = vector.shape_cast %347 : vector<32xf32> to vector<32x1xf32>
    %cst_122 = arith.constant 1.280000e+02 : f32
    %349 = vector.broadcast %cst_122 : f32 to vector<32x1xf32>
    %350 = arith.divf %348, %349 : vector<32x1xf32>
    %351 = vector.broadcast %350 : vector<32x1xf32> to vector<32x128xf32>
    %352 = arith.subf %344, %351 : vector<32x128xf32>
    %353 = arith.mulf %352, %352 : vector<32x128xf32>
    %cst_123 = arith.constant dense<0.000000e+00> : vector<32xf32>
    %354 = vector.multi_reduction <add>, %353, %cst_123 [1] : vector<32x128xf32> to vector<32xf32>
    %355 = vector.shape_cast %354 : vector<32xf32> to vector<32x1xf32>
    %cst_124 = arith.constant 1.280000e+02 : f32
    %356 = vector.broadcast %cst_124 : f32 to vector<32x1xf32>
    %357 = arith.divf %355, %356 : vector<32x1xf32>
    %cst_125 = arith.constant 9.99999996E-13 : f32
    %358 = vector.broadcast %cst_125 : f32 to vector<32x1xf32>
    %359 = arith.addf %357, %358 : vector<32x1xf32>
    %360 = math.rsqrt %359 : vector<32x1xf32>
    %361 = vector.broadcast %360 : vector<32x1xf32> to vector<32x128xf32>
    %362 = arith.mulf %352, %361 : vector<32x128xf32>
    %363 = vector.broadcast %345 : vector<1x128xf32> to vector<32x128xf32>
    %364 = arith.mulf %362, %363 : vector<32x128xf32>
    %365 = vector.broadcast %346 : vector<1x128xf32> to vector<32x128xf32>
    %366 = arith.addf %364, %365 : vector<32x128xf32>
    %367 = arith.truncf %366 : vector<32x128xf32> to vector<32x128xbf16>
    %368 = vector.extract_strided_slice %367 {offsets = [0, 0], sizes = [1, 128], strides = [1, 1]} : vector<32x128xbf16> to vector<1x128xbf16>
    %369 = vector.extract_strided_slice %367 {offsets = [16, 0], sizes = [1, 128], strides = [1, 1]} : vector<32x128xbf16> to vector<1x128xbf16>
    %370 = tpu.concatenate %368, %369 in 0 : vector<1x128xbf16>, vector<1x128xbf16> -> vector<2x128xbf16>
    %c0_126 = arith.constant 0 : index
    %c0_127 = arith.constant 0 : index
    %371 = vector.load %arg10[%c0_126, %c0_127] : memref<128x128xbf16, #tpu.memory_space<vmem>>, vector<128x128xbf16>
    %cst_128 = arith.constant dense<0.000000e+00> : vector<2x128xf32>
    %372 = tpu.matmul %370, %371, %cst_128 {dimension_numbers = #tpu.dot_dimension_numbers<[1], [0], [0], [1], [0, 0, 1, 1], [], []>} : vector<2x128xbf16>, vector<128x128xbf16>, vector<2x128xf32> -> vector<2x128xf32>
    %373 = vector.extract_strided_slice %1 {offsets = [2, 0], sizes = [1, 128], strides = [1, 1]} : vector<3x128xf32> to vector<1x128xf32>
    %374 = vector.broadcast %373 : vector<1x128xf32> to vector<2x128xf32>
    %375 = arith.addf %372, %374 : vector<2x128xf32>
    %c0_129 = arith.constant 0 : index
    %c0_130 = arith.constant 0 : index
    %376 = vector.load %arg11[%c0_129, %c0_130] : memref<2x128xf32, #tpu.memory_space<vmem>>, vector<2x128xf32>
    tpu.vector_store %arg11[%c0_129, %c0_130], %375 {strides = array<i32>} : memref<2x128xf32, #tpu.memory_space<vmem>>, vector<2x128xf32>,
    return
  }
}

</mosaic_0001>

<llo_original>
// kernel: my_model_forward.1
$region0: #{my_model_forward.1}
  #allocation0 [shape = 'u32[]', space=smem, size = 0x4, offset = 0x4, fixed_abs, tag = 'smem constant byte address 0x4 - core index']
  #allocation1 [shape = 'u32[144,128]{1,0:T(1,128)}', space=vmem, size = 0x12000, scoped, tag = 'internal scratch']
  %s0 = inlined_call_operand.vmem [shape: f32[32,128], index: 0, kind: input, shape index: {}]
  %s1 = inlined_call_operand.vmem [shape: f32[32,32], index: 1, kind: input, shape index: {}]
  %s2 = inlined_call_operand.vmem [shape: f32[3,128], index: 2, kind: input, shape index: {}]
  %s3 = inlined_call_operand.vmem [shape: bf16[2,128,384], index: 3, kind: input, shape index: {}]
  %s4 = inlined_call_operand.vmem [shape: f32[2,1,384], index: 4, kind: input, shape index: {}]
  %s5 = inlined_call_operand.vmem [shape: bf16[2,128,128], index: 5, kind: input, shape index: {}]
  %s6 = inlined_call_operand.vmem [shape: f32[2,6,128], index: 6, kind: input, shape index: {}]
  %s7 = inlined_call_operand.vmem [shape: bf16[2,128,256], index: 7, kind: input, shape index: {}]
  %s8 = inlined_call_operand.vmem [shape: f32[2,1,256], index: 8, kind: input, shape index: {}]
  %s9 = inlined_call_operand.vmem [shape: bf16[2,256,128], index: 9, kind: input, shape index: {}]
  %s10 = inlined_call_operand.vmem [shape: bf16[128,128], index: 10, kind: input, shape index: {}]
  %s11 = inlined_call_operand.hbm [shape: f32[2,128], index: 11, kind: output, shape index: {}]
  %s12 = sld [smem:[#allocation0]]
  $region54: #{my_model_forward.1} parent=0
    _
  %s14 = ssub.s32 1, %s12
  %s15 = scalar_select 0, %s14, %s12
  $region1: #{my_model_forward.1} parent=0
    #allocation2 [shape = 'u8[1024]{0}', space=vmem, size = 0x400, scoped, tag = 'output window, operand 0, single buffered']
    #allocation3 [shape = 's32[1]{0}', space=sflag, size = 0x4, scoped, tag = 'scoped memory for my_model_forward.1']
    %16 = vsyncpa [#allocation3], 0
    // Predicated region
    $region2: #{my_model_forward.1} parent=1 // pred_check
      _
    $region3: #{my_model_forward.1} parent=1 // pred_check_branch
      %18 = sbr.rel (0) target = $region5
    $region4: #{my_model_forward.1} parent=1 // pred_region
      _
    $region5: #{my_model_forward.1} parent=1 // pred_fallthru
      _
    // Predicated region
    $region6: #{my_model_forward.1} parent=1 // pred_check
      _
    $region7: #{my_model_forward.1} parent=1 // pred_check_branch
      %20 = sbr.rel (0) target = $region9
    $region8: #{my_model_forward.1} parent=1 // pred_region
      _
    $region9: #{my_model_forward.1} parent=1 // pred_fallthru
      _
    // Predicated region
    $region10: #{my_model_forward.1} parent=1 // pred_check
      _
    $region11: #{my_model_forward.1} parent=1 // pred_check_branch
      %22 = sbr.rel (0) target = $region13
    $region12: #{my_model_forward.1} parent=1 // pred_region
      _
    $region13: #{my_model_forward.1} parent=1 // pred_fallthru
      _
    // Predicated region
    $region14: #{my_model_forward.1} parent=1 // pred_check
      _
    $region15: #{my_model_forward.1} parent=1 // pred_check_branch
      %24 = sbr.rel (0) target = $region17
    $region16: #{my_model_forward.1} parent=1 // pred_region
      _
    $region17: #{my_model_forward.1} parent=1 // pred_fallthru
      _
    // Predicated region
    $region18: #{my_model_forward.1} parent=1 // pred_check
      _
    $region19: #{my_model_forward.1} parent=1 // pred_check_branch
      %26 = sbr.rel (0) target = $region21
    $region20: #{my_model_forward.1} parent=1 // pred_region
      _
    $region21: #{my_model_forward.1} parent=1 // pred_fallthru
      _
    // Predicated region
    $region22: #{my_model_forward.1} parent=1 // pred_check
      _
    $region23: #{my_model_forward.1} parent=1 // pred_check_branch
      %28 = sbr.rel (0) target = $region25
    $region24: #{my_model_forward.1} parent=1 // pred_region
      _
    $region25: #{my_model_forward.1} parent=1 // pred_fallthru
      _
    // Predicated region
    $region26: #{my_model_forward.1} parent=1 // pred_check
      _
    $region27: #{my_model_forward.1} parent=1 // pred_check_branch
      %30 = sbr.rel (0) target = $region29
    $region28: #{my_model_forward.1} parent=1 // pred_region
      _
    $region29: #{my_model_forward.1} parent=1 // pred_fallthru
      _
    // Predicated region
    $region30: #{my_model_forward.1} parent=1 // pred_check
      _
    $region31: #{my_model_forward.1} parent=1 // pred_check_branch
      %32 = sbr.rel (0) target = $region33
    $region32: #{my_model_forward.1} parent=1 // pred_region
      _
    $region33: #{my_model_forward.1} parent=1 // pred_fallthru
      _
    // Predicated region
    $region34: #{my_model_forward.1} parent=1 // pred_check
      _
    $region35: #{my_model_forward.1} parent=1 // pred_check_branch
      %34 = sbr.rel (0) target = $region37
    $region36: #{my_model_forward.1} parent=1 // pred_region
      _
    $region37: #{my_model_forward.1} parent=1 // pred_fallthru
      _
    // Predicated region
    $region38: #{my_model_forward.1} parent=1 // pred_check
      _
    $region39: #{my_model_forward.1} parent=1 // pred_check_branch
      %36 = sbr.rel (0) target = $region41
    $region40: #{my_model_forward.1} parent=1 // pred_region
      _
    $region41: #{my_model_forward.1} parent=1 // pred_fallthru
      _
    // Predicated region
    $region42: #{my_model_forward.1} parent=1 // pred_check
      _
    $region43: #{my_model_forward.1} parent=1 // pred_check_branch
      %38 = sbr.rel (0) target = $region45
    $region44: #{my_model_forward.1} parent=1 // pred_region
      _
    $region45: #{my_model_forward.1} parent=1 // pred_fallthru
      _
    %v40 = vld [vmem:[%s1] sm:$0xff]
    %v41 = vld [vmem:[%s1 + $0x8] sm:$0xff]
    %v42 = vld [vmem:[%s1 + $0x10] sm:$0xff]
    %v43 = vld [vmem:[%s1 + $0x18] sm:$0xff]
    %v44 = vld [vmem:[%s2] sm:$0x7]
    %v45 = vld [vmem:[%s0] sm:$0xff]
    %v46 = vld [vmem:[%s0 + $0x8] sm:$0xff]
    %v47 = vld [vmem:[%s0 + $0x10] sm:$0xff]
    %v48 = vld [vmem:[%s0 + $0x18] sm:$0xff]
    %49 = vadd.xlane.f32.xlu0 %v45
    %v50 = vpop.xlane.xlu0 %49
    %51 = vadd.xlane.f32.xlu0 %v46
    %v52 = vpop.xlane.xlu0 %51
    %53 = vadd.xlane.f32.xlu0 %v47
    %v54 = vpop.xlane.xlu0 %53
    %55 = vadd.xlane.f32.xlu0 %v48
    %v56 = vpop.xlane.xlu0 %55
    %v57 = vrcp.pop 128.0
    %v58 = vmul.f32 %v50, %v57
    %v59 = vmul.f32 %v52, %v57
    %v60 = vmul.f32 %v54, %v57
    %v61 = vmul.f32 %v56, %v57
    %v62 = vsub.f32 %v45, %v58
    %v63 = vsub.f32 %v46, %v59
    %v64 = vsub.f32 %v47, %v60
    %v65 = vsub.f32 %v48, %v61
    %v66 = vmul.f32 %v62, %v62
    %v67 = vmul.f32 %v63, %v63
    %v68 = vmul.f32 %v64, %v64
    %v69 = vmul.f32 %v65, %v65
    %70 = vadd.xlane.f32.xlu0 %v66
    %v71 = vpop.xlane.xlu0 %70
    %72 = vadd.xlane.f32.xlu0 %v67
    %v73 = vpop.xlane.xlu0 %72
    %74 = vadd.xlane.f32.xlu0 %v68
    %v75 = vpop.xlane.xlu0 %74
    %76 = vadd.xlane.f32.xlu0 %v69
    %v77 = vpop.xlane.xlu0 %76
    %v78 = vmul.f32 %v71, %v57
    %v79 = vmul.f32 %v73, %v57
    %v80 = vmul.f32 %v75, %v57
    %v81 = vmul.f32 %v77, %v57
    %v82 = vadd.f32 %v78, 1e-12
    %v83 = vadd.f32 %v79, 1e-12
    %v84 = vadd.f32 %v80, 1e-12
    %v85 = vadd.f32 %v81, 1e-12
    %v86 = vrsqrt.pop %v82
    %v87 = vrsqrt.pop %v83
    %v88 = vrsqrt.pop %v84
    %v89 = vrsqrt.pop %v85
    %v90 = vmul.f32 %v62, %v86
    %v91 = vmul.f32 %v63, %v87
    %v92 = vmul.f32 %v64, %v88
    %v93 = vmul.f32 %v65, %v89
    %v94 = vlaneseq
    %v95 = vshrl.u32 %v94, 7
    %v96 = vsub.s32 0, %v95
    %v97 = vrot.slane %v44, %v96
    %v98 = vmul.f32 %v90, %v97
    %v99 = vmul.f32 %v91, %v97
    %v100 = vmul.f32 %v92, %v97
    %v101 = vmul.f32 %v93, %v97
    %v102 = vlaneseq
    %v103 = vshrl.u32 %v102, 7
    %v104 = vsub.s32 1, %v103
    %v105 = vrot.slane %v44, %v104
    %v106 = vadd.f32 %v98, %v105
    %v107 = vadd.f32 %v99, %v105
    %v108 = vadd.f32 %v100, %v105
    %v109 = vadd.f32 %v101, %v105
    %v110 = vpack.c.bf16 %v107, %v106
    %v111 = vpack.c.bf16 %v109, %v108
    %v112 = vld [vmem:[%s6] sm:$0x3f]
    %v113 = vld [vmem:[%s3] sm:$0xff]
    %v114 = vld [vmem:[%s3 + $0x8] sm:$0xf]
    %v115 = vld [vmem:[%s3 + $0xc] sm:$0xff]
    %v116 = vld [vmem:[%s3 + $0x14] sm:$0xf]
    %v117 = vld [vmem:[%s3 + $0x18] sm:$0xff]
    %v118 = vld [vmem:[%s3 + $0x20] sm:$0xf]
    %v119 = vld [vmem:[%s3 + $0x24] sm:$0xff]
    %v120 = vld [vmem:[%s3 + $0x2c] sm:$0xf]
    %v121 = vld [vmem:[%s3 + $0x30] sm:$0xff]
    %v122 = vld [vmem:[%s3 + $0x38] sm:$0xf]
    %v123 = vld [vmem:[%s3 + $0x3c] sm:$0xff]
    %v124 = vld [vmem:[%s3 + $0x44] sm:$0xf]
    %v125 = vld [vmem:[%s3 + $0x48] sm:$0xff]
    %v126 = vld [vmem:[%s3 + $0x50] sm:$0xf]
    %v127 = vld [vmem:[%s3 + $0x54] sm:$0xff]
    %v128 = vld [vmem:[%s3 + $0x5c] sm:$0xf]
    %v129 = vld [vmem:[%s3 + $0x60] sm:$0xff]
    %v130 = vld [vmem:[%s3 + $0x68] sm:$0xf]
    %v131 = vld [vmem:[%s3 + $0x6c] sm:$0xff]
    %v132 = vld [vmem:[%s3 + $0x74] sm:$0xf]
    %v133 = vld [vmem:[%s3 + $0x78] sm:$0xff]
    %v134 = vld [vmem:[%s3 + $0x80] sm:$0xf]
    %v135 = vld [vmem:[%s3 + $0x84] sm:$0xff]
    %v136 = vld [vmem:[%s3 + $0x8c] sm:$0xf]
    %v137 = vld [vmem:[%s3 + $0x90] sm:$0xff]
    %v138 = vld [vmem:[%s3 + $0x98] sm:$0xf]
    %v139 = vld [vmem:[%s3 + $0x9c] sm:$0xff]
    %v140 = vld [vmem:[%s3 + $0xa4] sm:$0xf]
    %v141 = vld [vmem:[%s3 + $0xa8] sm:$0xff]
    %v142 = vld [vmem:[%s3 + $0xb0] sm:$0xf]
    %v143 = vld [vmem:[%s3 + $0xb4] sm:$0xff]
    %v144 = vld [vmem:[%s3 + $0xbc] sm:$0xf]
    %v145 = vld [vmem:[%s4] sm:$0x7]
    %v147 = vlaneseq
    %v148 = vshrl.u32 %v147, 7
    %v149 = vsub.s32 0, %v148
    %v150 = vrot.slane %v145, %v149
    %v151 = vlaneseq
    %v152 = vshrl.u32 %v151, 7
    %v153 = vsub.s32 1, %v152
    %v154 = vrot.slane %v145, %v153
    %v155 = vlaneseq
    %v156 = vshrl.u32 %v155, 7
    %v157 = vsub.s32 2, %v156
    %v158 = vrot.slane %v145, %v157
    %v194 = vunpack.c.l.b16 %v113
    %v195 = vunpack.c.h.b16 %v113
    %v196 = vunpack.c.l.b16 %v114
    %v197 = vunpack.c.l.b16 %v115
    %v198 = vunpack.c.h.b16 %v115
    %v199 = vunpack.c.l.b16 %v116
    %v200 = vunpack.c.l.b16 %v117
    %v201 = vunpack.c.h.b16 %v117
    %v202 = vunpack.c.l.b16 %v118
    %v203 = vunpack.c.l.b16 %v119
    %v204 = vunpack.c.h.b16 %v119
    %v205 = vunpack.c.l.b16 %v120
    %v206 = vunpack.c.l.b16 %v121
    %v207 = vunpack.c.h.b16 %v121
    %v208 = vunpack.c.l.b16 %v122
    %v209 = vunpack.c.l.b16 %v123
    %v210 = vunpack.c.h.b16 %v123
    %v211 = vunpack.c.l.b16 %v124
    %v212 = vunpack.c.l.b16 %v125
    %v213 = vunpack.c.h.b16 %v125
    %v214 = vunpack.c.l.b16 %v126
    %v215 = vunpack.c.l.b16 %v127
    %v216 = vunpack.c.h.b16 %v127
    %v217 = vunpack.c.l.b16 %v128
    %v218 = vunpack.c.l.b16 %v129
    %v219 = vunpack.c.h.b16 %v129
    %v220 = vunpack.c.l.b16 %v130
    %v221 = vunpack.c.l.b16 %v131
    %v222 = vunpack.c.h.b16 %v131
    %v223 = vunpack.c.l.b16 %v132
    %v224 = vunpack.c.l.b16 %v133
    %v225 = vunpack.c.h.b16 %v133
    %v226 = vunpack.c.l.b16 %v134
    %v227 = vunpack.c.l.b16 %v135
    %v228 = vunpack.c.h.b16 %v135
    %v229 = vunpack.c.l.b16 %v136
    %v230 = vunpack.c.l.b16 %v137
    %v231 = vunpack.c.h.b16 %v137
    %v232 = vunpack.c.l.b16 %v138
    %v233 = vunpack.c.l.b16 %v139
    %v234 = vunpack.c.h.b16 %v139
    %v235 = vunpack.c.l.b16 %v140
    %v236 = vunpack.c.l.b16 %v141
    %v237 = vunpack.c.h.b16 %v141
    %v238 = vunpack.c.l.b16 %v142
    %v239 = vunpack.c.l.b16 %v143
    %v240 = vunpack.c.h.b16 %v143
    %v241 = vunpack.c.l.b16 %v144
    %v242 = vpack.c.b16 %v197, %v194
    %v243 = vpack.c.b16 %v198, %v195
    %v244 = vpack.c.b16 %v199, %v196
    %v245 = vpack.c.b16 %v203, %v200
    %v246 = vpack.c.b16 %v204, %v201
    %v247 = vpack.c.b16 %v205, %v202
    %v248 = vpack.c.b16 %v209, %v206
    %v249 = vpack.c.b16 %v210, %v207
    %v250 = vpack.c.b16 %v211, %v208
    %v251 = vpack.c.b16 %v215, %v212
    %v252 = vpack.c.b16 %v216, %v213
    %v253 = vpack.c.b16 %v217, %v214
    %v254 = vpack.c.b16 %v221, %v218
    %v255 = vpack.c.b16 %v222, %v219
    %v256 = vpack.c.b16 %v223, %v220
    %v257 = vpack.c.b16 %v227, %v224
    %v258 = vpack.c.b16 %v228, %v225
    %v259 = vpack.c.b16 %v229, %v226
    %v260 = vpack.c.b16 %v233, %v230
    %v261 = vpack.c.b16 %v234, %v231
    %v262 = vpack.c.b16 %v235, %v232
    %v263 = vpack.c.b16 %v239, %v236
    %v264 = vpack.c.b16 %v240, %v237
    %v265 = vpack.c.b16 %v241, %v238
    %290 = vmatprep.subr.bf16.mxu0 %v243
    %291 = vmatpush1.bf16.msra.mxu0 %v242
    %292 = vmatprep.subr.bf16.mxu0 %v246
    %293 = vmatpush1.bf16.msra.mxu0 %v245
    %294 = vmatprep.subr.bf16.mxu0 %v249
    %295 = vmatpush1.bf16.msra.mxu0 %v248
    %296 = vmatprep.subr.bf16.mxu0 %v252
    %297 = vmatpush1.bf16.msra.mxu0 %v251
    %298 = vmatprep.subr.bf16.mxu0 %v255
    %299 = vmatpush1.bf16.msra.mxu0 %v254
    %300 = vmatprep.subr.bf16.mxu0 %v258
    %301 = vmatpush1.bf16.msra.mxu0 %v257
    %302 = vmatprep.subr.bf16.mxu0 %v261
    %303 = vmatpush1.bf16.msra.mxu0 %v260
    %304 = vmatprep.subr.bf16.mxu0 %v264
    %305 = vmatpush1.bf16.msra.mxu0 %v263
    %306 = vmatprep.subr.bf16.mxu0 0
    %307 = vmatpush1.bf16.msra.mxu0 0
    %308 = vmatprep.subr.bf16.mxu0 0
    %309 = vmatpush1.bf16.msra.mxu0 0
    %310 = vmatprep.subr.bf16.mxu0 0
    %311 = vmatpush1.bf16.msra.mxu0 0
    %312 = vmatprep.subr.bf16.mxu0 0
    %313 = vmatpush1.bf16.msra.mxu0 0
    %314 = vmatprep.subr.bf16.mxu0 0
    %315 = vmatpush1.bf16.msra.mxu0 0
    %316 = vmatprep.subr.bf16.mxu0 0
    %317 = vmatpush1.bf16.msra.mxu0 0
    %318 = vmatprep.subr.bf16.mxu0 0
    %319 = vmatpush1.bf16.msra.mxu0 0
    %320 = vmatprep.subr.bf16.mxu0 0
    %321 = vmatpush1.bf16.msra.mxu0 0
    %322 = vmatprep.mubr.bf16.mxu0 0
    %323 = vmatmul.mubr.bf16.gmra.mrb[0].mxu0 %v110
    %v324 = vpop.f32.mrb[0].mxu0
    %v325 = vadd.f32 %v150, %v324
    %v326 = vpop.f32.mrb[0].mxu0
    %v327 = vadd.f32 %v154, %v326
    %v328 = vpop.f32.mrb[0].mxu0
    %v329 = vadd.f32 %v150, %v328
    %v330 = vpop.f32.mrb[0].mxu0
    %v331 = vadd.f32 %v154, %v330
    %332 = vmatprep.mubr.bf16.mxu0 0
    %333 = vmatmul.mubr.bf16.gmra.mrb[0].mxu0 %v111
    %v334 = vpop.f32.mrb[0].mxu0
    %v335 = vadd.f32 %v150, %v334
    %v336 = vpop.f32.mrb[0].mxu0
    %v337 = vadd.f32 %v154, %v336
    %v338 = vpop.f32.mrb[0].mxu0
    %v339 = vadd.f32 %v150, %v338
    %v340 = vpop.f32.mrb[0].mxu0
    %v341 = vadd.f32 %v154, %v340
    %342 = vdwg.mxu0
    %343 = vmatprep.subr.bf16.mxu0 0
    %344 = vmatpush1.bf16.msra.mxu0 %v244
    %345 = vmatprep.subr.bf16.mxu0 0
    %346 = vmatpush1.bf16.msra.mxu0 %v247
    %347 = vmatprep.subr.bf16.mxu0 0
    %348 = vmatpush1.bf16.msra.mxu0 %v250
    %349 = vmatprep.subr.bf16.mxu0 0
    %350 = vmatpush1.bf16.msra.mxu0 %v253
    %351 = vmatprep.subr.bf16.mxu0 0
    %352 = vmatpush1.bf16.msra.mxu0 %v256
    %353 = vmatprep.subr.bf16.mxu0 0
    %354 = vmatpush1.bf16.msra.mxu0 %v259
    %355 = vmatprep.subr.bf16.mxu0 0
    %356 = vmatpush1.bf16.msra.mxu0 %v262
    %357 = vmatprep.subr.bf16.mxu0 0
    %358 = vmatpush1.bf16.msra.mxu0 %v265
    %359 = vmatprep.subr.bf16.mxu0 0
    %360 = vmatpush1.bf16.msra.mxu0 0
    %361 = vmatprep.subr.bf16.mxu0 0
    %362 = vmatpush1.bf16.msra.mxu0 0
    %363 = vmatprep.subr.bf16.mxu0 0
    %364 = vmatpush1.bf16.msra.mxu0 0
    %365 = vmatprep.subr.bf16.mxu0 0
    %366 = vmatpush1.bf16.msra.mxu0 0
    %367 = vmatprep.subr.bf16.mxu0 0
    %368 = vmatpush1.bf16.msra.mxu0 0
    %369 = vmatprep.subr.bf16.mxu0 0
    %370 = vmatpush1.bf16.msra.mxu0 0
    %371 = vmatprep.subr.bf16.mxu0 0
    %372 = vmatpush1.bf16.msra.mxu0 0
    %373 = vmatprep.subr.bf16.mxu0 0
    %374 = vmatpush1.bf16.msra.mxu0 0
    %375 = vmatprep.mubr.bf16.mxu0 0
    %376 = vmatmul.mubr.bf16.gmra.mrb[0].mxu0 %v110
    %v377 = vpop.f32.mrb[0].mxu0
    %v378 = vadd.f32 %v158, %v377
    %v379 = vpop.f32.mrb[0].mxu0
    %v380 = vpop.f32.mrb[0].mxu0
    %v381 = vadd.f32 %v158, %v380
    %v382 = vpop.f32.mrb[0].mxu0
    %383 = vmatprep.mubr.bf16.mxu0 0
    %384 = vmatmul.mubr.bf16.gmra.mrb[0].mxu0 %v111
    %v385 = vpop.f32.mrb[0].mxu0
    %v386 = vadd.f32 %v158, %v385
    %v387 = vpop.f32.mrb[0].mxu0
    %v388 = vpop.f32.mrb[0].mxu0
    %v389 = vadd.f32 %v158, %v388
    %v390 = vpop.f32.mrb[0].mxu0
    %391 = vdwg.mxu0
    %v392 = vpack.c.bf16 %v329, %v325
    %v393 = vpack.c.bf16 %v331, %v327
    %v394 = vpack.c.bf16 %v381, %v378
    %v395 = vpack.c.bf16 %v339, %v335
    %v396 = vpack.c.bf16 %v341, %v337
    %v397 = vpack.c.bf16 %v389, %v386
    %vm398 = vcmask 261120
    %v400 = vsel %vm398, %v392, 0
    %v403 = vsel %vm398, %v395, 0
    %v406 = vsel %vm398, %v393, 0
    %v409 = vsel %vm398, %v396, 0
    %411 = vmatprep.subr.bf16.mxu0 0
    %412 = vmatpush1.bf16.xpose.msra.mxu0 %v406
    %413 = vmatprep.subr.bf16.mxu0 0
    %414 = vmatpush1.bf16.xpose.msra.mxu0 %v409
    %415 = vmatprep.subr.bf16.mxu0 0
    %416 = vmatpush1.bf16.xpose.msra.mxu0 0
    %417 = vmatprep.subr.bf16.mxu0 0
    %418 = vmatpush1.bf16.xpose.msra.mxu0 0
    %419 = vmatprep.subr.bf16.mxu0 0
    %420 = vmatpush1.bf16.xpose.msra.mxu0 0
    %421 = vmatprep.subr.bf16.mxu0 0
    %422 = vmatpush1.bf16.xpose.msra.mxu0 0
    %423 = vmatprep.subr.bf16.mxu0 0
    %424 = vmatpush1.bf16.xpose.msra.mxu0 0
    %425 = vmatprep.subr.bf16.mxu0 0
    %426 = vmatpush1.bf16.xpose.msra.mxu0 0
    %427 = vmatprep.subr.bf16.mxu0 0
    %428 = vmatpush1.bf16.xpose.msra.mxu0 0
    %429 = vmatprep.subr.bf16.mxu0 0
    %430 = vmatpush1.bf16.xpose.msra.mxu0 0
    %431 = vmatprep.subr.bf16.mxu0 0
    %432 = vmatpush1.bf16.xpose.msra.mxu0 0
    %433 = vmatprep.subr.bf16.mxu0 0
    %434 = vmatpush1.bf16.xpose.msra.mxu0 0
    %435 = vmatprep.subr.bf16.mxu0 0
    %436 = vmatpush1.bf16.xpose.msra.mxu0 0
    %437 = vmatprep.subr.bf16.mxu0 0
    %438 = vmatpush1.bf16.xpose.msra.mxu0 0
    %439 = vmatprep.subr.bf16.mxu0 0
    %440 = vmatpush1.bf16.xpose.msra.mxu0 0
    %441 = vmatprep.subr.bf16.mxu0 0
    %442 = vmatpush1.bf16.xpose.msra.mxu0 0
    %443 = vmatprep.mubr.bf16.mxu0 0
    %444 = vmatmul.mubr.bf16.gmra.mrb[0].mxu0 %v400
    %v445 = vpop.f32.mrb[0].mxu0
    %v446 = vadd.f32 0.0, %v445
    %v447 = vpop.f32.mrb[0].mxu0
    %v448 = vpop.f32.mrb[0].mxu0
    %v449 = vadd.f32 0.0, %v448
    %v450 = vpop.f32.mrb[0].mxu0
    %451 = vmatprep.mubr.bf16.mxu0 0
    %452 = vmatmul.mubr.bf16.gmra.mrb[0].mxu0 %v403
    %v453 = vpop.f32.mrb[0].mxu0
    %v454 = vadd.f32 0.0, %v453
    %v455 = vpop.f32.mrb[0].mxu0
    %v456 = vpop.f32.mrb[0].mxu0
    %v457 = vadd.f32 0.0, %v456
    %v458 = vpop.f32.mrb[0].mxu0
    %459 = vdwg.mxu0
    %v460 = vmul.f32 %v446, 0.17677669
    %v461 = vmul.f32 %v449, 0.17677669
    %v462 = vmul.f32 %v454, 0.17677669
    %v463 = vmul.f32 %v457, 0.17677669
    %v464 = vadd.f32 %v460, %v40
    %v465 = vadd.f32 %v461, %v41
    %v466 = vadd.f32 %v462, %v42
    %v467 = vadd.f32 %v463, %v43
    %v468 = vsel %vm398, %v464, -inf
    %469 = vmax.xlane.f32.xlu0 %v468
    %v470 = vpop.xlane.xlu0 %469
    %v471 = vsel %vm398, %v465, -inf
    %472 = vmax.xlane.f32.xlu0 %v471
    %v473 = vpop.xlane.xlu0 %472
    %v474 = vsel %vm398, %v466, -inf
    %475 = vmax.xlane.f32.xlu0 %v474
    %v476 = vpop.xlane.xlu0 %475
    %v477 = vsel %vm398, %v467, -inf
    %478 = vmax.xlane.f32.xlu0 %v477
    %v479 = vpop.xlane.xlu0 %478
    %v480 = vsub.f32 %v464, %v470
    %v481 = vsub.f32 %v465, %v473
    %v482 = vsub.f32 %v466, %v476
    %v483 = vsub.f32 %v467, %v479
    %v484 = vmul.f32 %v480, 1.442695
    %v485 = vpow.pop %v484
    %v486 = vmul.f32 %v481, 1.442695
    %v487 = vpow.pop %v486
    %v488 = vmul.f32 %v482, 1.442695
    %v489 = vpow.pop %v488
    %v490 = vmul.f32 %v483, 1.442695
    %v491 = vpow.pop %v490
    %v492 = vsel %vm398, %v485, 0.0
    %493 = vadd.xlane.f32.xlu0 %v492
    %v494 = vpop.xlane.xlu0 %493
    %v495 = vsel %vm398, %v487, 0.0
    %496 = vadd.xlane.f32.xlu0 %v495
    %v497 = vpop.xlane.xlu0 %496
    %v498 = vsel %vm398, %v489, 0.0
    %499 = vadd.xlane.f32.xlu0 %v498
    %v500 = vpop.xlane.xlu0 %499
    %v501 = vsel %vm398, %v491, 0.0
    %502 = vadd.xlane.f32.xlu0 %v501
    %v503 = vpop.xlane.xlu0 %502
    %v504 = vrcp.pop %v494
    %v505 = vrcp.pop %v497
    %v506 = vrcp.pop %v500
    %v507 = vrcp.pop %v503
    %v508 = vmul.f32 %v485, %v504
    %v509 = vmul.f32 %v487, %v505
    %v510 = vmul.f32 %v489, %v506
    %v511 = vmul.f32 %v491, %v507
    %v512 = vpack.c.bf16 %v509, %v508
    %v513 = vpack.c.bf16 %v511, %v510
    %v515 = vsel %vm398, %v512, 0
    %v518 = vsel %vm398, %v513, 0
    %520 = vmatprep.subr.bf16.mxu0 0
    %521 = vmatpush1.bf16.msra.mxu0 %v394
    %522 = vmatprep.subr.bf16.mxu0 0
    %523 = vmatpush1.bf16.msra.mxu0 %v397
    %524 = vmatprep.subr.bf16.mxu0 0
    %525 = vmatpush1.bf16.msra.mxu0 0
    %526 = vmatprep.subr.bf16.mxu0 0
    %527 = vmatpush1.bf16.msra.mxu0 0
    %528 = vmatprep.subr.bf16.mxu0 0
    %529 = vmatpush1.bf16.msra.mxu0 0
    %530 = vmatprep.subr.bf16.mxu0 0
    %531 = vmatpush1.bf16.msra.mxu0 0
    %532 = vmatprep.subr.bf16.mxu0 0
    %533 = vmatpush1.bf16.msra.mxu0 0
    %534 = vmatprep.subr.bf16.mxu0 0
    %535 = vmatpush1.bf16.msra.mxu0 0
    %536 = vmatprep.subr.bf16.mxu0 0
    %537 = vmatpush1.bf16.msra.mxu0 0
    %538 = vmatprep.subr.bf16.mxu0 0
    %539 = vmatpush1.bf16.msra.mxu0 0
    %540 = vmatprep.subr.bf16.mxu0 0
    %541 = vmatpush1.bf16.msra.mxu0 0
    %542 = vmatprep.subr.bf16.mxu0 0
    %543 = vmatpush1.bf16.msra.mxu0 0
    %544 = vmatprep.subr.bf16.mxu0 0
    %545 = vmatpush1.bf16.msra.mxu0 0
    %546 = vmatprep.subr.bf16.mxu0 0
    %547 = vmatpush1.bf16.msra.mxu0 0
    %548 = vmatprep.subr.bf16.mxu0 0
    %549 = vmatpush1.bf16.msra.mxu0 0
    %550 = vmatprep.subr.bf16.mxu0 0
    %551 = vmatpush1.bf16.msra.mxu0 0
    %552 = vmatprep.mubr.bf16.mxu0 0
    %553 = vmatmul.mubr.bf16.gmra.mrb[0].mxu0 %v515
    %v554 = vpop.f32.mrb[0].mxu0
    %v555 = vadd.f32 0.0, %v554
    %v556 = vpop.f32.mrb[0].mxu0
    %v557 = vpop.f32.mrb[0].mxu0
    %v558 = vadd.f32 0.0, %v557
    %v559 = vpop.f32.mrb[0].mxu0
    %560 = vmatprep.mubr.bf16.mxu0 0
    %561 = vmatmul.mubr.bf16.gmra.mrb[0].mxu0 %v518
    %v562 = vpop.f32.mrb[0].mxu0
    %v563 = vadd.f32 0.0, %v562
    %v564 = vpop.f32.mrb[0].mxu0
    %v565 = vpop.f32.mrb[0].mxu0
    %v566 = vadd.f32 0.0, %v565
    %v567 = vpop.f32.mrb[0].mxu0
    %568 = vdwg.mxu0
    %571 = vrot.lane.b32.xlu0 %v392, 96
    %v572 = vpop.permute.xlu0 %571
    %573 = vrot.lane.b32.xlu0 %v395, 96
    %v574 = vpop.permute.xlu0 %573
    %577 = vrot.lane.b32.xlu0 %v393, 96
    %v578 = vpop.permute.xlu0 %577
    %579 = vrot.lane.b32.xlu0 %v396, 96
    %v580 = vpop.permute.xlu0 %579
    %v582 = vsel %vm398, %v572, 0
    %v585 = vsel %vm398, %v574, 0
    %v588 = vsel %vm398, %v578, 0
    %v591 = vsel %vm398, %v580, 0
    %593 = vmatprep.subr.bf16.mxu0 0
    %594 = vmatpush1.bf16.xpose.msra.mxu0 %v588
    %595 = vmatprep.subr.bf16.mxu0 0
    %596 = vmatpush1.bf16.xpose.msra.mxu0 %v591
    %597 = vmatprep.subr.bf16.mxu0 0
    %598 = vmatpush1.bf16.xpose.msra.mxu0 0
    %599 = vmatprep.subr.bf16.mxu0 0
    %600 = vmatpush1.bf16.xpose.msra.mxu0 0
    %601 = vmatprep.subr.bf16.mxu0 0
    %602 = vmatpush1.bf16.xpose.msra.mxu0 0
    %603 = vmatprep.subr.bf16.mxu0 0
    %604 = vmatpush1.bf16.xpose.msra.mxu0 0
    %605 = vmatprep.subr.bf16.mxu0 0
    %606 = vmatpush1.bf16.xpose.msra.mxu0 0
    %607 = vmatprep.subr.bf16.mxu0 0
    %608 = vmatpush1.bf16.xpose.msra.mxu0 0
    %609 = vmatprep.subr.bf16.mxu0 0
    %610 = vmatpush1.bf16.xpose.msra.mxu0 0
    %611 = vmatprep.subr.bf16.mxu0 0
    %612 = vmatpush1.bf16.xpose.msra.mxu0 0
    %613 = vmatprep.subr.bf16.mxu0 0
    %614 = vmatpush1.bf16.xpose.msra.mxu0 0
    %615 = vmatprep.subr.bf16.mxu0 0
    %616 = vmatpush1.bf16.xpose.msra.mxu0 0
    %617 = vmatprep.subr.bf16.mxu0 0
    %618 = vmatpush1.bf16.xpose.msra.mxu0 0
    %619 = vmatprep.subr.bf16.mxu0 0
    %620 = vmatpush1.bf16.xpose.msra.mxu0 0
    %621 = vmatprep.subr.bf16.mxu0 0
    %622 = vmatpush1.bf16.xpose.msra.mxu0 0
    %623 = vmatprep.subr.bf16.mxu0 0
    %624 = vmatpush1.bf16.xpose.msra.mxu0 0
    %625 = vmatprep.mubr.bf16.mxu0 0
    %626 = vmatmul.mubr.bf16.gmra.mrb[0].mxu0 %v582
    %v627 = vpop.f32.mrb[0].mxu0
    %v628 = vadd.f32 0.0, %v627
    %v629 = vpop.f32.mrb[0].mxu0
    %v630 = vpop.f32.mrb[0].mxu0
    %v631 = vadd.f32 0.0, %v630
    %v632 = vpop.f32.mrb[0].mxu0
    %633 = vmatprep.mubr.bf16.mxu0 0
    %634 = vmatmul.mubr.bf16.gmra.mrb[0].mxu0 %v585
    %v635 = vpop.f32.mrb[0].mxu0
    %v636 = vadd.f32 0.0, %v635
    %v637 = vpop.f32.mrb[0].mxu0
    %v638 = vpop.f32.mrb[0].mxu0
    %v639 = vadd.f32 0.0, %v638
    %v640 = vpop.f32.mrb[0].mxu0
    %641 = vdwg.mxu0
    %v642 = vmul.f32 %v628, 0.17677669
    %v643 = vmul.f32 %v631, 0.17677669
    %v644 = vmul.f32 %v636, 0.17677669
    %v645 = vmul.f32 %v639, 0.17677669
    %v646 = vadd.f32 %v642, %v40
    %v647 = vadd.f32 %v643, %v41
    %v648 = vadd.f32 %v644, %v42
    %v649 = vadd.f32 %v645, %v43
    %v650 = vsel %vm398, %v646, -inf
    %651 = vmax.xlane.f32.xlu0 %v650
    %v652 = vpop.xlane.xlu0 %651
    %v653 = vsel %vm398, %v647, -inf
    %654 = vmax.xlane.f32.xlu0 %v653
    %v655 = vpop.xlane.xlu0 %654
    %v656 = vsel %vm398, %v648, -inf
    %657 = vmax.xlane.f32.xlu0 %v656
    %v658 = vpop.xlane.xlu0 %657
    %v659 = vsel %vm398, %v649, -inf
    %660 = vmax.xlane.f32.xlu0 %v659
    %v661 = vpop.xlane.xlu0 %660
    %v662 = vsub.f32 %v646, %v652
    %v663 = vsub.f32 %v647, %v655
    %v664 = vsub.f32 %v648, %v658
    %v665 = vsub.f32 %v649, %v661
    %v666 = vmul.f32 %v662, 1.442695
    %v667 = vpow.pop %v666
    %v668 = vmul.f32 %v663, 1.442695
    %v669 = vpow.pop %v668
    %v670 = vmul.f32 %v664, 1.442695
    %v671 = vpow.pop %v670
    %v672 = vmul.f32 %v665, 1.442695
    %v673 = vpow.pop %v672
    %v674 = vsel %vm398, %v667, 0.0
    %675 = vadd.xlane.f32.xlu0 %v674
    %v676 = vpop.xlane.xlu0 %675
    %v677 = vsel %vm398, %v669, 0.0
    %678 = vadd.xlane.f32.xlu0 %v677
    %v679 = vpop.xlane.xlu0 %678
    %v680 = vsel %vm398, %v671, 0.0
    %681 = vadd.xlane.f32.xlu0 %v680
    %v682 = vpop.xlane.xlu0 %681
    %v683 = vsel %vm398, %v673, 0.0
    %684 = vadd.xlane.f32.xlu0 %v683
    %v685 = vpop.xlane.xlu0 %684
    %v686 = vrcp.pop %v676
    %v687 = vrcp.pop %v679
    %v688 = vrcp.pop %v682
    %v689 = vrcp.pop %v685
    %v690 = vmul.f32 %v667, %v686
    %v691 = vmul.f32 %v669, %v687
    %v692 = vmul.f32 %v671, %v688
    %v693 = vmul.f32 %v673, %v689
    %v694 = vpack.c.bf16 %v691, %v690
    %v695 = vpack.c.bf16 %v693, %v692
    %698 = vrot.lane.b32.xlu0 %v394, 96
    %v699 = vpop.permute.xlu0 %698
    %700 = vrot.lane.b32.xlu0 %v397, 96
    %v701 = vpop.permute.xlu0 %700
    %v705 = vsel %vm398, %v694, 0
    %v708 = vsel %vm398, %v695, 0
    %710 = vmatprep.subr.bf16.mxu0 0
    %711 = vmatpush1.bf16.msra.mxu0 %v699
    %712 = vmatprep.subr.bf16.mxu0 0
    %713 = vmatpush1.bf16.msra.mxu0 %v701
    %714 = vmatprep.subr.bf16.mxu0 0
    %715 = vmatpush1.bf16.msra.mxu0 0
    %716 = vmatprep.subr.bf16.mxu0 0
    %717 = vmatpush1.bf16.msra.mxu0 0
    %718 = vmatprep.subr.bf16.mxu0 0
    %719 = vmatpush1.bf16.msra.mxu0 0
    %720 = vmatprep.subr.bf16.mxu0 0
    %721 = vmatpush1.bf16.msra.mxu0 0
    %722 = vmatprep.subr.bf16.mxu0 0
    %723 = vmatpush1.bf16.msra.mxu0 0
    %724 = vmatprep.subr.bf16.mxu0 0
    %725 = vmatpush1.bf16.msra.mxu0 0
    %726 = vmatprep.subr.bf16.mxu0 0
    %727 = vmatpush1.bf16.msra.mxu0 0
    %728 = vmatprep.subr.bf16.mxu0 0
    %729 = vmatpush1.bf16.msra.mxu0 0
    %730 = vmatprep.subr.bf16.mxu0 0
    %731 = vmatpush1.bf16.msra.mxu0 0
    %732 = vmatprep.subr.bf16.mxu0 0
    %733 = vmatpush1.bf16.msra.mxu0 0
    %734 = vmatprep.subr.bf16.mxu0 0
    %735 = vmatpush1.bf16.msra.mxu0 0
    %736 = vmatprep.subr.bf16.mxu0 0
    %737 = vmatpush1.bf16.msra.mxu0 0
    %738 = vmatprep.subr.bf16.mxu0 0
    %739 = vmatpush1.bf16.msra.mxu0 0
    %740 = vmatprep.subr.bf16.mxu0 0
    %741 = vmatpush1.bf16.msra.mxu0 0
    %742 = vmatprep.mubr.bf16.mxu0 0
    %743 = vmatmul.mubr.bf16.gmra.mrb[0].mxu0 %v705
    %v744 = vpop.f32.mrb[0].mxu0
    %v745 = vadd.f32 0.0, %v744
    %v746 = vpop.f32.mrb[0].mxu0
    %v747 = vpop.f32.mrb[0].mxu0
    %v748 = vadd.f32 0.0, %v747
    %v749 = vpop.f32.mrb[0].mxu0
    %750 = vmatprep.mubr.bf16.mxu0 0
    %751 = vmatmul.mubr.bf16.gmra.mrb[0].mxu0 %v708
    %v752 = vpop.f32.mrb[0].mxu0
    %v753 = vadd.f32 0.0, %v752
    %v754 = vpop.f32.mrb[0].mxu0
    %v755 = vpop.f32.mrb[0].mxu0
    %v756 = vadd.f32 0.0, %v755
    %v757 = vpop.f32.mrb[0].mxu0
    %758 = vdwg.mxu0
    %759 = vrot.lane.b32.xlu0 %v392, 64
    %v760 = vpop.permute.xlu0 %759
    %761 = vrot.lane.b32.xlu0 %v395, 64
    %v762 = vpop.permute.xlu0 %761
    %763 = vrot.lane.b32.xlu0 %v393, 64
    %v764 = vpop.permute.xlu0 %763
    %765 = vrot.lane.b32.xlu0 %v396, 64
    %v766 = vpop.permute.xlu0 %765
    %v768 = vsel %vm398, %v760, 0
    %v771 = vsel %vm398, %v762, 0
    %v774 = vsel %vm398, %v764, 0
    %v777 = vsel %vm398, %v766, 0
    %779 = vmatprep.subr.bf16.mxu0 0
    %780 = vmatpush1.bf16.xpose.msra.mxu0 %v774
    %781 = vmatprep.subr.bf16.mxu0 0
    %782 = vmatpush1.bf16.xpose.msra.mxu0 %v777
    %783 = vmatprep.subr.bf16.mxu0 0
    %784 = vmatpush1.bf16.xpose.msra.mxu0 0
    %785 = vmatprep.subr.bf16.mxu0 0
    %786 = vmatpush1.bf16.xpose.msra.mxu0 0
    %787 = vmatprep.subr.bf16.mxu0 0
    %788 = vmatpush1.bf16.xpose.msra.mxu0 0
    %789 = vmatprep.subr.bf16.mxu0 0
    %790 = vmatpush1.bf16.xpose.msra.mxu0 0
    %791 = vmatprep.subr.bf16.mxu0 0
    %792 = vmatpush1.bf16.xpose.msra.mxu0 0
    %793 = vmatprep.subr.bf16.mxu0 0
    %794 = vmatpush1.bf16.xpose.msra.mxu0 0
    %795 = vmatprep.subr.bf16.mxu0 0
    %796 = vmatpush1.bf16.xpose.msra.mxu0 0
    %797 = vmatprep.subr.bf16.mxu0 0
    %798 = vmatpush1.bf16.xpose.msra.mxu0 0
    %799 = vmatprep.subr.bf16.mxu0 0
    %800 = vmatpush1.bf16.xpose.msra.mxu0 0
    %801 = vmatprep.subr.bf16.mxu0 0
    %802 = vmatpush1.bf16.xpose.msra.mxu0 0
    %803 = vmatprep.subr.bf16.mxu0 0
    %804 = vmatpush1.bf16.xpose.msra.mxu0 0
    %805 = vmatprep.subr.bf16.mxu0 0
    %806 = vmatpush1.bf16.xpose.msra.mxu0 0
    %807 = vmatprep.subr.bf16.mxu0 0
    %808 = vmatpush1.bf16.xpose.msra.mxu0 0
    %809 = vmatprep.subr.bf16.mxu0 0
    %810 = vmatpush1.bf16.xpose.msra.mxu0 0
    %811 = vmatprep.mubr.bf16.mxu0 0
    %812 = vmatmul.mubr.bf16.gmra.mrb[0].mxu0 %v768
    %v813 = vpop.f32.mrb[0].mxu0
    %v814 = vadd.f32 0.0, %v813
    %v815 = vpop.f32.mrb[0].mxu0
    %v816 = vpop.f32.mrb[0].mxu0
    %v817 = vadd.f32 0.0, %v816
    %v818 = vpop.f32.mrb[0].mxu0
    %819 = vmatprep.mubr.bf16.mxu0 0
    %820 = vmatmul.mubr.bf16.gmra.mrb[0].mxu0 %v771
    %v821 = vpop.f32.mrb[0].mxu0
    %v822 = vadd.f32 0.0, %v821
    %v823 = vpop.f32.mrb[0].mxu0
    %v824 = vpop.f32.mrb[0].mxu0
    %v825 = vadd.f32 0.0, %v824
    %v826 = vpop.f32.mrb[0].mxu0
    %827 = vdwg.mxu0
    %v828 = vmul.f32 %v814, 0.17677669
    %v829 = vmul.f32 %v817, 0.17677669
    %v830 = vmul.f32 %v822, 0.17677669
    %v831 = vmul.f32 %v825, 0.17677669
    %v832 = vadd.f32 %v828, %v40
    %v833 = vadd.f32 %v829, %v41
    %v834 = vadd.f32 %v830, %v42
    %v835 = vadd.f32 %v831, %v43
    %v836 = vsel %vm398, %v832, -inf
    %837 = vmax.xlane.f32.xlu0 %v836
    %v838 = vpop.xlane.xlu0 %837
    %v839 = vsel %vm398, %v833, -inf
    %840 = vmax.xlane.f32.xlu0 %v839
    %v841 = vpop.xlane.xlu0 %840
    %v842 = vsel %vm398, %v834, -inf
    %843 = vmax.xlane.f32.xlu0 %v842
    %v844 = vpop.xlane.xlu0 %843
    %v845 = vsel %vm398, %v835, -inf
    %846 = vmax.xlane.f32.xlu0 %v845
    %v847 = vpop.xlane.xlu0 %846
    %v848 = vsub.f32 %v832, %v838
    %v849 = vsub.f32 %v833, %v841
    %v850 = vsub.f32 %v834, %v844
    %v851 = vsub.f32 %v835, %v847
    %v852 = vmul.f32 %v848, 1.442695
    %v853 = vpow.pop %v852
    %v854 = vmul.f32 %v849, 1.442695
    %v855 = vpow.pop %v854
    %v856 = vmul.f32 %v850, 1.442695
    %v857 = vpow.pop %v856
    %v858 = vmul.f32 %v851, 1.442695
    %v859 = vpow.pop %v858
    %v860 = vsel %vm398, %v853, 0.0
    %861 = vadd.xlane.f32.xlu0 %v860
    %v862 = vpop.xlane.xlu0 %861
    %v863 = vsel %vm398, %v855, 0.0
    %864 = vadd.xlane.f32.xlu0 %v863
    %v865 = vpop.xlane.xlu0 %864
    %v866 = vsel %vm398, %v857, 0.0
    %867 = vadd.xlane.f32.xlu0 %v866
    %v868 = vpop.xlane.xlu0 %867
    %v869 = vsel %vm398, %v859, 0.0
    %870 = vadd.xlane.f32.xlu0 %v869
    %v871 = vpop.xlane.xlu0 %870
    %v872 = vrcp.pop %v862
    %v873 = vrcp.pop %v865
    %v874 = vrcp.pop %v868
    %v875 = vrcp.pop %v871
    %v876 = vmul.f32 %v853, %v872
    %v877 = vmul.f32 %v855, %v873
    %v878 = vmul.f32 %v857, %v874
    %v879 = vmul.f32 %v859, %v875
    %v880 = vpack.c.bf16 %v877, %v876
    %v881 = vpack.c.bf16 %v879, %v878
    %882 = vrot.lane.b32.xlu0 %v394, 64
    %v883 = vpop.permute.xlu0 %882
    %884 = vrot.lane.b32.xlu0 %v397, 64
    %v885 = vpop.permute.xlu0 %884
    %v889 = vsel %vm398, %v880, 0
    %v892 = vsel %vm398, %v881, 0
    %894 = vmatprep.subr.bf16.mxu0 0
    %895 = vmatpush1.bf16.msra.mxu0 %v883
    %896 = vmatprep.subr.bf16.mxu0 0
    %897 = vmatpush1.bf16.msra.mxu0 %v885
    %898 = vmatprep.subr.bf16.mxu0 0
    %899 = vmatpush1.bf16.msra.mxu0 0
    %900 = vmatprep.subr.bf16.mxu0 0
    %901 = vmatpush1.bf16.msra.mxu0 0
    %902 = vmatprep.subr.bf16.mxu0 0
    %903 = vmatpush1.bf16.msra.mxu0 0
    %904 = vmatprep.subr.bf16.mxu0 0
    %905 = vmatpush1.bf16.msra.mxu0 0
    %906 = vmatprep.subr.bf16.mxu0 0
    %907 = vmatpush1.bf16.msra.mxu0 0
    %908 = vmatprep.subr.bf16.mxu0 0
    %909 = vmatpush1.bf16.msra.mxu0 0
    %910 = vmatprep.subr.bf16.mxu0 0
    %911 = vmatpush1.bf16.msra.mxu0 0
    %912 = vmatprep.subr.bf16.mxu0 0
    %913 = vmatpush1.bf16.msra.mxu0 0
    %914 = vmatprep.subr.bf16.mxu0 0
    %915 = vmatpush1.bf16.msra.mxu0 0
    %916 = vmatprep.subr.bf16.mxu0 0
    %917 = vmatpush1.bf16.msra.mxu0 0
    %918 = vmatprep.subr.bf16.mxu0 0
    %919 = vmatpush1.bf16.msra.mxu0 0
    %920 = vmatprep.subr.bf16.mxu0 0
    %921 = vmatpush1.bf16.msra.mxu0 0
    %922 = vmatprep.subr.bf16.mxu0 0
    %923 = vmatpush1.bf16.msra.mxu0 0
    %924 = vmatprep.subr.bf16.mxu0 0
    %925 = vmatpush1.bf16.msra.mxu0 0
    %926 = vmatprep.mubr.bf16.mxu0 0
    %927 = vmatmul.mubr.bf16.gmra.mrb[0].mxu0 %v889
    %v928 = vpop.f32.mrb[0].mxu0
    %v929 = vadd.f32 0.0, %v928
    %v930 = vpop.f32.mrb[0].mxu0
    %v931 = vpop.f32.mrb[0].mxu0
    %v932 = vadd.f32 0.0, %v931
    %v933 = vpop.f32.mrb[0].mxu0
    %934 = vmatprep.mubr.bf16.mxu0 0
    %935 = vmatmul.mubr.bf16.gmra.mrb[0].mxu0 %v892
    %v936 = vpop.f32.mrb[0].mxu0
    %v937 = vadd.f32 0.0, %v936
    %v938 = vpop.f32.mrb[0].mxu0
    %v939 = vpop.f32.mrb[0].mxu0
    %v940 = vadd.f32 0.0, %v939
    %v941 = vpop.f32.mrb[0].mxu0
    %942 = vdwg.mxu0
    %943 = vrot.lane.b32.xlu0 %v392, 32
    %v944 = vpop.permute.xlu0 %943
    %945 = vrot.lane.b32.xlu0 %v395, 32
    %v946 = vpop.permute.xlu0 %945
    %947 = vrot.lane.b32.xlu0 %v393, 32
    %v948 = vpop.permute.xlu0 %947
    %949 = vrot.lane.b32.xlu0 %v396, 32
    %v950 = vpop.permute.xlu0 %949
    %v952 = vsel %vm398, %v944, 0
    %v955 = vsel %vm398, %v946, 0
    %v958 = vsel %vm398, %v948, 0
    %v961 = vsel %vm398, %v950, 0
    %963 = vmatprep.subr.bf16.mxu0 0
    %964 = vmatpush1.bf16.xpose.msra.mxu0 %v958
    %965 = vmatprep.subr.bf16.mxu0 0
    %966 = vmatpush1.bf16.xpose.msra.mxu0 %v961
    %967 = vmatprep.subr.bf16.mxu0 0
    %968 = vmatpush1.bf16.xpose.msra.mxu0 0
    %969 = vmatprep.subr.bf16.mxu0 0
    %970 = vmatpush1.bf16.xpose.msra.mxu0 0
    %971 = vmatprep.subr.bf16.mxu0 0
    %972 = vmatpush1.bf16.xpose.msra.mxu0 0
    %973 = vmatprep.subr.bf16.mxu0 0
    %974 = vmatpush1.bf16.xpose.msra.mxu0 0
    %975 = vmatprep.subr.bf16.mxu0 0
    %976 = vmatpush1.bf16.xpose.msra.mxu0 0
    %977 = vmatprep.subr.bf16.mxu0 0
    %978 = vmatpush1.bf16.xpose.msra.mxu0 0
    %979 = vmatprep.subr.bf16.mxu0 0
    %980 = vmatpush1.bf16.xpose.msra.mxu0 0
    %981 = vmatprep.subr.bf16.mxu0 0
    %982 = vmatpush1.bf16.xpose.msra.mxu0 0
    %983 = vmatprep.subr.bf16.mxu0 0
    %984 = vmatpush1.bf16.xpose.msra.mxu0 0
    %985 = vmatprep.subr.bf16.mxu0 0
    %986 = vmatpush1.bf16.xpose.msra.mxu0 0
    %987 = vmatprep.subr.bf16.mxu0 0
    %988 = vmatpush1.bf16.xpose.msra.mxu0 0
    %989 = vmatprep.subr.bf16.mxu0 0
    %990 = vmatpush1.bf16.xpose.msra.mxu0 0
    %991 = vmatprep.subr.bf16.mxu0 0
    %992 = vmatpush1.bf16.xpose.msra.mxu0 0
    %993 = vmatprep.subr.bf16.mxu0 0
    %994 = vmatpush1.bf16.xpose.msra.mxu0 0
    %995 = vmatprep.mubr.bf16.mxu0 0
    %996 = vmatmul.mubr.bf16.gmra.mrb[0].mxu0 %v952
    %v997 = vpop.f32.mrb[0].mxu0
    %v998 = vadd.f32 0.0, %v997
    %v999 = vpop.f32.mrb[0].mxu0
    %v1000 = vpop.f32.mrb[0].mxu0
    %v1001 = vadd.f32 0.0, %v1000
    %v1002 = vpop.f32.mrb[0].mxu0
    %1003 = vmatprep.mubr.bf16.mxu0 0
    %1004 = vmatmul.mubr.bf16.gmra.mrb[0].mxu0 %v955
    %v1005 = vpop.f32.mrb[0].mxu0
    %v1006 = vadd.f32 0.0, %v1005
    %v1007 = vpop.f32.mrb[0].mxu0
    %v1008 = vpop.f32.mrb[0].mxu0
    %v1009 = vadd.f32 0.0, %v1008
    %v1010 = vpop.f32.mrb[0].mxu0
    %1011 = vdwg.mxu0
    %v1012 = vmul.f32 %v998, 0.17677669
    %v1013 = vmul.f32 %v1001, 0.17677669
    %v1014 = vmul.f32 %v1006, 0.17677669
    %v1015 = vmul.f32 %v1009, 0.17677669
    %v1016 = vadd.f32 %v1012, %v40
    %v1017 = vadd.f32 %v1013, %v41
    %v1018 = vadd.f32 %v1014, %v42
    %v1019 = vadd.f32 %v1015, %v43
    %v1020 = vsel %vm398, %v1016, -inf
    %1021 = vmax.xlane.f32.xlu0 %v1020
    %v1022 = vpop.xlane.xlu0 %1021
    %v1023 = vsel %vm398, %v1017, -inf
    %1024 = vmax.xlane.f32.xlu0 %v1023
    %v1025 = vpop.xlane.xlu0 %1024
    %v1026 = vsel %vm398, %v1018, -inf
    %1027 = vmax.xlane.f32.xlu0 %v1026
    %v1028 = vpop.xlane.xlu0 %1027
    %v1029 = vsel %vm398, %v1019, -inf
    %1030 = vmax.xlane.f32.xlu0 %v1029
    %v1031 = vpop.xlane.xlu0 %1030
    %v1032 = vsub.f32 %v1016, %v1022
    %v1033 = vsub.f32 %v1017, %v1025
    %v1034 = vsub.f32 %v1018, %v1028
    %v1035 = vsub.f32 %v1019, %v1031
    %v1036 = vmul.f32 %v1032, 1.442695
    %v1037 = vpow.pop %v1036
    %v1038 = vmul.f32 %v1033, 1.442695
    %v1039 = vpow.pop %v1038
    %v1040 = vmul.f32 %v1034, 1.442695
    %v1041 = vpow.pop %v1040
    %v1042 = vmul.f32 %v1035, 1.442695
    %v1043 = vpow.pop %v1042
    %v1044 = vsel %vm398, %v1037, 0.0
    %1045 = vadd.xlane.f32.xlu0 %v1044
    %v1046 = vpop.xlane.xlu0 %1045
    %v1047 = vsel %vm398, %v1039, 0.0
    %1048 = vadd.xlane.f32.xlu0 %v1047
    %v1049 = vpop.xlane.xlu0 %1048
    %v1050 = vsel %vm398, %v1041, 0.0
    %1051 = vadd.xlane.f32.xlu0 %v1050
    %v1052 = vpop.xlane.xlu0 %1051
    %v1053 = vsel %vm398, %v1043, 0.0
    %1054 = vadd.xlane.f32.xlu0 %v1053
    %v1055 = vpop.xlane.xlu0 %1054
    %v1056 = vrcp.pop %v1046
    %v1057 = vrcp.pop %v1049
    %v1058 = vrcp.pop %v1052
    %v1059 = vrcp.pop %v1055
    %v1060 = vmul.f32 %v1037, %v1056
    %v1061 = vmul.f32 %v1039, %v1057
    %v1062 = vmul.f32 %v1041, %v1058
    %v1063 = vmul.f32 %v1043, %v1059
    %v1064 = vpack.c.bf16 %v1061, %v1060
    %v1065 = vpack.c.bf16 %v1063, %v1062
    %1066 = vrot.lane.b32.xlu0 %v394, 32
    %v1067 = vpop.permute.xlu0 %1066
    %1068 = vrot.lane.b32.xlu0 %v397, 32
    %v1069 = vpop.permute.xlu0 %1068
    %v1073 = vsel %vm398, %v1064, 0
    %v1076 = vsel %vm398, %v1065, 0
    %1078 = vmatprep.subr.bf16.mxu0 0
    %1079 = vmatpush1.bf16.msra.mxu0 %v1067
    %1080 = vmatprep.subr.bf16.mxu0 0
    %1081 = vmatpush1.bf16.msra.mxu0 %v1069
    %1082 = vmatprep.subr.bf16.mxu0 0
    %1083 = vmatpush1.bf16.msra.mxu0 0
    %1084 = vmatprep.subr.bf16.mxu0 0
    %1085 = vmatpush1.bf16.msra.mxu0 0
    %1086 = vmatprep.subr.bf16.mxu0 0
    %1087 = vmatpush1.bf16.msra.mxu0 0
    %1088 = vmatprep.subr.bf16.mxu0 0
    %1089 = vmatpush1.bf16.msra.mxu0 0
    %1090 = vmatprep.subr.bf16.mxu0 0
    %1091 = vmatpush1.bf16.msra.mxu0 0
    %1092 = vmatprep.subr.bf16.mxu0 0
    %1093 = vmatpush1.bf16.msra.mxu0 0
    %1094 = vmatprep.subr.bf16.mxu0 0
    %1095 = vmatpush1.bf16.msra.mxu0 0
    %1096 = vmatprep.subr.bf16.mxu0 0
    %1097 = vmatpush1.bf16.msra.mxu0 0
    %1098 = vmatprep.subr.bf16.mxu0 0
    %1099 = vmatpush1.bf16.msra.mxu0 0
    %1100 = vmatprep.subr.bf16.mxu0 0
    %1101 = vmatpush1.bf16.msra.mxu0 0
    %1102 = vmatprep.subr.bf16.mxu0 0
    %1103 = vmatpush1.bf16.msra.mxu0 0
    %1104 = vmatprep.subr.bf16.mxu0 0
    %1105 = vmatpush1.bf16.msra.mxu0 0
    %1106 = vmatprep.subr.bf16.mxu0 0
    %1107 = vmatpush1.bf16.msra.mxu0 0
    %1108 = vmatprep.subr.bf16.mxu0 0
    %1109 = vmatpush1.bf16.msra.mxu0 0
    %1110 = vmatprep.mubr.bf16.mxu0 0
    %1111 = vmatmul.mubr.bf16.gmra.mrb[0].mxu0 %v1073
    %v1112 = vpop.f32.mrb[0].mxu0
    %v1113 = vadd.f32 0.0, %v1112
    %v1114 = vpop.f32.mrb[0].mxu0
    %v1115 = vpop.f32.mrb[0].mxu0
    %v1116 = vadd.f32 0.0, %v1115
    %v1117 = vpop.f32.mrb[0].mxu0
    %1118 = vmatprep.mubr.bf16.mxu0 0
    %1119 = vmatmul.mubr.bf16.gmra.mrb[0].mxu0 %v1076
    %v1120 = vpop.f32.mrb[0].mxu0
    %v1121 = vadd.f32 0.0, %v1120
    %v1122 = vpop.f32.mrb[0].mxu0
    %v1123 = vpop.f32.mrb[0].mxu0
    %v1124 = vadd.f32 0.0, %v1123
    %v1125 = vpop.f32.mrb[0].mxu0
    %1126 = vdwg.mxu0
    %1131 = vrot.lane.b32.xlu0 %v745, 32
    %v1132 = vpop.permute.xlu0 %1131
    %1133 = vrot.lane.b32.xlu0 %v748, 32
    %v1134 = vpop.permute.xlu0 %1133
    %1135 = vrot.lane.b32.xlu0 %v753, 32
    %v1136 = vpop.permute.xlu0 %1135
    %1137 = vrot.lane.b32.xlu0 %v756, 32
    %v1138 = vpop.permute.xlu0 %1137
    %1147 = vrot.lane.b32.xlu0 %v929, 64
    %v1148 = vpop.permute.xlu0 %1147
    %1149 = vrot.lane.b32.xlu0 %v932, 64
    %v1150 = vpop.permute.xlu0 %1149
    %1151 = vrot.lane.b32.xlu0 %v937, 64
    %v1152 = vpop.permute.xlu0 %1151
    %1153 = vrot.lane.b32.xlu0 %v940, 64
    %v1154 = vpop.permute.xlu0 %1153
    %1163 = vrot.lane.b32.xlu0 %v1113, 96
    %v1164 = vpop.permute.xlu0 %1163
    %1165 = vrot.lane.b32.xlu0 %v1116, 96
    %v1166 = vpop.permute.xlu0 %1165
    %1167 = vrot.lane.b32.xlu0 %v1121, 96
    %v1168 = vpop.permute.xlu0 %1167
    %1169 = vrot.lane.b32.xlu0 %v1124, 96
    %v1170 = vpop.permute.xlu0 %1169
    %v1175 = vsel %vm398, %v555, %v1132
    %v1176 = vsel %vm398, %v558, %v1134
    %v1177 = vsel %vm398, %v563, %v1136
    %v1178 = vsel %vm398, %v566, %v1138
    %vm1179 = vcmask 523264
    %v1180 = vsel %vm1179, %v1175, %v1148
    %v1181 = vsel %vm1179, %v1176, %v1150
    %v1182 = vsel %vm1179, %v1177, %v1152
    %v1183 = vsel %vm1179, %v1178, %v1154
    %vm1184 = vcmask 785408
    %v1185 = vsel %vm1184, %v1180, %v1164
    %v1186 = vsel %vm1184, %v1181, %v1166
    %v1187 = vsel %vm1184, %v1182, %v1168
    %v1188 = vsel %vm1184, %v1183, %v1170
    %v1189 = vpack.c.bf16 %v1186, %v1185
    %v1190 = vpack.c.bf16 %v1188, %v1187
    %v1191 = vld [vmem:[%s5] sm:$0xf]
    %v1192 = vld [vmem:[%s5 + $0x4] sm:$0xf]
    %v1193 = vld [vmem:[%s5 + $0x8] sm:$0xf]
    %v1194 = vld [vmem:[%s5 + $0xc] sm:$0xf]
    %v1195 = vld [vmem:[%s5 + $0x10] sm:$0xf]
    %v1196 = vld [vmem:[%s5 + $0x14] sm:$0xf]
    %v1197 = vld [vmem:[%s5 + $0x18] sm:$0xf]
    %v1198 = vld [vmem:[%s5 + $0x1c] sm:$0xf]
    %v1199 = vld [vmem:[%s5 + $0x20] sm:$0xf]
    %v1200 = vld [vmem:[%s5 + $0x24] sm:$0xf]
    %v1201 = vld [vmem:[%s5 + $0x28] sm:$0xf]
    %v1202 = vld [vmem:[%s5 + $0x2c] sm:$0xf]
    %v1203 = vld [vmem:[%s5 + $0x30] sm:$0xf]
    %v1204 = vld [vmem:[%s5 + $0x34] sm:$0xf]
    %v1205 = vld [vmem:[%s5 + $0x38] sm:$0xf]
    %v1206 = vld [vmem:[%s5 + $0x3c] sm:$0xf]
    %v1207 = vlaneseq
    %v1208 = vshrl.u32 %v1207, 7
    %v1209 = vsub.s32 0, %v1208
    %v1210 = vrot.slane %v112, %v1209
    %v1227 = vunpack.c.l.b16 %v1191
    %v1228 = vunpack.c.l.b16 %v1192
    %v1229 = vunpack.c.l.b16 %v1193
    %v1230 = vunpack.c.l.b16 %v1194
    %v1231 = vunpack.c.l.b16 %v1195
    %v1232 = vunpack.c.l.b16 %v1196
    %v1233 = vunpack.c.l.b16 %v1197
    %v1234 = vunpack.c.l.b16 %v1198
    %v1235 = vunpack.c.l.b16 %v1199
    %v1236 = vunpack.c.l.b16 %v1200
    %v1237 = vunpack.c.l.b16 %v1201
    %v1238 = vunpack.c.l.b16 %v1202
    %v1239 = vunpack.c.l.b16 %v1203
    %v1240 = vunpack.c.l.b16 %v1204
    %v1241 = vunpack.c.l.b16 %v1205
    %v1242 = vunpack.c.l.b16 %v1206
    %v1243 = vpack.c.b16 %v1228, %v1227
    %v1244 = vpack.c.b16 %v1230, %v1229
    %v1245 = vpack.c.b16 %v1232, %v1231
    %v1246 = vpack.c.b16 %v1234, %v1233
    %v1247 = vpack.c.b16 %v1236, %v1235
    %v1248 = vpack.c.b16 %v1238, %v1237
    %v1249 = vpack.c.b16 %v1240, %v1239
    %v1250 = vpack.c.b16 %v1242, %v1241
    %1259 = vmatprep.subr.bf16.mxu0 0
    %1260 = vmatpush1.bf16.msra.mxu0 %v1243
    %1261 = vmatprep.subr.bf16.mxu0 0
    %1262 = vmatpush1.bf16.msra.mxu0 %v1244
    %1263 = vmatprep.subr.bf16.mxu0 0
    %1264 = vmatpush1.bf16.msra.mxu0 %v1245
    %1265 = vmatprep.subr.bf16.mxu0 0
    %1266 = vmatpush1.bf16.msra.mxu0 %v1246
    %1267 = vmatprep.subr.bf16.mxu0 0
    %1268 = vmatpush1.bf16.msra.mxu0 %v1247
    %1269 = vmatprep.subr.bf16.mxu0 0
    %1270 = vmatpush1.bf16.msra.mxu0 %v1248
    %1271 = vmatprep.subr.bf16.mxu0 0
    %1272 = vmatpush1.bf16.msra.mxu0 %v1249
    %1273 = vmatprep.subr.bf16.mxu0 0
    %1274 = vmatpush1.bf16.msra.mxu0 %v1250
    %1275 = vmatprep.subr.bf16.mxu0 0
    %1276 = vmatpush1.bf16.msra.mxu0 0
    %1277 = vmatprep.subr.bf16.mxu0 0
    %1278 = vmatpush1.bf16.msra.mxu0 0
    %1279 = vmatprep.subr.bf16.mxu0 0
    %1280 = vmatpush1.bf16.msra.mxu0 0
    %1281 = vmatprep.subr.bf16.mxu0 0
    %1282 = vmatpush1.bf16.msra.mxu0 0
    %1283 = vmatprep.subr.bf16.mxu0 0
    %1284 = vmatpush1.bf16.msra.mxu0 0
    %1285 = vmatprep.subr.bf16.mxu0 0
    %1286 = vmatpush1.bf16.msra.mxu0 0
    %1287 = vmatprep.subr.bf16.mxu0 0
    %1288 = vmatpush1.bf16.msra.mxu0 0
    %1289 = vmatprep.subr.bf16.mxu0 0
    %1290 = vmatpush1.bf16.msra.mxu0 0
    %1291 = vmatprep.mubr.bf16.mxu0 0
    %1292 = vmatmul.mubr.bf16.gmra.mrb[0].mxu0 %v1189
    %v1293 = vpop.f32.mrb[0].mxu0
    %v1294 = vadd.f32 %v1210, %v1293
    %v1295 = vpop.f32.mrb[0].mxu0
    %v1296 = vpop.f32.mrb[0].mxu0
    %v1297 = vadd.f32 %v1210, %v1296
    %v1298 = vpop.f32.mrb[0].mxu0
    %1299 = vmatprep.mubr.bf16.mxu0 0
    %1300 = vmatmul.mubr.bf16.gmra.mrb[0].mxu0 %v1190
    %v1301 = vpop.f32.mrb[0].mxu0
    %v1302 = vadd.f32 %v1210, %v1301
    %v1303 = vpop.f32.mrb[0].mxu0
    %v1304 = vpop.f32.mrb[0].mxu0
    %v1305 = vadd.f32 %v1210, %v1304
    %v1306 = vpop.f32.mrb[0].mxu0
    %1307 = vdwg.mxu0
    %v1308 = vunpack.c.l.bf16 %v110
    %v1309 = vunpack.c.h.bf16 %v110
    %v1310 = vunpack.c.l.bf16 %v111
    %v1311 = vunpack.c.h.bf16 %v111
    %v1312 = vadd.f32 %v1294, %v1308
    %v1313 = vadd.f32 %v1297, %v1309
    %v1314 = vadd.f32 %v1302, %v1310
    %v1315 = vadd.f32 %v1305, %v1311
    %1316 = vadd.xlane.f32.xlu0 %v1312
    %v1317 = vpop.xlane.xlu0 %1316
    %1318 = vadd.xlane.f32.xlu0 %v1313
    %v1319 = vpop.xlane.xlu0 %1318
    %1320 = vadd.xlane.f32.xlu0 %v1314
    %v1321 = vpop.xlane.xlu0 %1320
    %1322 = vadd.xlane.f32.xlu0 %v1315
    %v1323 = vpop.xlane.xlu0 %1322
    %v1324 = vmul.f32 %v1317, %v57
    %v1325 = vmul.f32 %v1319, %v57
    %v1326 = vmul.f32 %v1321, %v57
    %v1327 = vmul.f32 %v1323, %v57
    %v1328 = vsub.f32 %v1312, %v1324
    %v1329 = vsub.f32 %v1313, %v1325
    %v1330 = vsub.f32 %v1314, %v1326
    %v1331 = vsub.f32 %v1315, %v1327
    %v1332 = vmul.f32 %v1328, %v1328
    %v1333 = vmul.f32 %v1329, %v1329
    %v1334 = vmul.f32 %v1330, %v1330
    %v1335 = vmul.f32 %v1331, %v1331
    %1336 = vadd.xlane.f32.xlu0 %v1332
    %v1337 = vpop.xlane.xlu0 %1336
    %1338 = vadd.xlane.f32.xlu0 %v1333
    %v1339 = vpop.xlane.xlu0 %1338
    %1340 = vadd.xlane.f32.xlu0 %v1334
    %v1341 = vpop.xlane.xlu0 %1340
    %1342 = vadd.xlane.f32.xlu0 %v1335
    %v1343 = vpop.xlane.xlu0 %1342
    %v1344 = vmul.f32 %v1337, %v57
    %v1345 = vmul.f32 %v1339, %v57
    %v1346 = vmul.f32 %v1341, %v57
    %v1347 = vmul.f32 %v1343, %v57
    %v1348 = vadd.f32 %v1344, 1e-12
    %v1349 = vadd.f32 %v1345, 1e-12
    %v1350 = vadd.f32 %v1346, 1e-12
    %v1351 = vadd.f32 %v1347, 1e-12
    %v1352 = vrsqrt.pop %v1348
    %v1353 = vrsqrt.pop %v1349
    %v1354 = vrsqrt.pop %v1350
    %v1355 = vrsqrt.pop %v1351
    %v1356 = vmul.f32 %v1328, %v1352
    %v1357 = vmul.f32 %v1329, %v1353
    %v1358 = vmul.f32 %v1330, %v1354
    %v1359 = vmul.f32 %v1331, %v1355
    %v1360 = vlaneseq
    %v1361 = vshrl.u32 %v1360, 7
    %v1362 = vsub.s32 1, %v1361
    %v1363 = vrot.slane %v112, %v1362
    %v1364 = vmul.f32 %v1356, %v1363
    %v1365 = vmul.f32 %v1357, %v1363
    %v1366 = vmul.f32 %v1358, %v1363
    %v1367 = vmul.f32 %v1359, %v1363
    %v1368 = vlaneseq
    %v1369 = vshrl.u32 %v1368, 7
    %v1370 = vsub.s32 2, %v1369
    %v1371 = vrot.slane %v112, %v1370
    %v1372 = vadd.f32 %v1364, %v1371
    %v1373 = vadd.f32 %v1365, %v1371
    %v1374 = vadd.f32 %v1366, %v1371
    %v1375 = vadd.f32 %v1367, %v1371
    %v1376 = vpack.c.bf16 %v1373, %v1372
    %v1377 = vpack.c.bf16 %v1375, %v1374
    %v1378 = vld [vmem:[%s7] sm:$0xff]
    %v1379 = vld [vmem:[%s7 + $0x8] sm:$0xff]
    %v1380 = vld [vmem:[%s7 + $0x10] sm:$0xff]
    %v1381 = vld [vmem:[%s7 + $0x18] sm:$0xff]
    %v1382 = vld [vmem:[%s7 + $0x20] sm:$0xff]
    %v1383 = vld [vmem:[%s7 + $0x28] sm:$0xff]
    %v1384 = vld [vmem:[%s7 + $0x30] sm:$0xff]
    %v1385 = vld [vmem:[%s7 + $0x38] sm:$0xff]
    %v1386 = vld [vmem:[%s7 + $0x40] sm:$0xff]
    %v1387 = vld [vmem:[%s7 + $0x48] sm:$0xff]
    %v1388 = vld [vmem:[%s7 + $0x50] sm:$0xff]
    %v1389 = vld [vmem:[%s7 + $0x58] sm:$0xff]
    %v1390 = vld [vmem:[%s7 + $0x60] sm:$0xff]
    %v1391 = vld [vmem:[%s7 + $0x68] sm:$0xff]
    %v1392 = vld [vmem:[%s7 + $0x70] sm:$0xff]
    %v1393 = vld [vmem:[%s7 + $0x78] sm:$0xff]
    %v1394 = vld [vmem:[%s8] sm:$0x3]
    %v1396 = vlaneseq
    %v1397 = vshrl.u32 %v1396, 7
    %v1398 = vsub.s32 0, %v1397
    %v1399 = vrot.slane %v1394, %v1398
    %v1400 = vlaneseq
    %v1401 = vshrl.u32 %v1400, 7
    %v1402 = vsub.s32 1, %v1401
    %v1403 = vrot.slane %v1394, %v1402
    %v1422 = vunpack.c.l.b16 %v1378
    %v1423 = vunpack.c.h.b16 %v1378
    %v1424 = vunpack.c.l.b16 %v1379
    %v1425 = vunpack.c.h.b16 %v1379
    %v1426 = vunpack.c.l.b16 %v1380
    %v1427 = vunpack.c.h.b16 %v1380
    %v1428 = vunpack.c.l.b16 %v1381
    %v1429 = vunpack.c.h.b16 %v1381
    %v1430 = vunpack.c.l.b16 %v1382
    %v1431 = vunpack.c.h.b16 %v1382
    %v1432 = vunpack.c.l.b16 %v1383
    %v1433 = vunpack.c.h.b16 %v1383
    %v1434 = vunpack.c.l.b16 %v1384
    %v1435 = vunpack.c.h.b16 %v1384
    %v1436 = vunpack.c.l.b16 %v1385
    %v1437 = vunpack.c.h.b16 %v1385
    %v1438 = vunpack.c.l.b16 %v1386
    %v1439 = vunpack.c.h.b16 %v1386
    %v1440 = vunpack.c.l.b16 %v1387
    %v1441 = vunpack.c.h.b16 %v1387
    %v1442 = vunpack.c.l.b16 %v1388
    %v1443 = vunpack.c.h.b16 %v1388
    %v1444 = vunpack.c.l.b16 %v1389
    %v1445 = vunpack.c.h.b16 %v1389
    %v1446 = vunpack.c.l.b16 %v1390
    %v1447 = vunpack.c.h.b16 %v1390
    %v1448 = vunpack.c.l.b16 %v1391
    %v1449 = vunpack.c.h.b16 %v1391
    %v1450 = vunpack.c.l.b16 %v1392
    %v1451 = vunpack.c.h.b16 %v1392
    %v1452 = vunpack.c.l.b16 %v1393
    %v1453 = vunpack.c.h.b16 %v1393
    %v1454 = vpack.c.b16 %v1424, %v1422
    %v1455 = vpack.c.b16 %v1425, %v1423
    %v1456 = vpack.c.b16 %v1428, %v1426
    %v1457 = vpack.c.b16 %v1429, %v1427
    %v1458 = vpack.c.b16 %v1432, %v1430
    %v1459 = vpack.c.b16 %v1433, %v1431
    %v1460 = vpack.c.b16 %v1436, %v1434
    %v1461 = vpack.c.b16 %v1437, %v1435
    %v1462 = vpack.c.b16 %v1440, %v1438
    %v1463 = vpack.c.b16 %v1441, %v1439
    %v1464 = vpack.c.b16 %v1444, %v1442
    %v1465 = vpack.c.b16 %v1445, %v1443
    %v1466 = vpack.c.b16 %v1448, %v1446
    %v1467 = vpack.c.b16 %v1449, %v1447
    %v1468 = vpack.c.b16 %v1452, %v1450
    %v1469 = vpack.c.b16 %v1453, %v1451
    %1486 = vmatprep.subr.bf16.mxu0 %v1455
    %1487 = vmatpush1.bf16.msra.mxu0 %v1454
    %1488 = vmatprep.subr.bf16.mxu0 %v1457
    %1489 = vmatpush1.bf16.msra.mxu0 %v1456
    %1490 = vmatprep.subr.bf16.mxu0 %v1459
    %1491 = vmatpush1.bf16.msra.mxu0 %v1458
    %1492 = vmatprep.subr.bf16.mxu0 %v1461
    %1493 = vmatpush1.bf16.msra.mxu0 %v1460
    %1494 = vmatprep.subr.bf16.mxu0 %v1463
    %1495 = vmatpush1.bf16.msra.mxu0 %v1462
    %1496 = vmatprep.subr.bf16.mxu0 %v1465
    %1497 = vmatpush1.bf16.msra.mxu0 %v1464
    %1498 = vmatprep.subr.bf16.mxu0 %v1467
    %1499 = vmatpush1.bf16.msra.mxu0 %v1466
    %1500 = vmatprep.subr.bf16.mxu0 %v1469
    %1501 = vmatpush1.bf16.msra.mxu0 %v1468
    %1502 = vmatprep.subr.bf16.mxu0 0
    %1503 = vmatpush1.bf16.msra.mxu0 0
    %1504 = vmatprep.subr.bf16.mxu0 0
    %1505 = vmatpush1.bf16.msra.mxu0 0
    %1506 = vmatprep.subr.bf16.mxu0 0
    %1507 = vmatpush1.bf16.msra.mxu0 0
    %1508 = vmatprep.subr.bf16.mxu0 0
    %1509 = vmatpush1.bf16.msra.mxu0 0
    %1510 = vmatprep.subr.bf16.mxu0 0
    %1511 = vmatpush1.bf16.msra.mxu0 0
    %1512 = vmatprep.subr.bf16.mxu0 0
    %1513 = vmatpush1.bf16.msra.mxu0 0
    %1514 = vmatprep.subr.bf16.mxu0 0
    %1515 = vmatpush1.bf16.msra.mxu0 0
    %1516 = vmatprep.subr.bf16.mxu0 0
    %1517 = vmatpush1.bf16.msra.mxu0 0
    %1518 = vmatprep.mubr.bf16.mxu0 0
    %1519 = vmatmul.mubr.bf16.gmra.mrb[0].mxu0 %v1376
    %v1520 = vpop.f32.mrb[0].mxu0
    %v1521 = vadd.f32 %v1399, %v1520
    %v1522 = vpop.f32.mrb[0].mxu0
    %v1523 = vadd.f32 %v1403, %v1522
    %v1524 = vpop.f32.mrb[0].mxu0
    %v1525 = vadd.f32 %v1399, %v1524
    %v1526 = vpop.f32.mrb[0].mxu0
    %v1527 = vadd.f32 %v1403, %v1526
    %1528 = vmatprep.mubr.bf16.mxu0 0
    %1529 = vmatmul.mubr.bf16.gmra.mrb[0].mxu0 %v1377
    %v1530 = vpop.f32.mrb[0].mxu0
    %v1531 = vadd.f32 %v1399, %v1530
    %v1532 = vpop.f32.mrb[0].mxu0
    %v1533 = vadd.f32 %v1403, %v1532
    %v1534 = vpop.f32.mrb[0].mxu0
    %v1535 = vadd.f32 %v1399, %v1534
    %v1536 = vpop.f32.mrb[0].mxu0
    %v1537 = vadd.f32 %v1403, %v1536
    %1538 = vdwg.mxu0
    %v1539 = vmul.f32 %v1521, %v1521
    %v1540 = vmul.f32 %v1523, %v1523
    %v1541 = vmul.f32 %v1525, %v1525
    %v1542 = vmul.f32 %v1527, %v1527
    %v1543 = vmul.f32 %v1531, %v1531
    %v1544 = vmul.f32 %v1533, %v1533
    %v1545 = vmul.f32 %v1535, %v1535
    %v1546 = vmul.f32 %v1537, %v1537
    %v1547 = vmul.f32 %v1521, %v1539
    %v1548 = vmul.f32 %v1523, %v1540
    %v1549 = vmul.f32 %v1525, %v1541
    %v1550 = vmul.f32 %v1527, %v1542
    %v1551 = vmul.f32 %v1531, %v1543
    %v1552 = vmul.f32 %v1533, %v1544
    %v1553 = vmul.f32 %v1535, %v1545
    %v1554 = vmul.f32 %v1537, %v1546
    %v1555 = vmul.f32 %v1547, 0.044715
    %v1556 = vmul.f32 %v1548, 0.044715
    %v1557 = vmul.f32 %v1549, 0.044715
    %v1558 = vmul.f32 %v1550, 0.044715
    %v1559 = vmul.f32 %v1551, 0.044715
    %v1560 = vmul.f32 %v1552, 0.044715
    %v1561 = vmul.f32 %v1553, 0.044715
    %v1562 = vmul.f32 %v1554, 0.044715
    %v1563 = vadd.f32 %v1521, %v1555
    %v1564 = vadd.f32 %v1523, %v1556
    %v1565 = vadd.f32 %v1525, %v1557
    %v1566 = vadd.f32 %v1527, %v1558
    %v1567 = vadd.f32 %v1531, %v1559
    %v1568 = vadd.f32 %v1533, %v1560
    %v1569 = vadd.f32 %v1535, %v1561
    %v1570 = vadd.f32 %v1537, %v1562
    %v1571 = vmul.f32 %v1563, 0.7978846
    %v1572 = vmul.f32 %v1564, 0.7978846
    %v1573 = vmul.f32 %v1565, 0.7978846
    %v1574 = vmul.f32 %v1566, 0.7978846
    %v1575 = vmul.f32 %v1567, 0.7978846
    %v1576 = vmul.f32 %v1568, 0.7978846
    %v1577 = vmul.f32 %v1569, 0.7978846
    %v1578 = vmul.f32 %v1570, 0.7978846
    %v1579 = vtanh.pop %v1571
    %v1580 = vtanh.pop %v1572
    %v1581 = vtanh.pop %v1573
    %v1582 = vtanh.pop %v1574
    %v1583 = vtanh.pop %v1575
    %v1584 = vtanh.pop %v1576
    %v1585 = vtanh.pop %v1577
    %v1586 = vtanh.pop %v1578
    %v1587 = vadd.f32 %v1579, 1.0
    %v1588 = vadd.f32 %v1580, 1.0
    %v1589 = vadd.f32 %v1581, 1.0
    %v1590 = vadd.f32 %v1582, 1.0
    %v1591 = vadd.f32 %v1583, 1.0
    %v1592 = vadd.f32 %v1584, 1.0
    %v1593 = vadd.f32 %v1585, 1.0
    %v1594 = vadd.f32 %v1586, 1.0
    %v1595 = vmul.f32 %v1587, 0.5
    %v1596 = vmul.f32 %v1588, 0.5
    %v1597 = vmul.f32 %v1589, 0.5
    %v1598 = vmul.f32 %v1590, 0.5
    %v1599 = vmul.f32 %v1591, 0.5
    %v1600 = vmul.f32 %v1592, 0.5
    %v1601 = vmul.f32 %v1593, 0.5
    %v1602 = vmul.f32 %v1594, 0.5
    %v1603 = vmul.f32 %v1521, %v1595
    %v1604 = vmul.f32 %v1523, %v1596
    %v1605 = vmul.f32 %v1525, %v1597
    %v1606 = vmul.f32 %v1527, %v1598
    %v1607 = vmul.f32 %v1531, %v1599
    %v1608 = vmul.f32 %v1533, %v1600
    %v1609 = vmul.f32 %v1535, %v1601
    %v1610 = vmul.f32 %v1537, %v1602
    %v1611 = vpack.c.bf16 %v1605, %v1603
    %v1612 = vpack.c.bf16 %v1606, %v1604
    %v1613 = vpack.c.bf16 %v1609, %v1607
    %v1614 = vpack.c.bf16 %v1610, %v1608
    %v1615 = vld [vmem:[%s9] sm:$0xf]
    %v1616 = vld [vmem:[%s9 + $0x4] sm:$0xf]
    %v1617 = vld [vmem:[%s9 + $0x8] sm:$0xf]
    %v1618 = vld [vmem:[%s9 + $0xc] sm:$0xf]
    %v1619 = vld [vmem:[%s9 + $0x10] sm:$0xf]
    %v1620 = vld [vmem:[%s9 + $0x14] sm:$0xf]
    %v1621 = vld [vmem:[%s9 + $0x18] sm:$0xf]
    %v1622 = vld [vmem:[%s9 + $0x1c] sm:$0xf]
    %v1623 = vld [vmem:[%s9 + $0x20] sm:$0xf]
    %v1624 = vld [vmem:[%s9 + $0x24] sm:$0xf]
    %v1625 = vld [vmem:[%s9 + $0x28] sm:$0xf]
    %v1626 = vld [vmem:[%s9 + $0x2c] sm:$0xf]
    %v1627 = vld [vmem:[%s9 + $0x30] sm:$0xf]
    %v1628 = vld [vmem:[%s9 + $0x34] sm:$0xf]
    %v1629 = vld [vmem:[%s9 + $0x38] sm:$0xf]
    %v1630 = vld [vmem:[%s9 + $0x3c] sm:$0xf]
    %v1631 = vld [vmem:[%s9 + $0x40] sm:$0xf]
    %v1632 = vld [vmem:[%s9 + $0x44] sm:$0xf]
    %v1633 = vld [vmem:[%s9 + $0x48] sm:$0xf]
    %v1634 = vld [vmem:[%s9 + $0x4c] sm:$0xf]
    %v1635 = vld [vmem:[%s9 + $0x50] sm:$0xf]
    %v1636 = vld [vmem:[%s9 + $0x54] sm:$0xf]
    %v1637 = vld [vmem:[%s9 + $0x58] sm:$0xf]
    %v1638 = vld [vmem:[%s9 + $0x5c] sm:$0xf]
    %v1639 = vld [vmem:[%s9 + $0x60] sm:$0xf]
    %v1640 = vld [vmem:[%s9 + $0x64] sm:$0xf]
    %v1641 = vld [vmem:[%s9 + $0x68] sm:$0xf]
    %v1642 = vld [vmem:[%s9 + $0x6c] sm:$0xf]
    %v1643 = vld [vmem:[%s9 + $0x70] sm:$0xf]
    %v1644 = vld [vmem:[%s9 + $0x74] sm:$0xf]
    %v1645 = vld [vmem:[%s9 + $0x78] sm:$0xf]
    %v1646 = vld [vmem:[%s9 + $0x7c] sm:$0xf]
    %v1647 = vlaneseq
    %v1648 = vshrl.u32 %v1647, 7
    %v1649 = vsub.s32 3, %v1648
    %v1650 = vrot.slane %v112, %v1649
    %v1683 = vunpack.c.l.b16 %v1615
    %v1684 = vunpack.c.l.b16 %v1616
    %v1685 = vunpack.c.l.b16 %v1617
    %v1686 = vunpack.c.l.b16 %v1618
    %v1687 = vunpack.c.l.b16 %v1619
    %v1688 = vunpack.c.l.b16 %v1620
    %v1689 = vunpack.c.l.b16 %v1621
    %v1690 = vunpack.c.l.b16 %v1622
    %v1691 = vunpack.c.l.b16 %v1623
    %v1692 = vunpack.c.l.b16 %v1624
    %v1693 = vunpack.c.l.b16 %v1625
    %v1694 = vunpack.c.l.b16 %v1626
    %v1695 = vunpack.c.l.b16 %v1627
    %v1696 = vunpack.c.l.b16 %v1628
    %v1697 = vunpack.c.l.b16 %v1629
    %v1698 = vunpack.c.l.b16 %v1630
    %v1699 = vunpack.c.l.b16 %v1631
    %v1700 = vunpack.c.l.b16 %v1632
    %v1701 = vunpack.c.l.b16 %v1633
    %v1702 = vunpack.c.l.b16 %v1634
    %v1703 = vunpack.c.l.b16 %v1635
    %v1704 = vunpack.c.l.b16 %v1636
    %v1705 = vunpack.c.l.b16 %v1637
    %v1706 = vunpack.c.l.b16 %v1638
    %v1707 = vunpack.c.l.b16 %v1639
    %v1708 = vunpack.c.l.b16 %v1640
    %v1709 = vunpack.c.l.b16 %v1641
    %v1710 = vunpack.c.l.b16 %v1642
    %v1711 = vunpack.c.l.b16 %v1643
    %v1712 = vunpack.c.l.b16 %v1644
    %v1713 = vunpack.c.l.b16 %v1645
    %v1714 = vunpack.c.l.b16 %v1646
    %v1715 = vpack.c.b16 %v1684, %v1683
    %v1716 = vpack.c.b16 %v1686, %v1685
    %v1717 = vpack.c.b16 %v1688, %v1687
    %v1718 = vpack.c.b16 %v1690, %v1689
    %v1719 = vpack.c.b16 %v1692, %v1691
    %v1720 = vpack.c.b16 %v1694, %v1693
    %v1721 = vpack.c.b16 %v1696, %v1695
    %v1722 = vpack.c.b16 %v1698, %v1697
    %v1723 = vpack.c.b16 %v1700, %v1699
    %v1724 = vpack.c.b16 %v1702, %v1701
    %v1725 = vpack.c.b16 %v1704, %v1703
    %v1726 = vpack.c.b16 %v1706, %v1705
    %v1727 = vpack.c.b16 %v1708, %v1707
    %v1728 = vpack.c.b16 %v1710, %v1709
    %v1729 = vpack.c.b16 %v1712, %v1711
    %v1730 = vpack.c.b16 %v1714, %v1713
    %1747 = vmatprep.subr.bf16.mxu0 0
    %1748 = vmatpush1.bf16.msra.mxu0 %v1715
    %1749 = vmatprep.subr.bf16.mxu0 0
    %1750 = vmatpush1.bf16.msra.mxu0 %v1716
    %1751 = vmatprep.subr.bf16.mxu0 0
    %1752 = vmatpush1.bf16.msra.mxu0 %v1717
    %1753 = vmatprep.subr.bf16.mxu0 0
    %1754 = vmatpush1.bf16.msra.mxu0 %v1718
    %1755 = vmatprep.subr.bf16.mxu0 0
    %1756 = vmatpush1.bf16.msra.mxu0 %v1719
    %1757 = vmatprep.subr.bf16.mxu0 0
    %1758 = vmatpush1.bf16.msra.mxu0 %v1720
    %1759 = vmatprep.subr.bf16.mxu0 0
    %1760 = vmatpush1.bf16.msra.mxu0 %v1721
    %1761 = vmatprep.subr.bf16.mxu0 0
    %1762 = vmatpush1.bf16.msra.mxu0 %v1722
    %1763 = vmatprep.subr.bf16.mxu0 0
    %1764 = vmatpush1.bf16.msra.mxu0 %v1723
    %1765 = vmatprep.subr.bf16.mxu0 0
    %1766 = vmatpush1.bf16.msra.mxu0 %v1724
    %1767 = vmatprep.subr.bf16.mxu0 0
    %1768 = vmatpush1.bf16.msra.mxu0 %v1725
    %1769 = vmatprep.subr.bf16.mxu0 0
    %1770 = vmatpush1.bf16.msra.mxu0 %v1726
    %1771 = vmatprep.subr.bf16.mxu0 0
    %1772 = vmatpush1.bf16.msra.mxu0 %v1727
    %1773 = vmatprep.subr.bf16.mxu0 0
    %1774 = vmatpush1.bf16.msra.mxu0 %v1728
    %1775 = vmatprep.subr.bf16.mxu0 0
    %1776 = vmatpush1.bf16.msra.mxu0 %v1729
    %1777 = vmatprep.subr.bf16.mxu0 0
    %1778 = vmatpush1.bf16.msra.mxu0 %v1730
    %1779 = vmatprep.mubr.bf16.mxu0 %v1612
    %1780 = vmatmul.mubr.bf16.gmra.mrb[0].mxu0 %v1611
    %v1781 = vpop.f32.mrb[0].mxu0
    %v1782 = vadd.f32 %v1650, %v1781
    %v1783 = vpop.f32.mrb[0].mxu0
    %v1784 = vpop.f32.mrb[0].mxu0
    %v1785 = vadd.f32 %v1650, %v1784
    %v1786 = vpop.f32.mrb[0].mxu0
    %1787 = vmatprep.mubr.bf16.mxu0 %v1614
    %1788 = vmatmul.mubr.bf16.gmra.mrb[0].mxu0 %v1613
    %v1789 = vpop.f32.mrb[0].mxu0
    %v1790 = vadd.f32 %v1650, %v1789
    %v1791 = vpop.f32.mrb[0].mxu0
    %v1792 = vpop.f32.mrb[0].mxu0
    %v1793 = vadd.f32 %v1650, %v1792
    %v1794 = vpop.f32.mrb[0].mxu0
    %1795 = vdwg.mxu0
    %v1796 = vunpack.c.l.bf16 %v1376
    %v1797 = vunpack.c.h.bf16 %v1376
    %v1798 = vunpack.c.l.bf16 %v1377
    %v1799 = vunpack.c.h.bf16 %v1377
    %v1800 = vadd.f32 %v1782, %v1796
    %v1801 = vadd.f32 %v1785, %v1797
    %v1802 = vadd.f32 %v1790, %v1798
    %v1803 = vadd.f32 %v1793, %v1799
    %1804 = vadd.xlane.f32.xlu0 %v1800
    %v1805 = vpop.xlane.xlu0 %1804
    %1806 = vadd.xlane.f32.xlu0 %v1801
    %v1807 = vpop.xlane.xlu0 %1806
    %1808 = vadd.xlane.f32.xlu0 %v1802
    %v1809 = vpop.xlane.xlu0 %1808
    %1810 = vadd.xlane.f32.xlu0 %v1803
    %v1811 = vpop.xlane.xlu0 %1810
    %v1812 = vmul.f32 %v1805, %v57
    %v1813 = vmul.f32 %v1807, %v57
    %v1814 = vmul.f32 %v1809, %v57
    %v1815 = vmul.f32 %v1811, %v57
    %v1816 = vsub.f32 %v1800, %v1812
    %v1817 = vsub.f32 %v1801, %v1813
    %v1818 = vsub.f32 %v1802, %v1814
    %v1819 = vsub.f32 %v1803, %v1815
    %v1820 = vmul.f32 %v1816, %v1816
    %v1821 = vmul.f32 %v1817, %v1817
    %v1822 = vmul.f32 %v1818, %v1818
    %v1823 = vmul.f32 %v1819, %v1819
    %1824 = vadd.xlane.f32.xlu0 %v1820
    %v1825 = vpop.xlane.xlu0 %1824
    %1826 = vadd.xlane.f32.xlu0 %v1821
    %v1827 = vpop.xlane.xlu0 %1826
    %1828 = vadd.xlane.f32.xlu0 %v1822
    %v1829 = vpop.xlane.xlu0 %1828
    %1830 = vadd.xlane.f32.xlu0 %v1823
    %v1831 = vpop.xlane.xlu0 %1830
    %v1832 = vmul.f32 %v1825, %v57
    %v1833 = vmul.f32 %v1827, %v57
    %v1834 = vmul.f32 %v1829, %v57
    %v1835 = vmul.f32 %v1831, %v57
    %v1836 = vadd.f32 %v1832, 1e-12
    %v1837 = vadd.f32 %v1833, 1e-12
    %v1838 = vadd.f32 %v1834, 1e-12
    %v1839 = vadd.f32 %v1835, 1e-12
    %v1840 = vrsqrt.pop %v1836
    %v1841 = vrsqrt.pop %v1837
    %v1842 = vrsqrt.pop %v1838
    %v1843 = vrsqrt.pop %v1839
    %v1844 = vmul.f32 %v1816, %v1840
    %v1845 = vmul.f32 %v1817, %v1841
    %v1846 = vmul.f32 %v1818, %v1842
    %v1847 = vmul.f32 %v1819, %v1843
    %v1848 = vlaneseq
    %v1849 = vshrl.u32 %v1848, 7
    %v1850 = vsub.s32 4, %v1849
    %v1851 = vrot.slane %v112, %v1850
    %v1852 = vmul.f32 %v1844, %v1851
    %v1853 = vmul.f32 %v1845, %v1851
    %v1854 = vmul.f32 %v1846, %v1851
    %v1855 = vmul.f32 %v1847, %v1851
    %v1856 = vlaneseq
    %v1857 = vshrl.u32 %v1856, 7
    %v1858 = vsub.s32 5, %v1857
    %v1859 = vrot.slane %v112, %v1858
    %v1860 = vadd.f32 %v1852, %v1859
    %v1861 = vadd.f32 %v1853, %v1859
    %v1862 = vadd.f32 %v1854, %v1859
    %v1863 = vadd.f32 %v1855, %v1859
    %v1864 = vpack.c.bf16 %v1861, %v1860
    %v1865 = vpack.c.bf16 %v1863, %v1862
    %s1866 = scalar_lea.vmem %s6, 8
    %v1867 = vld [vmem:[%s1866] sm:$0x3f]
    %s1868 = scalar_lea.vmem %s3, 192
    %v1869 = vld [vmem:[%s1868] sm:$0xff]
    %v1870 = vld [vmem:[%s1868 + $0x8] sm:$0xf]
    %v1871 = vld [vmem:[%s1868 + $0xc] sm:$0xff]
    %v1872 = vld [vmem:[%s1868 + $0x14] sm:$0xf]
    %v1873 = vld [vmem:[%s1868 + $0x18] sm:$0xff]
    %v1874 = vld [vmem:[%s1868 + $0x20] sm:$0xf]
    %v1875 = vld [vmem:[%s1868 + $0x24] sm:$0xff]
    %v1876 = vld [vmem:[%s1868 + $0x2c] sm:$0xf]
    %v1877 = vld [vmem:[%s1868 + $0x30] sm:$0xff]
    %v1878 = vld [vmem:[%s1868 + $0x38] sm:$0xf]
    %v1879 = vld [vmem:[%s1868 + $0x3c] sm:$0xff]
    %v1880 = vld [vmem:[%s1868 + $0x44] sm:$0xf]
    %v1881 = vld [vmem:[%s1868 + $0x48] sm:$0xff]
    %v1882 = vld [vmem:[%s1868 + $0x50] sm:$0xf]
    %v1883 = vld [vmem:[%s1868 + $0x54] sm:$0xff]
    %v1884 = vld [vmem:[%s1868 + $0x5c] sm:$0xf]
    %v1885 = vld [vmem:[%s1868 + $0x60] sm:$0xff]
    %v1886 = vld [vmem:[%s1868 + $0x68] sm:$0xf]
    %v1887 = vld [vmem:[%s1868 + $0x6c] sm:$0xff]
    %v1888 = vld [vmem:[%s1868 + $0x74] sm:$0xf]
    %v1889 = vld [vmem:[%s1868 + $0x78] sm:$0xff]
    %v1890 = vld [vmem:[%s1868 + $0x80] sm:$0xf]
    %v1891 = vld [vmem:[%s1868 + $0x84] sm:$0xff]
    %v1892 = vld [vmem:[%s1868 + $0x8c] sm:$0xf]
    %v1893 = vld [vmem:[%s1868 + $0x90] sm:$0xff]
    %v1894 = vld [vmem:[%s1868 + $0x98] sm:$0xf]
    %v1895 = vld [vmem:[%s1868 + $0x9c] sm:$0xff]
    %v1896 = vld [vmem:[%s1868 + $0xa4] sm:$0xf]
    %v1897 = vld [vmem:[%s1868 + $0xa8] sm:$0xff]
    %v1898 = vld [vmem:[%s1868 + $0xb0] sm:$0xf]
    %v1899 = vld [vmem:[%s1868 + $0xb4] sm:$0xff]
    %v1900 = vld [vmem:[%s1868 + $0xbc] sm:$0xf]
    %s1901 = scalar_lea.vmem %s4, 3
    %v1902 = vld [vmem:[%s1901] sm:$0x7]
    %v1904 = vlaneseq
    %v1905 = vshrl.u32 %v1904, 7
    %v1906 = vsub.s32 0, %v1905
    %v1907 = vrot.slane %v1902, %v1906
    %v1908 = vlaneseq
    %v1909 = vshrl.u32 %v1908, 7
    %v1910 = vsub.s32 1, %v1909
    %v1911 = vrot.slane %v1902, %v1910
    %v1912 = vlaneseq
    %v1913 = vshrl.u32 %v1912, 7
    %v1914 = vsub.s32 2, %v1913
    %v1915 = vrot.slane %v1902, %v1914
    %v1951 = vunpack.c.l.b16 %v1869
    %v1952 = vunpack.c.h.b16 %v1869
    %v1953 = vunpack.c.l.b16 %v1870
    %v1954 = vunpack.c.l.b16 %v1871
    %v1955 = vunpack.c.h.b16 %v1871
    %v1956 = vunpack.c.l.b16 %v1872
    %v1957 = vunpack.c.l.b16 %v1873
    %v1958 = vunpack.c.h.b16 %v1873
    %v1959 = vunpack.c.l.b16 %v1874
    %v1960 = vunpack.c.l.b16 %v1875
    %v1961 = vunpack.c.h.b16 %v1875
    %v1962 = vunpack.c.l.b16 %v1876
    %v1963 = vunpack.c.l.b16 %v1877
    %v1964 = vunpack.c.h.b16 %v1877
    %v1965 = vunpack.c.l.b16 %v1878
    %v1966 = vunpack.c.l.b16 %v1879
    %v1967 = vunpack.c.h.b16 %v1879
    %v1968 = vunpack.c.l.b16 %v1880
    %v1969 = vunpack.c.l.b16 %v1881
    %v1970 = vunpack.c.h.b16 %v1881
    %v1971 = vunpack.c.l.b16 %v1882
    %v1972 = vunpack.c.l.b16 %v1883
    %v1973 = vunpack.c.h.b16 %v1883
    %v1974 = vunpack.c.l.b16 %v1884
    %v1975 = vunpack.c.l.b16 %v1885
    %v1976 = vunpack.c.h.b16 %v1885
    %v1977 = vunpack.c.l.b16 %v1886
    %v1978 = vunpack.c.l.b16 %v1887
    %v1979 = vunpack.c.h.b16 %v1887
    %v1980 = vunpack.c.l.b16 %v1888
    %v1981 = vunpack.c.l.b16 %v1889
    %v1982 = vunpack.c.h.b16 %v1889
    %v1983 = vunpack.c.l.b16 %v1890
    %v1984 = vunpack.c.l.b16 %v1891
    %v1985 = vunpack.c.h.b16 %v1891
    %v1986 = vunpack.c.l.b16 %v1892
    %v1987 = vunpack.c.l.b16 %v1893
    %v1988 = vunpack.c.h.b16 %v1893
    %v1989 = vunpack.c.l.b16 %v1894
    %v1990 = vunpack.c.l.b16 %v1895
    %v1991 = vunpack.c.h.b16 %v1895
    %v1992 = vunpack.c.l.b16 %v1896
    %v1993 = vunpack.c.l.b16 %v1897
    %v1994 = vunpack.c.h.b16 %v1897
    %v1995 = vunpack.c.l.b16 %v1898
    %v1996 = vunpack.c.l.b16 %v1899
    %v1997 = vunpack.c.h.b16 %v1899
    %v1998 = vunpack.c.l.b16 %v1900
    %v1999 = vpack.c.b16 %v1954, %v1951
    %v2000 = vpack.c.b16 %v1955, %v1952
    %v2001 = vpack.c.b16 %v1956, %v1953
    %v2002 = vpack.c.b16 %v1960, %v1957
    %v2003 = vpack.c.b16 %v1961, %v1958
    %v2004 = vpack.c.b16 %v1962, %v1959
    %v2005 = vpack.c.b16 %v1966, %v1963
    %v2006 = vpack.c.b16 %v1967, %v1964
    %v2007 = vpack.c.b16 %v1968, %v1965
    %v2008 = vpack.c.b16 %v1972, %v1969
    %v2009 = vpack.c.b16 %v1973, %v1970
    %v2010 = vpack.c.b16 %v1974, %v1971
    %v2011 = vpack.c.b16 %v1978, %v1975
    %v2012 = vpack.c.b16 %v1979, %v1976
    %v2013 = vpack.c.b16 %v1980, %v1977
    %v2014 = vpack.c.b16 %v1984, %v1981
    %v2015 = vpack.c.b16 %v1985, %v1982
    %v2016 = vpack.c.b16 %v1986, %v1983
    %v2017 = vpack.c.b16 %v1990, %v1987
    %v2018 = vpack.c.b16 %v1991, %v1988
    %v2019 = vpack.c.b16 %v1992, %v1989
    %v2020 = vpack.c.b16 %v1996, %v1993
    %v2021 = vpack.c.b16 %v1997, %v1994
    %v2022 = vpack.c.b16 %v1998, %v1995
    %2047 = vmatprep.subr.bf16.mxu0 %v2000
    %2048 = vmatpush1.bf16.msra.mxu0 %v1999
    %2049 = vmatprep.subr.bf16.mxu0 %v2003
    %2050 = vmatpush1.bf16.msra.mxu0 %v2002
    %2051 = vmatprep.subr.bf16.mxu0 %v2006
    %2052 = vmatpush1.bf16.msra.mxu0 %v2005
    %2053 = vmatprep.subr.bf16.mxu0 %v2009
    %2054 = vmatpush1.bf16.msra.mxu0 %v2008
    %2055 = vmatprep.subr.bf16.mxu0 %v2012
    %2056 = vmatpush1.bf16.msra.mxu0 %v2011
    %2057 = vmatprep.subr.bf16.mxu0 %v2015
    %2058 = vmatpush1.bf16.msra.mxu0 %v2014
    %2059 = vmatprep.subr.bf16.mxu0 %v2018
    %2060 = vmatpush1.bf16.msra.mxu0 %v2017
    %2061 = vmatprep.subr.bf16.mxu0 %v2021
    %2062 = vmatpush1.bf16.msra.mxu0 %v2020
    %2063 = vmatprep.subr.bf16.mxu0 0
    %2064 = vmatpush1.bf16.msra.mxu0 0
    %2065 = vmatprep.subr.bf16.mxu0 0
    %2066 = vmatpush1.bf16.msra.mxu0 0
    %2067 = vmatprep.subr.bf16.mxu0 0
    %2068 = vmatpush1.bf16.msra.mxu0 0
    %2069 = vmatprep.subr.bf16.mxu0 0
    %2070 = vmatpush1.bf16.msra.mxu0 0
    %2071 = vmatprep.subr.bf16.mxu0 0
    %2072 = vmatpush1.bf16.msra.mxu0 0
    %2073 = vmatprep.subr.bf16.mxu0 0
    %2074 = vmatpush1.bf16.msra.mxu0 0
    %2075 = vmatprep.subr.bf16.mxu0 0
    %2076 = vmatpush1.bf16.msra.mxu0 0
    %2077 = vmatprep.subr.bf16.mxu0 0
    %2078 = vmatpush1.bf16.msra.mxu0 0
    %2079 = vmatprep.mubr.bf16.mxu0 0
    %2080 = vmatmul.mubr.bf16.gmra.mrb[0].mxu0 %v1864
    %v2081 = vpop.f32.mrb[0].mxu0
    %v2082 = vadd.f32 %v1907, %v2081
    %v2083 = vpop.f32.mrb[0].mxu0
    %v2084 = vadd.f32 %v1911, %v2083
    %v2085 = vpop.f32.mrb[0].mxu0
    %v2086 = vadd.f32 %v1907, %v2085
    %v2087 = vpop.f32.mrb[0].mxu0
    %v2088 = vadd.f32 %v1911, %v2087
    %2089 = vmatprep.mubr.bf16.mxu0 0
    %2090 = vmatmul.mubr.bf16.gmra.mrb[0].mxu0 %v1865
    %v2091 = vpop.f32.mrb[0].mxu0
    %v2092 = vadd.f32 %v1907, %v2091
    %v2093 = vpop.f32.mrb[0].mxu0
    %v2094 = vadd.f32 %v1911, %v2093
    %v2095 = vpop.f32.mrb[0].mxu0
    %v2096 = vadd.f32 %v1907, %v2095
    %v2097 = vpop.f32.mrb[0].mxu0
    %v2098 = vadd.f32 %v1911, %v2097
    %2099 = vdwg.mxu0
    %2100 = vmatprep.subr.bf16.mxu0 0
    %2101 = vmatpush1.bf16.msra.mxu0 %v2001
    %2102 = vmatprep.subr.bf16.mxu0 0
    %2103 = vmatpush1.bf16.msra.mxu0 %v2004
    %2104 = vmatprep.subr.bf16.mxu0 0
    %2105 = vmatpush1.bf16.msra.mxu0 %v2007
    %2106 = vmatprep.subr.bf16.mxu0 0
    %2107 = vmatpush1.bf16.msra.mxu0 %v2010
    %2108 = vmatprep.subr.bf16.mxu0 0
    %2109 = vmatpush1.bf16.msra.mxu0 %v2013
    %2110 = vmatprep.subr.bf16.mxu0 0
    %2111 = vmatpush1.bf16.msra.mxu0 %v2016
    %2112 = vmatprep.subr.bf16.mxu0 0
    %2113 = vmatpush1.bf16.msra.mxu0 %v2019
    %2114 = vmatprep.subr.bf16.mxu0 0
    %2115 = vmatpush1.bf16.msra.mxu0 %v2022
    %2116 = vmatprep.subr.bf16.mxu0 0
    %2117 = vmatpush1.bf16.msra.mxu0 0
    %2118 = vmatprep.subr.bf16.mxu0 0
    %2119 = vmatpush1.bf16.msra.mxu0 0
    %2120 = vmatprep.subr.bf16.mxu0 0
    %2121 = vmatpush1.bf16.msra.mxu0 0
    %2122 = vmatprep.subr.bf16.mxu0 0
    %2123 = vmatpush1.bf16.msra.mxu0 0
    %2124 = vmatprep.subr.bf16.mxu0 0
    %2125 = vmatpush1.bf16.msra.mxu0 0
    %2126 = vmatprep.subr.bf16.mxu0 0
    %2127 = vmatpush1.bf16.msra.mxu0 0
    %2128 = vmatprep.subr.bf16.mxu0 0
    %2129 = vmatpush1.bf16.msra.mxu0 0
    %2130 = vmatprep.subr.bf16.mxu0 0
    %2131 = vmatpush1.bf16.msra.mxu0 0
    %2132 = vmatprep.mubr.bf16.mxu0 0
    %2133 = vmatmul.mubr.bf16.gmra.mrb[0].mxu0 %v1864
    %v2134 = vpop.f32.mrb[0].mxu0
    %v2135 = vadd.f32 %v1915, %v2134
    %v2136 = vpop.f32.mrb[0].mxu0
    %v2137 = vpop.f32.mrb[0].mxu0
    %v2138 = vadd.f32 %v1915, %v2137
    %v2139 = vpop.f32.mrb[0].mxu0
    %2140 = vmatprep.mubr.bf16.mxu0 0
    %2141 = vmatmul.mubr.bf16.gmra.mrb[0].mxu0 %v1865
    %v2142 = vpop.f32.mrb[0].mxu0
    %v2143 = vadd.f32 %v1915, %v2142
    %v2144 = vpop.f32.mrb[0].mxu0
    %v2145 = vpop.f32.mrb[0].mxu0
    %v2146 = vadd.f32 %v1915, %v2145
    %v2147 = vpop.f32.mrb[0].mxu0
    %2148 = vdwg.mxu0
    %v2149 = vpack.c.bf16 %v2086, %v2082
    %v2150 = vpack.c.bf16 %v2088, %v2084
    %v2151 = vpack.c.bf16 %v2138, %v2135
    %v2152 = vpack.c.bf16 %v2096, %v2092
    %v2153 = vpack.c.bf16 %v2098, %v2094
    %v2154 = vpack.c.bf16 %v2146, %v2143
    %v2156 = vsel %vm398, %v2149, 0
    %v2159 = vsel %vm398, %v2152, 0
    %v2162 = vsel %vm398, %v2150, 0
    %v2165 = vsel %vm398, %v2153, 0
    %2167 = vmatprep.subr.bf16.mxu0 0
    %2168 = vmatpush1.bf16.xpose.msra.mxu0 %v2162
    %2169 = vmatprep.subr.bf16.mxu0 0
    %2170 = vmatpush1.bf16.xpose.msra.mxu0 %v2165
    %2171 = vmatprep.subr.bf16.mxu0 0
    %2172 = vmatpush1.bf16.xpose.msra.mxu0 0
    %2173 = vmatprep.subr.bf16.mxu0 0
    %2174 = vmatpush1.bf16.xpose.msra.mxu0 0
    %2175 = vmatprep.subr.bf16.mxu0 0
    %2176 = vmatpush1.bf16.xpose.msra.mxu0 0
    %2177 = vmatprep.subr.bf16.mxu0 0
    %2178 = vmatpush1.bf16.xpose.msra.mxu0 0
    %2179 = vmatprep.subr.bf16.mxu0 0
    %2180 = vmatpush1.bf16.xpose.msra.mxu0 0
    %2181 = vmatprep.subr.bf16.mxu0 0
    %2182 = vmatpush1.bf16.xpose.msra.mxu0 0
    %2183 = vmatprep.subr.bf16.mxu0 0
    %2184 = vmatpush1.bf16.xpose.msra.mxu0 0
    %2185 = vmatprep.subr.bf16.mxu0 0
    %2186 = vmatpush1.bf16.xpose.msra.mxu0 0
    %2187 = vmatprep.subr.bf16.mxu0 0
    %2188 = vmatpush1.bf16.xpose.msra.mxu0 0
    %2189 = vmatprep.subr.bf16.mxu0 0
    %2190 = vmatpush1.bf16.xpose.msra.mxu0 0
    %2191 = vmatprep.subr.bf16.mxu0 0
    %2192 = vmatpush1.bf16.xpose.msra.mxu0 0
    %2193 = vmatprep.subr.bf16.mxu0 0
    %2194 = vmatpush1.bf16.xpose.msra.mxu0 0
    %2195 = vmatprep.subr.bf16.mxu0 0
    %2196 = vmatpush1.bf16.xpose.msra.mxu0 0
    %2197 = vmatprep.subr.bf16.mxu0 0
    %2198 = vmatpush1.bf16.xpose.msra.mxu0 0
    %2199 = vmatprep.mubr.bf16.mxu0 0
    %2200 = vmatmul.mubr.bf16.gmra.mrb[0].mxu0 %v2156
    %v2201 = vpop.f32.mrb[0].mxu0
    %v2202 = vadd.f32 0.0, %v2201
    %v2203 = vpop.f32.mrb[0].mxu0
    %v2204 = vpop.f32.mrb[0].mxu0
    %v2205 = vadd.f32 0.0, %v2204
    %v2206 = vpop.f32.mrb[0].mxu0
    %2207 = vmatprep.mubr.bf16.mxu0 0
    %2208 = vmatmul.mubr.bf16.gmra.mrb[0].mxu0 %v2159
    %v2209 = vpop.f32.mrb[0].mxu0
    %v2210 = vadd.f32 0.0, %v2209
    %v2211 = vpop.f32.mrb[0].mxu0
    %v2212 = vpop.f32.mrb[0].mxu0
    %v2213 = vadd.f32 0.0, %v2212
    %v2214 = vpop.f32.mrb[0].mxu0
    %2215 = vdwg.mxu0
    %v2216 = vmul.f32 %v2202, 0.17677669
    %v2217 = vmul.f32 %v2205, 0.17677669
    %v2218 = vmul.f32 %v2210, 0.17677669
    %v2219 = vmul.f32 %v2213, 0.17677669
    %v2220 = vadd.f32 %v2216, %v40
    %v2221 = vadd.f32 %v2217, %v41
    %v2222 = vadd.f32 %v2218, %v42
    %v2223 = vadd.f32 %v2219, %v43
    %v2224 = vsel %vm398, %v2220, -inf
    %2225 = vmax.xlane.f32.xlu0 %v2224
    %v2226 = vpop.xlane.xlu0 %2225
    %v2227 = vsel %vm398, %v2221, -inf
    %2228 = vmax.xlane.f32.xlu0 %v2227
    %v2229 = vpop.xlane.xlu0 %2228
    %v2230 = vsel %vm398, %v2222, -inf
    %2231 = vmax.xlane.f32.xlu0 %v2230
    %v2232 = vpop.xlane.xlu0 %2231
    %v2233 = vsel %vm398, %v2223, -inf
    %2234 = vmax.xlane.f32.xlu0 %v2233
    %v2235 = vpop.xlane.xlu0 %2234
    %v2236 = vsub.f32 %v2220, %v2226
    %v2237 = vsub.f32 %v2221, %v2229
    %v2238 = vsub.f32 %v2222, %v2232
    %v2239 = vsub.f32 %v2223, %v2235
    %v2240 = vmul.f32 %v2236, 1.442695
    %v2241 = vpow.pop %v2240
    %v2242 = vmul.f32 %v2237, 1.442695
    %v2243 = vpow.pop %v2242
    %v2244 = vmul.f32 %v2238, 1.442695
    %v2245 = vpow.pop %v2244
    %v2246 = vmul.f32 %v2239, 1.442695
    %v2247 = vpow.pop %v2246
    %v2248 = vsel %vm398, %v2241, 0.0
    %2249 = vadd.xlane.f32.xlu0 %v2248
    %v2250 = vpop.xlane.xlu0 %2249
    %v2251 = vsel %vm398, %v2243, 0.0
    %2252 = vadd.xlane.f32.xlu0 %v2251
    %v2253 = vpop.xlane.xlu0 %2252
    %v2254 = vsel %vm398, %v2245, 0.0
    %2255 = vadd.xlane.f32.xlu0 %v2254
    %v2256 = vpop.xlane.xlu0 %2255
    %v2257 = vsel %vm398, %v2247, 0.0
    %2258 = vadd.xlane.f32.xlu0 %v2257
    %v2259 = vpop.xlane.xlu0 %2258
    %v2260 = vrcp.pop %v2250
    %v2261 = vrcp.pop %v2253
    %v2262 = vrcp.pop %v2256
    %v2263 = vrcp.pop %v2259
    %v2264 = vmul.f32 %v2241, %v2260
    %v2265 = vmul.f32 %v2243, %v2261
    %v2266 = vmul.f32 %v2245, %v2262
    %v2267 = vmul.f32 %v2247, %v2263
    %v2268 = vpack.c.bf16 %v2265, %v2264
    %v2269 = vpack.c.bf16 %v2267, %v2266
    %v2271 = vsel %vm398, %v2268, 0
    %v2274 = vsel %vm398, %v2269, 0
    %2276 = vmatprep.subr.bf16.mxu0 0
    %2277 = vmatpush1.bf16.msra.mxu0 %v2151
    %2278 = vmatprep.subr.bf16.mxu0 0
    %2279 = vmatpush1.bf16.msra.mxu0 %v2154
    %2280 = vmatprep.subr.bf16.mxu0 0
    %2281 = vmatpush1.bf16.msra.mxu0 0
    %2282 = vmatprep.subr.bf16.mxu0 0
    %2283 = vmatpush1.bf16.msra.mxu0 0
    %2284 = vmatprep.subr.bf16.mxu0 0
    %2285 = vmatpush1.bf16.msra.mxu0 0
    %2286 = vmatprep.subr.bf16.mxu0 0
    %2287 = vmatpush1.bf16.msra.mxu0 0
    %2288 = vmatprep.subr.bf16.mxu0 0
    %2289 = vmatpush1.bf16.msra.mxu0 0
    %2290 = vmatprep.subr.bf16.mxu0 0
    %2291 = vmatpush1.bf16.msra.mxu0 0
    %2292 = vmatprep.subr.bf16.mxu0 0
    %2293 = vmatpush1.bf16.msra.mxu0 0
    %2294 = vmatprep.subr.bf16.mxu0 0
    %2295 = vmatpush1.bf16.msra.mxu0 0
    %2296 = vmatprep.subr.bf16.mxu0 0
    %2297 = vmatpush1.bf16.msra.mxu0 0
    %2298 = vmatprep.subr.bf16.mxu0 0
    %2299 = vmatpush1.bf16.msra.mxu0 0
    %2300 = vmatprep.subr.bf16.mxu0 0
    %2301 = vmatpush1.bf16.msra.mxu0 0
    %2302 = vmatprep.subr.bf16.mxu0 0
    %2303 = vmatpush1.bf16.msra.mxu0 0
    %2304 = vmatprep.subr.bf16.mxu0 0
    %2305 = vmatpush1.bf16.msra.mxu0 0
    %2306 = vmatprep.subr.bf16.mxu0 0
    %2307 = vmatpush1.bf16.msra.mxu0 0
    %2308 = vmatprep.mubr.bf16.mxu0 0
    %2309 = vmatmul.mubr.bf16.gmra.mrb[0].mxu0 %v2271
    %v2310 = vpop.f32.mrb[0].mxu0
    %v2311 = vadd.f32 0.0, %v2310
    %v2312 = vpop.f32.mrb[0].mxu0
    %v2313 = vpop.f32.mrb[0].mxu0
    %v2314 = vadd.f32 0.0, %v2313
    %v2315 = vpop.f32.mrb[0].mxu0
    %2316 = vmatprep.mubr.bf16.mxu0 0
    %2317 = vmatmul.mubr.bf16.gmra.mrb[0].mxu0 %v2274
    %v2318 = vpop.f32.mrb[0].mxu0
    %v2319 = vadd.f32 0.0, %v2318
    %v2320 = vpop.f32.mrb[0].mxu0
    %v2321 = vpop.f32.mrb[0].mxu0
    %v2322 = vadd.f32 0.0, %v2321
    %v2323 = vpop.f32.mrb[0].mxu0
    %2324 = vdwg.mxu0
    %2327 = vrot.lane.b32.xlu0 %v2149, 96
    %v2328 = vpop.permute.xlu0 %2327
    %2329 = vrot.lane.b32.xlu0 %v2152, 96
    %v2330 = vpop.permute.xlu0 %2329
    %2333 = vrot.lane.b32.xlu0 %v2150, 96
    %v2334 = vpop.permute.xlu0 %2333
    %2335 = vrot.lane.b32.xlu0 %v2153, 96
    %v2336 = vpop.permute.xlu0 %2335
    %v2338 = vsel %vm398, %v2328, 0
    %v2341 = vsel %vm398, %v2330, 0
    %v2344 = vsel %vm398, %v2334, 0
    %v2347 = vsel %vm398, %v2336, 0
    %2349 = vmatprep.subr.bf16.mxu0 0
    %2350 = vmatpush1.bf16.xpose.msra.mxu0 %v2344
    %2351 = vmatprep.subr.bf16.mxu0 0
    %2352 = vmatpush1.bf16.xpose.msra.mxu0 %v2347
    %2353 = vmatprep.subr.bf16.mxu0 0
    %2354 = vmatpush1.bf16.xpose.msra.mxu0 0
    %2355 = vmatprep.subr.bf16.mxu0 0
    %2356 = vmatpush1.bf16.xpose.msra.mxu0 0
    %2357 = vmatprep.subr.bf16.mxu0 0
    %2358 = vmatpush1.bf16.xpose.msra.mxu0 0
    %2359 = vmatprep.subr.bf16.mxu0 0
    %2360 = vmatpush1.bf16.xpose.msra.mxu0 0
    %2361 = vmatprep.subr.bf16.mxu0 0
    %2362 = vmatpush1.bf16.xpose.msra.mxu0 0
    %2363 = vmatprep.subr.bf16.mxu0 0
    %2364 = vmatpush1.bf16.xpose.msra.mxu0 0
    %2365 = vmatprep.subr.bf16.mxu0 0
    %2366 = vmatpush1.bf16.xpose.msra.mxu0 0
    %2367 = vmatprep.subr.bf16.mxu0 0
    %2368 = vmatpush1.bf16.xpose.msra.mxu0 0
    %2369 = vmatprep.subr.bf16.mxu0 0
    %2370 = vmatpush1.bf16.xpose.msra.mxu0 0
    %2371 = vmatprep.subr.bf16.mxu0 0
    %2372 = vmatpush1.bf16.xpose.msra.mxu0 0
    %2373 = vmatprep.subr.bf16.mxu0 0
    %2374 = vmatpush1.bf16.xpose.msra.mxu0 0
    %2375 = vmatprep.subr.bf16.mxu0 0
    %2376 = vmatpush1.bf16.xpose.msra.mxu0 0
    %2377 = vmatprep.subr.bf16.mxu0 0
    %2378 = vmatpush1.bf16.xpose.msra.mxu0 0
    %2379 = vmatprep.subr.bf16.mxu0 0
    %2380 = vmatpush1.bf16.xpose.msra.mxu0 0
    %2381 = vmatprep.mubr.bf16.mxu0 0
    %2382 = vmatmul.mubr.bf16.gmra.mrb[0].mxu0 %v2338
    %v2383 = vpop.f32.mrb[0].mxu0
    %v2384 = vadd.f32 0.0, %v2383
    %v2385 = vpop.f32.mrb[0].mxu0
    %v2386 = vpop.f32.mrb[0].mxu0
    %v2387 = vadd.f32 0.0, %v2386
    %v2388 = vpop.f32.mrb[0].mxu0
    %2389 = vmatprep.mubr.bf16.mxu0 0
    %2390 = vmatmul.mubr.bf16.gmra.mrb[0].mxu0 %v2341
    %v2391 = vpop.f32.mrb[0].mxu0
    %v2392 = vadd.f32 0.0, %v2391
    %v2393 = vpop.f32.mrb[0].mxu0
    %v2394 = vpop.f32.mrb[0].mxu0
    %v2395 = vadd.f32 0.0, %v2394
    %v2396 = vpop.f32.mrb[0].mxu0
    %2397 = vdwg.mxu0
    %v2398 = vmul.f32 %v2384, 0.17677669
    %v2399 = vmul.f32 %v2387, 0.17677669
    %v2400 = vmul.f32 %v2392, 0.17677669
    %v2401 = vmul.f32 %v2395, 0.17677669
    %v2402 = vadd.f32 %v2398, %v40
    %v2403 = vadd.f32 %v2399, %v41
    %v2404 = vadd.f32 %v2400, %v42
    %v2405 = vadd.f32 %v2401, %v43
    %v2406 = vsel %vm398, %v2402, -inf
    %2407 = vmax.xlane.f32.xlu0 %v2406
    %v2408 = vpop.xlane.xlu0 %2407
    %v2409 = vsel %vm398, %v2403, -inf
    %2410 = vmax.xlane.f32.xlu0 %v2409
    %v2411 = vpop.xlane.xlu0 %2410
    %v2412 = vsel %vm398, %v2404, -inf
    %2413 = vmax.xlane.f32.xlu0 %v2412
    %v2414 = vpop.xlane.xlu0 %2413
    %v2415 = vsel %vm398, %v2405, -inf
    %2416 = vmax.xlane.f32.xlu0 %v2415
    %v2417 = vpop.xlane.xlu0 %2416
    %v2418 = vsub.f32 %v2402, %v2408
    %v2419 = vsub.f32 %v2403, %v2411
    %v2420 = vsub.f32 %v2404, %v2414
    %v2421 = vsub.f32 %v2405, %v2417
    %v2422 = vmul.f32 %v2418, 1.442695
    %v2423 = vpow.pop %v2422
    %v2424 = vmul.f32 %v2419, 1.442695
    %v2425 = vpow.pop %v2424
    %v2426 = vmul.f32 %v2420, 1.442695
    %v2427 = vpow.pop %v2426
    %v2428 = vmul.f32 %v2421, 1.442695
    %v2429 = vpow.pop %v2428
    %v2430 = vsel %vm398, %v2423, 0.0
    %2431 = vadd.xlane.f32.xlu0 %v2430
    %v2432 = vpop.xlane.xlu0 %2431
    %v2433 = vsel %vm398, %v2425, 0.0
    %2434 = vadd.xlane.f32.xlu0 %v2433
    %v2435 = vpop.xlane.xlu0 %2434
    %v2436 = vsel %vm398, %v2427, 0.0
    %2437 = vadd.xlane.f32.xlu0 %v2436
    %v2438 = vpop.xlane.xlu0 %2437
    %v2439 = vsel %vm398, %v2429, 0.0
    %2440 = vadd.xlane.f32.xlu0 %v2439
    %v2441 = vpop.xlane.xlu0 %2440
    %v2442 = vrcp.pop %v2432
    %v2443 = vrcp.pop %v2435
    %v2444 = vrcp.pop %v2438
    %v2445 = vrcp.pop %v2441
    %v2446 = vmul.f32 %v2423, %v2442
    %v2447 = vmul.f32 %v2425, %v2443
    %v2448 = vmul.f32 %v2427, %v2444
    %v2449 = vmul.f32 %v2429, %v2445
    %v2450 = vpack.c.bf16 %v2447, %v2446
    %v2451 = vpack.c.bf16 %v2449, %v2448
    %2454 = vrot.lane.b32.xlu0 %v2151, 96
    %v2455 = vpop.permute.xlu0 %2454
    %2456 = vrot.lane.b32.xlu0 %v2154, 96
    %v2457 = vpop.permute.xlu0 %2456
    %v2461 = vsel %vm398, %v2450, 0
    %v2464 = vsel %vm398, %v2451, 0
    %2466 = vmatprep.subr.bf16.mxu0 0
    %2467 = vmatpush1.bf16.msra.mxu0 %v2455
    %2468 = vmatprep.subr.bf16.mxu0 0
    %2469 = vmatpush1.bf16.msra.mxu0 %v2457
    %2470 = vmatprep.subr.bf16.mxu0 0
    %2471 = vmatpush1.bf16.msra.mxu0 0
    %2472 = vmatprep.subr.bf16.mxu0 0
    %2473 = vmatpush1.bf16.msra.mxu0 0
    %2474 = vmatprep.subr.bf16.mxu0 0
    %2475 = vmatpush1.bf16.msra.mxu0 0
    %2476 = vmatprep.subr.bf16.mxu0 0
    %2477 = vmatpush1.bf16.msra.mxu0 0
    %2478 = vmatprep.subr.bf16.mxu0 0
    %2479 = vmatpush1.bf16.msra.mxu0 0
    %2480 = vmatprep.subr.bf16.mxu0 0
    %2481 = vmatpush1.bf16.msra.mxu0 0
    %2482 = vmatprep.subr.bf16.mxu0 0
    %2483 = vmatpush1.bf16.msra.mxu0 0
    %2484 = vmatprep.subr.bf16.mxu0 0
    %2485 = vmatpush1.bf16.msra.mxu0 0
    %2486 = vmatprep.subr.bf16.mxu0 0
    %2487 = vmatpush1.bf16.msra.mxu0 0
    %2488 = vmatprep.subr.bf16.mxu0 0
    %2489 = vmatpush1.bf16.msra.mxu0 0
    %2490 = vmatprep.subr.bf16.mxu0 0
    %2491 = vmatpush1.bf16.msra.mxu0 0
    %2492 = vmatprep.subr.bf16.mxu0 0
    %2493 = vmatpush1.bf16.msra.mxu0 0
    %2494 = vmatprep.subr.bf16.mxu0 0
    %2495 = vmatpush1.bf16.msra.mxu0 0
    %2496 = vmatprep.subr.bf16.mxu0 0
    %2497 = vmatpush1.bf16.msra.mxu0 0
    %2498 = vmatprep.mubr.bf16.mxu0 0
    %2499 = vmatmul.mubr.bf16.gmra.mrb[0].mxu0 %v2461
    %v2500 = vpop.f32.mrb[0].mxu0
    %v2501 = vadd.f32 0.0, %v2500
    %v2502 = vpop.f32.mrb[0].mxu0
    %v2503 = vpop.f32.mrb[0].mxu0
    %v2504 = vadd.f32 0.0, %v2503
    %v2505 = vpop.f32.mrb[0].mxu0
    %2506 = vmatprep.mubr.bf16.mxu0 0
    %2507 = vmatmul.mubr.bf16.gmra.mrb[0].mxu0 %v2464
    %v2508 = vpop.f32.mrb[0].mxu0
    %v2509 = vadd.f32 0.0, %v2508
    %v2510 = vpop.f32.mrb[0].mxu0
    %v2511 = vpop.f32.mrb[0].mxu0
    %v2512 = vadd.f32 0.0, %v2511
    %v2513 = vpop.f32.mrb[0].mxu0
    %2514 = vdwg.mxu0
    %2515 = vrot.lane.b32.xlu0 %v2149, 64
    %v2516 = vpop.permute.xlu0 %2515
    %2517 = vrot.lane.b32.xlu0 %v2152, 64
    %v2518 = vpop.permute.xlu0 %2517
    %2519 = vrot.lane.b32.xlu0 %v2150, 64
    %v2520 = vpop.permute.xlu0 %2519
    %2521 = vrot.lane.b32.xlu0 %v2153, 64
    %v2522 = vpop.permute.xlu0 %2521
    %v2524 = vsel %vm398, %v2516, 0
    %v2527 = vsel %vm398, %v2518, 0
    %v2530 = vsel %vm398, %v2520, 0
    %v2533 = vsel %vm398, %v2522, 0
    %2535 = vmatprep.subr.bf16.mxu0 0
    %2536 = vmatpush1.bf16.xpose.msra.mxu0 %v2530
    %2537 = vmatprep.subr.bf16.mxu0 0
    %2538 = vmatpush1.bf16.xpose.msra.mxu0 %v2533
    %2539 = vmatprep.subr.bf16.mxu0 0
    %2540 = vmatpush1.bf16.xpose.msra.mxu0 0
    %2541 = vmatprep.subr.bf16.mxu0 0
    %2542 = vmatpush1.bf16.xpose.msra.mxu0 0
    %2543 = vmatprep.subr.bf16.mxu0 0
    %2544 = vmatpush1.bf16.xpose.msra.mxu0 0
    %2545 = vmatprep.subr.bf16.mxu0 0
    %2546 = vmatpush1.bf16.xpose.msra.mxu0 0
    %2547 = vmatprep.subr.bf16.mxu0 0
    %2548 = vmatpush1.bf16.xpose.msra.mxu0 0
    %2549 = vmatprep.subr.bf16.mxu0 0
    %2550 = vmatpush1.bf16.xpose.msra.mxu0 0
    %2551 = vmatprep.subr.bf16.mxu0 0
    %2552 = vmatpush1.bf16.xpose.msra.mxu0 0
    %2553 = vmatprep.subr.bf16.mxu0 0
    %2554 = vmatpush1.bf16.xpose.msra.mxu0 0
    %2555 = vmatprep.subr.bf16.mxu0 0
    %2556 = vmatpush1.bf16.xpose.msra.mxu0 0
    %2557 = vmatprep.subr.bf16.mxu0 0
    %2558 = vmatpush1.bf16.xpose.msra.mxu0 0
    %2559 = vmatprep.subr.bf16.mxu0 0
    %2560 = vmatpush1.bf16.xpose.msra.mxu0 0
    %2561 = vmatprep.subr.bf16.mxu0 0
    %2562 = vmatpush1.bf16.xpose.msra.mxu0 0
    %2563 = vmatprep.subr.bf16.mxu0 0
    %2564 = vmatpush1.bf16.xpose.msra.mxu0 0
    %2565 = vmatprep.subr.bf16.mxu0 0
    %2566 = vmatpush1.bf16.xpose.msra.mxu0 0
    %2567 = vmatprep.mubr.bf16.mxu0 0
    %2568 = vmatmul.mubr.bf16.gmra.mrb[0].mxu0 %v2524
    %v2569 = vpop.f32.mrb[0].mxu0
    %v2570 = vadd.f32 0.0, %v2569
    %v2571 = vpop.f32.mrb[0].mxu0
    %v2572 = vpop.f32.mrb[0].mxu0
    %v2573 = vadd.f32 0.0, %v2572
    %v2574 = vpop.f32.mrb[0].mxu0
    %2575 = vmatprep.mubr.bf16.mxu0 0
    %2576 = vmatmul.mubr.bf16.gmra.mrb[0].mxu0 %v2527
    %v2577 = vpop.f32.mrb[0].mxu0
    %v2578 = vadd.f32 0.0, %v2577
    %v2579 = vpop.f32.mrb[0].mxu0
    %v2580 = vpop.f32.mrb[0].mxu0
    %v2581 = vadd.f32 0.0, %v2580
    %v2582 = vpop.f32.mrb[0].mxu0
    %2583 = vdwg.mxu0
    %v2584 = vmul.f32 %v2570, 0.17677669
    %v2585 = vmul.f32 %v2573, 0.17677669
    %v2586 = vmul.f32 %v2578, 0.17677669
    %v2587 = vmul.f32 %v2581, 0.17677669
    %v2588 = vadd.f32 %v2584, %v40
    %v2589 = vadd.f32 %v2585, %v41
    %v2590 = vadd.f32 %v2586, %v42
    %v2591 = vadd.f32 %v2587, %v43
    %v2592 = vsel %vm398, %v2588, -inf
    %2593 = vmax.xlane.f32.xlu0 %v2592
    %v2594 = vpop.xlane.xlu0 %2593
    %v2595 = vsel %vm398, %v2589, -inf
    %2596 = vmax.xlane.f32.xlu0 %v2595
    %v2597 = vpop.xlane.xlu0 %2596
    %v2598 = vsel %vm398, %v2590, -inf
    %2599 = vmax.xlane.f32.xlu0 %v2598
    %v2600 = vpop.xlane.xlu0 %2599
    %v2601 = vsel %vm398, %v2591, -inf
    %2602 = vmax.xlane.f32.xlu0 %v2601
    %v2603 = vpop.xlane.xlu0 %2602
    %v2604 = vsub.f32 %v2588, %v2594
    %v2605 = vsub.f32 %v2589, %v2597
    %v2606 = vsub.f32 %v2590, %v2600
    %v2607 = vsub.f32 %v2591, %v2603
    %v2608 = vmul.f32 %v2604, 1.442695
    %v2609 = vpow.pop %v2608
    %v2610 = vmul.f32 %v2605, 1.442695
    %v2611 = vpow.pop %v2610
    %v2612 = vmul.f32 %v2606, 1.442695
    %v2613 = vpow.pop %v2612
    %v2614 = vmul.f32 %v2607, 1.442695
    %v2615 = vpow.pop %v2614
    %v2616 = vsel %vm398, %v2609, 0.0
    %2617 = vadd.xlane.f32.xlu0 %v2616
    %v2618 = vpop.xlane.xlu0 %2617
    %v2619 = vsel %vm398, %v2611, 0.0
    %2620 = vadd.xlane.f32.xlu0 %v2619
    %v2621 = vpop.xlane.xlu0 %2620
    %v2622 = vsel %vm398, %v2613, 0.0
    %2623 = vadd.xlane.f32.xlu0 %v2622
    %v2624 = vpop.xlane.xlu0 %2623
    %v2625 = vsel %vm398, %v2615, 0.0
    %2626 = vadd.xlane.f32.xlu0 %v2625
    %v2627 = vpop.xlane.xlu0 %2626
    %v2628 = vrcp.pop %v2618
    %v2629 = vrcp.pop %v2621
    %v2630 = vrcp.pop %v2624
    %v2631 = vrcp.pop %v2627
    %v2632 = vmul.f32 %v2609, %v2628
    %v2633 = vmul.f32 %v2611, %v2629
    %v2634 = vmul.f32 %v2613, %v2630
    %v2635 = vmul.f32 %v2615, %v2631
    %v2636 = vpack.c.bf16 %v2633, %v2632
    %v2637 = vpack.c.bf16 %v2635, %v2634
    %2638 = vrot.lane.b32.xlu0 %v2151, 64
    %v2639 = vpop.permute.xlu0 %2638
    %2640 = vrot.lane.b32.xlu0 %v2154, 64
    %v2641 = vpop.permute.xlu0 %2640
    %v2645 = vsel %vm398, %v2636, 0
    %v2648 = vsel %vm398, %v2637, 0
    %2650 = vmatprep.subr.bf16.mxu0 0
    %2651 = vmatpush1.bf16.msra.mxu0 %v2639
    %2652 = vmatprep.subr.bf16.mxu0 0
    %2653 = vmatpush1.bf16.msra.mxu0 %v2641
    %2654 = vmatprep.subr.bf16.mxu0 0
    %2655 = vmatpush1.bf16.msra.mxu0 0
    %2656 = vmatprep.subr.bf16.mxu0 0
    %2657 = vmatpush1.bf16.msra.mxu0 0
    %2658 = vmatprep.subr.bf16.mxu0 0
    %2659 = vmatpush1.bf16.msra.mxu0 0
    %2660 = vmatprep.subr.bf16.mxu0 0
    %2661 = vmatpush1.bf16.msra.mxu0 0
    %2662 = vmatprep.subr.bf16.mxu0 0
    %2663 = vmatpush1.bf16.msra.mxu0 0
    %2664 = vmatprep.subr.bf16.mxu0 0
    %2665 = vmatpush1.bf16.msra.mxu0 0
    %2666 = vmatprep.subr.bf16.mxu0 0
    %2667 = vmatpush1.bf16.msra.mxu0 0
    %2668 = vmatprep.subr.bf16.mxu0 0
    %2669 = vmatpush1.bf16.msra.mxu0 0
    %2670 = vmatprep.subr.bf16.mxu0 0
    %2671 = vmatpush1.bf16.msra.mxu0 0
    %2672 = vmatprep.subr.bf16.mxu0 0
    %2673 = vmatpush1.bf16.msra.mxu0 0
    %2674 = vmatprep.subr.bf16.mxu0 0
    %2675 = vmatpush1.bf16.msra.mxu0 0
    %2676 = vmatprep.subr.bf16.mxu0 0
    %2677 = vmatpush1.bf16.msra.mxu0 0
    %2678 = vmatprep.subr.bf16.mxu0 0
    %2679 = vmatpush1.bf16.msra.mxu0 0
    %2680 = vmatprep.subr.bf16.mxu0 0
    %2681 = vmatpush1.bf16.msra.mxu0 0
    %2682 = vmatprep.mubr.bf16.mxu0 0
    %2683 = vmatmul.mubr.bf16.gmra.mrb[0].mxu0 %v2645
    %v2684 = vpop.f32.mrb[0].mxu0
    %v2685 = vadd.f32 0.0, %v2684
    %v2686 = vpop.f32.mrb[0].mxu0
    %v2687 = vpop.f32.mrb[0].mxu0
    %v2688 = vadd.f32 0.0, %v2687
    %v2689 = vpop.f32.mrb[0].mxu0
    %2690 = vmatprep.mubr.bf16.mxu0 0
    %2691 = vmatmul.mubr.bf16.gmra.mrb[0].mxu0 %v2648
    %v2692 = vpop.f32.mrb[0].mxu0
    %v2693 = vadd.f32 0.0, %v2692
    %v2694 = vpop.f32.mrb[0].mxu0
    %v2695 = vpop.f32.mrb[0].mxu0
    %v2696 = vadd.f32 0.0, %v2695
    %v2697 = vpop.f32.mrb[0].mxu0
    %2698 = vdwg.mxu0
    %2699 = vrot.lane.b32.xlu0 %v2149, 32
    %v2700 = vpop.permute.xlu0 %2699
    %2701 = vrot.lane.b32.xlu0 %v2152, 32
    %v2702 = vpop.permute.xlu0 %2701
    %2703 = vrot.lane.b32.xlu0 %v2150, 32
    %v2704 = vpop.permute.xlu0 %2703
    %2705 = vrot.lane.b32.xlu0 %v2153, 32
    %v2706 = vpop.permute.xlu0 %2705
    %v2708 = vsel %vm398, %v2700, 0
    %v2711 = vsel %vm398, %v2702, 0
    %v2714 = vsel %vm398, %v2704, 0
    %v2717 = vsel %vm398, %v2706, 0
    %2719 = vmatprep.subr.bf16.mxu0 0
    %2720 = vmatpush1.bf16.xpose.msra.mxu0 %v2714
    %2721 = vmatprep.subr.bf16.mxu0 0
    %2722 = vmatpush1.bf16.xpose.msra.mxu0 %v2717
    %2723 = vmatprep.subr.bf16.mxu0 0
    %2724 = vmatpush1.bf16.xpose.msra.mxu0 0
    %2725 = vmatprep.subr.bf16.mxu0 0
    %2726 = vmatpush1.bf16.xpose.msra.mxu0 0
    %2727 = vmatprep.subr.bf16.mxu0 0
    %2728 = vmatpush1.bf16.xpose.msra.mxu0 0
    %2729 = vmatprep.subr.bf16.mxu0 0
    %2730 = vmatpush1.bf16.xpose.msra.mxu0 0
    %2731 = vmatprep.subr.bf16.mxu0 0
    %2732 = vmatpush1.bf16.xpose.msra.mxu0 0
    %2733 = vmatprep.subr.bf16.mxu0 0
    %2734 = vmatpush1.bf16.xpose.msra.mxu0 0
    %2735 = vmatprep.subr.bf16.mxu0 0
    %2736 = vmatpush1.bf16.xpose.msra.mxu0 0
    %2737 = vmatprep.subr.bf16.mxu0 0
    %2738 = vmatpush1.bf16.xpose.msra.mxu0 0
    %2739 = vmatprep.subr.bf16.mxu0 0
    %2740 = vmatpush1.bf16.xpose.msra.mxu0 0
    %2741 = vmatprep.subr.bf16.mxu0 0
    %2742 = vmatpush1.bf16.xpose.msra.mxu0 0
    %2743 = vmatprep.subr.bf16.mxu0 0
    %2744 = vmatpush1.bf16.xpose.msra.mxu0 0
    %2745 = vmatprep.subr.bf16.mxu0 0
    %2746 = vmatpush1.bf16.xpose.msra.mxu0 0
    %2747 = vmatprep.subr.bf16.mxu0 0
    %2748 = vmatpush1.bf16.xpose.msra.mxu0 0
    %2749 = vmatprep.subr.bf16.mxu0 0
    %2750 = vmatpush1.bf16.xpose.msra.mxu0 0
    %2751 = vmatprep.mubr.bf16.mxu0 0
    %2752 = vmatmul.mubr.bf16.gmra.mrb[0].mxu0 %v2708
    %v2753 = vpop.f32.mrb[0].mxu0
    %v2754 = vadd.f32 0.0, %v2753
    %v2755 = vpop.f32.mrb[0].mxu0
    %v2756 = vpop.f32.mrb[0].mxu0
    %v2757 = vadd.f32 0.0, %v2756
    %v2758 = vpop.f32.mrb[0].mxu0
    %2759 = vmatprep.mubr.bf16.mxu0 0
    %2760 = vmatmul.mubr.bf16.gmra.mrb[0].mxu0 %v2711
    %v2761 = vpop.f32.mrb[0].mxu0
    %v2762 = vadd.f32 0.0, %v2761
    %v2763 = vpop.f32.mrb[0].mxu0
    %v2764 = vpop.f32.mrb[0].mxu0
    %v2765 = vadd.f32 0.0, %v2764
    %v2766 = vpop.f32.mrb[0].mxu0
    %2767 = vdwg.mxu0
    %v2768 = vmul.f32 %v2754, 0.17677669
    %v2769 = vmul.f32 %v2757, 0.17677669
    %v2770 = vmul.f32 %v2762, 0.17677669
    %v2771 = vmul.f32 %v2765, 0.17677669
    %v2772 = vadd.f32 %v2768, %v40
    %v2773 = vadd.f32 %v2769, %v41
    %v2774 = vadd.f32 %v2770, %v42
    %v2775 = vadd.f32 %v2771, %v43
    %v2776 = vsel %vm398, %v2772, -inf
    %2777 = vmax.xlane.f32.xlu0 %v2776
    %v2778 = vpop.xlane.xlu0 %2777
    %v2779 = vsel %vm398, %v2773, -inf
    %2780 = vmax.xlane.f32.xlu0 %v2779
    %v2781 = vpop.xlane.xlu0 %2780
    %v2782 = vsel %vm398, %v2774, -inf
    %2783 = vmax.xlane.f32.xlu0 %v2782
    %v2784 = vpop.xlane.xlu0 %2783
    %v2785 = vsel %vm398, %v2775, -inf
    %2786 = vmax.xlane.f32.xlu0 %v2785
    %v2787 = vpop.xlane.xlu0 %2786
    %v2788 = vsub.f32 %v2772, %v2778
    %v2789 = vsub.f32 %v2773, %v2781
    %v2790 = vsub.f32 %v2774, %v2784
    %v2791 = vsub.f32 %v2775, %v2787
    %v2792 = vmul.f32 %v2788, 1.442695
    %v2793 = vpow.pop %v2792
    %v2794 = vmul.f32 %v2789, 1.442695
    %v2795 = vpow.pop %v2794
    %v2796 = vmul.f32 %v2790, 1.442695
    %v2797 = vpow.pop %v2796
    %v2798 = vmul.f32 %v2791, 1.442695
    %v2799 = vpow.pop %v2798
    %v2800 = vsel %vm398, %v2793, 0.0
    %2801 = vadd.xlane.f32.xlu0 %v2800
    %v2802 = vpop.xlane.xlu0 %2801
    %v2803 = vsel %vm398, %v2795, 0.0
    %2804 = vadd.xlane.f32.xlu0 %v2803
    %v2805 = vpop.xlane.xlu0 %2804
    %v2806 = vsel %vm398, %v2797, 0.0
    %2807 = vadd.xlane.f32.xlu0 %v2806
    %v2808 = vpop.xlane.xlu0 %2807
    %v2809 = vsel %vm398, %v2799, 0.0
    %2810 = vadd.xlane.f32.xlu0 %v2809
    %v2811 = vpop.xlane.xlu0 %2810
    %v2812 = vrcp.pop %v2802
    %v2813 = vrcp.pop %v2805
    %v2814 = vrcp.pop %v2808
    %v2815 = vrcp.pop %v2811
    %v2816 = vmul.f32 %v2793, %v2812
    %v2817 = vmul.f32 %v2795, %v2813
    %v2818 = vmul.f32 %v2797, %v2814
    %v2819 = vmul.f32 %v2799, %v2815
    %v2820 = vpack.c.bf16 %v2817, %v2816
    %v2821 = vpack.c.bf16 %v2819, %v2818
    %2822 = vrot.lane.b32.xlu0 %v2151, 32
    %v2823 = vpop.permute.xlu0 %2822
    %2824 = vrot.lane.b32.xlu0 %v2154, 32
    %v2825 = vpop.permute.xlu0 %2824
    %v2829 = vsel %vm398, %v2820, 0
    %v2832 = vsel %vm398, %v2821, 0
    %2834 = vmatprep.subr.bf16.mxu0 0
    %2835 = vmatpush1.bf16.msra.mxu0 %v2823
    %2836 = vmatprep.subr.bf16.mxu0 0
    %2837 = vmatpush1.bf16.msra.mxu0 %v2825
    %2838 = vmatprep.subr.bf16.mxu0 0
    %2839 = vmatpush1.bf16.msra.mxu0 0
    %2840 = vmatprep.subr.bf16.mxu0 0
    %2841 = vmatpush1.bf16.msra.mxu0 0
    %2842 = vmatprep.subr.bf16.mxu0 0
    %2843 = vmatpush1.bf16.msra.mxu0 0
    %2844 = vmatprep.subr.bf16.mxu0 0
    %2845 = vmatpush1.bf16.msra.mxu0 0
    %2846 = vmatprep.subr.bf16.mxu0 0
    %2847 = vmatpush1.bf16.msra.mxu0 0
    %2848 = vmatprep.subr.bf16.mxu0 0
    %2849 = vmatpush1.bf16.msra.mxu0 0
    %2850 = vmatprep.subr.bf16.mxu0 0
    %2851 = vmatpush1.bf16.msra.mxu0 0
    %2852 = vmatprep.subr.bf16.mxu0 0
    %2853 = vmatpush1.bf16.msra.mxu0 0
    %2854 = vmatprep.subr.bf16.mxu0 0
    %2855 = vmatpush1.bf16.msra.mxu0 0
    %2856 = vmatprep.subr.bf16.mxu0 0
    %2857 = vmatpush1.bf16.msra.mxu0 0
    %2858 = vmatprep.subr.bf16.mxu0 0
    %2859 = vmatpush1.bf16.msra.mxu0 0
    %2860 = vmatprep.subr.bf16.mxu0 0
    %2861 = vmatpush1.bf16.msra.mxu0 0
    %2862 = vmatprep.subr.bf16.mxu0 0
    %2863 = vmatpush1.bf16.msra.mxu0 0
    %2864 = vmatprep.subr.bf16.mxu0 0
    %2865 = vmatpush1.bf16.msra.mxu0 0
    %2866 = vmatprep.mubr.bf16.mxu0 0
    %2867 = vmatmul.mubr.bf16.gmra.mrb[0].mxu0 %v2829
    %v2868 = vpop.f32.mrb[0].mxu0
    %v2869 = vadd.f32 0.0, %v2868
    %v2870 = vpop.f32.mrb[0].mxu0
    %v2871 = vpop.f32.mrb[0].mxu0
    %v2872 = vadd.f32 0.0, %v2871
    %v2873 = vpop.f32.mrb[0].mxu0
    %2874 = vmatprep.mubr.bf16.mxu0 0
    %2875 = vmatmul.mubr.bf16.gmra.mrb[0].mxu0 %v2832
    %v2876 = vpop.f32.mrb[0].mxu0
    %v2877 = vadd.f32 0.0, %v2876
    %v2878 = vpop.f32.mrb[0].mxu0
    %v2879 = vpop.f32.mrb[0].mxu0
    %v2880 = vadd.f32 0.0, %v2879
    %v2881 = vpop.f32.mrb[0].mxu0
    %2882 = vdwg.mxu0
    %2887 = vrot.lane.b32.xlu0 %v2501, 32
    %v2888 = vpop.permute.xlu0 %2887
    %2889 = vrot.lane.b32.xlu0 %v2504, 32
    %v2890 = vpop.permute.xlu0 %2889
    %2891 = vrot.lane.b32.xlu0 %v2509, 32
    %v2892 = vpop.permute.xlu0 %2891
    %2893 = vrot.lane.b32.xlu0 %v2512, 32
    %v2894 = vpop.permute.xlu0 %2893
    %2903 = vrot.lane.b32.xlu0 %v2685, 64
    %v2904 = vpop.permute.xlu0 %2903
    %2905 = vrot.lane.b32.xlu0 %v2688, 64
    %v2906 = vpop.permute.xlu0 %2905
    %2907 = vrot.lane.b32.xlu0 %v2693, 64
    %v2908 = vpop.permute.xlu0 %2907
    %2909 = vrot.lane.b32.xlu0 %v2696, 64
    %v2910 = vpop.permute.xlu0 %2909
    %2919 = vrot.lane.b32.xlu0 %v2869, 96
    %v2920 = vpop.permute.xlu0 %2919
    %2921 = vrot.lane.b32.xlu0 %v2872, 96
    %v2922 = vpop.permute.xlu0 %2921
    %2923 = vrot.lane.b32.xlu0 %v2877, 96
    %v2924 = vpop.permute.xlu0 %2923
    %2925 = vrot.lane.b32.xlu0 %v2880, 96
    %v2926 = vpop.permute.xlu0 %2925
    %v2931 = vsel %vm398, %v2311, %v2888
    %v2932 = vsel %vm398, %v2314, %v2890
    %v2933 = vsel %vm398, %v2319, %v2892
    %v2934 = vsel %vm398, %v2322, %v2894
    %v2935 = vsel %vm1179, %v2931, %v2904
    %v2936 = vsel %vm1179, %v2932, %v2906
    %v2937 = vsel %vm1179, %v2933, %v2908
    %v2938 = vsel %vm1179, %v2934, %v2910
    %v2939 = vsel %vm1184, %v2935, %v2920
    %v2940 = vsel %vm1184, %v2936, %v2922
    %v2941 = vsel %vm1184, %v2937, %v2924
    %v2942 = vsel %vm1184, %v2938, %v2926
    %v2943 = vpack.c.bf16 %v2940, %v2939
    %v2944 = vpack.c.bf16 %v2942, %v2941
    %s2945 = scalar_lea.vmem %s5, 64
    %v2946 = vld [vmem:[%s2945] sm:$0xf]
    %v2947 = vld [vmem:[%s2945 + $0x4] sm:$0xf]
    %v2948 = vld [vmem:[%s2945 + $0x8] sm:$0xf]
    %v2949 = vld [vmem:[%s2945 + $0xc] sm:$0xf]
    %v2950 = vld [vmem:[%s2945 + $0x10] sm:$0xf]
    %v2951 = vld [vmem:[%s2945 + $0x14] sm:$0xf]
    %v2952 = vld [vmem:[%s2945 + $0x18] sm:$0xf]
    %v2953 = vld [vmem:[%s2945 + $0x1c] sm:$0xf]
    %v2954 = vld [vmem:[%s2945 + $0x20] sm:$0xf]
    %v2955 = vld [vmem:[%s2945 + $0x24] sm:$0xf]
    %v2956 = vld [vmem:[%s2945 + $0x28] sm:$0xf]
    %v2957 = vld [vmem:[%s2945 + $0x2c] sm:$0xf]
    %v2958 = vld [vmem:[%s2945 + $0x30] sm:$0xf]
    %v2959 = vld [vmem:[%s2945 + $0x34] sm:$0xf]
    %v2960 = vld [vmem:[%s2945 + $0x38] sm:$0xf]
    %v2961 = vld [vmem:[%s2945 + $0x3c] sm:$0xf]
    %v2962 = vlaneseq
    %v2963 = vshrl.u32 %v2962, 7
    %v2964 = vsub.s32 0, %v2963
    %v2965 = vrot.slane %v1867, %v2964
    %v2982 = vunpack.c.l.b16 %v2946
    %v2983 = vunpack.c.l.b16 %v2947
    %v2984 = vunpack.c.l.b16 %v2948
    %v2985 = vunpack.c.l.b16 %v2949
    %v2986 = vunpack.c.l.b16 %v2950
    %v2987 = vunpack.c.l.b16 %v2951
    %v2988 = vunpack.c.l.b16 %v2952
    %v2989 = vunpack.c.l.b16 %v2953
    %v2990 = vunpack.c.l.b16 %v2954
    %v2991 = vunpack.c.l.b16 %v2955
    %v2992 = vunpack.c.l.b16 %v2956
    %v2993 = vunpack.c.l.b16 %v2957
    %v2994 = vunpack.c.l.b16 %v2958
    %v2995 = vunpack.c.l.b16 %v2959
    %v2996 = vunpack.c.l.b16 %v2960
    %v2997 = vunpack.c.l.b16 %v2961
    %v2998 = vpack.c.b16 %v2983, %v2982
    %v2999 = vpack.c.b16 %v2985, %v2984
    %v3000 = vpack.c.b16 %v2987, %v2986
    %v3001 = vpack.c.b16 %v2989, %v2988
    %v3002 = vpack.c.b16 %v2991, %v2990
    %v3003 = vpack.c.b16 %v2993, %v2992
    %v3004 = vpack.c.b16 %v2995, %v2994
    %v3005 = vpack.c.b16 %v2997, %v2996
    %3014 = vmatprep.subr.bf16.mxu0 0
    %3015 = vmatpush1.bf16.msra.mxu0 %v2998
    %3016 = vmatprep.subr.bf16.mxu0 0
    %3017 = vmatpush1.bf16.msra.mxu0 %v2999
    %3018 = vmatprep.subr.bf16.mxu0 0
    %3019 = vmatpush1.bf16.msra.mxu0 %v3000
    %3020 = vmatprep.subr.bf16.mxu0 0
    %3021 = vmatpush1.bf16.msra.mxu0 %v3001
    %3022 = vmatprep.subr.bf16.mxu0 0
    %3023 = vmatpush1.bf16.msra.mxu0 %v3002
    %3024 = vmatprep.subr.bf16.mxu0 0
    %3025 = vmatpush1.bf16.msra.mxu0 %v3003
    %3026 = vmatprep.subr.bf16.mxu0 0
    %3027 = vmatpush1.bf16.msra.mxu0 %v3004
    %3028 = vmatprep.subr.bf16.mxu0 0
    %3029 = vmatpush1.bf16.msra.mxu0 %v3005
    %3030 = vmatprep.subr.bf16.mxu0 0
    %3031 = vmatpush1.bf16.msra.mxu0 0
    %3032 = vmatprep.subr.bf16.mxu0 0
    %3033 = vmatpush1.bf16.msra.mxu0 0
    %3034 = vmatprep.subr.bf16.mxu0 0
    %3035 = vmatpush1.bf16.msra.mxu0 0
    %3036 = vmatprep.subr.bf16.mxu0 0
    %3037 = vmatpush1.bf16.msra.mxu0 0
    %3038 = vmatprep.subr.bf16.mxu0 0
    %3039 = vmatpush1.bf16.msra.mxu0 0
    %3040 = vmatprep.subr.bf16.mxu0 0
    %3041 = vmatpush1.bf16.msra.mxu0 0
    %3042 = vmatprep.subr.bf16.mxu0 0
    %3043 = vmatpush1.bf16.msra.mxu0 0
    %3044 = vmatprep.subr.bf16.mxu0 0
    %3045 = vmatpush1.bf16.msra.mxu0 0
    %3046 = vmatprep.mubr.bf16.mxu0 0
    %3047 = vmatmul.mubr.bf16.gmra.mrb[0].mxu0 %v2943
    %v3048 = vpop.f32.mrb[0].mxu0
    %v3049 = vadd.f32 %v2965, %v3048
    %v3050 = vpop.f32.mrb[0].mxu0
    %v3051 = vpop.f32.mrb[0].mxu0
    %v3052 = vadd.f32 %v2965, %v3051
    %v3053 = vpop.f32.mrb[0].mxu0
    %3054 = vmatprep.mubr.bf16.mxu0 0
    %3055 = vmatmul.mubr.bf16.gmra.mrb[0].mxu0 %v2944
    %v3056 = vpop.f32.mrb[0].mxu0
    %v3057 = vadd.f32 %v2965, %v3056
    %v3058 = vpop.f32.mrb[0].mxu0
    %v3059 = vpop.f32.mrb[0].mxu0
    %v3060 = vadd.f32 %v2965, %v3059
    %v3061 = vpop.f32.mrb[0].mxu0
    %3062 = vdwg.mxu0
    %v3063 = vunpack.c.l.bf16 %v1864
    %v3064 = vunpack.c.h.bf16 %v1864
    %v3065 = vunpack.c.l.bf16 %v1865
    %v3066 = vunpack.c.h.bf16 %v1865
    %v3067 = vadd.f32 %v3049, %v3063
    %v3068 = vadd.f32 %v3052, %v3064
    %v3069 = vadd.f32 %v3057, %v3065
    %v3070 = vadd.f32 %v3060, %v3066
    %3071 = vadd.xlane.f32.xlu0 %v3067
    %v3072 = vpop.xlane.xlu0 %3071
    %3073 = vadd.xlane.f32.xlu0 %v3068
    %v3074 = vpop.xlane.xlu0 %3073
    %3075 = vadd.xlane.f32.xlu0 %v3069
    %v3076 = vpop.xlane.xlu0 %3075
    %3077 = vadd.xlane.f32.xlu0 %v3070
    %v3078 = vpop.xlane.xlu0 %3077
    %v3079 = vmul.f32 %v3072, %v57
    %v3080 = vmul.f32 %v3074, %v57
    %v3081 = vmul.f32 %v3076, %v57
    %v3082 = vmul.f32 %v3078, %v57
    %v3083 = vsub.f32 %v3067, %v3079
    %v3084 = vsub.f32 %v3068, %v3080
    %v3085 = vsub.f32 %v3069, %v3081
    %v3086 = vsub.f32 %v3070, %v3082
    %v3087 = vmul.f32 %v3083, %v3083
    %v3088 = vmul.f32 %v3084, %v3084
    %v3089 = vmul.f32 %v3085, %v3085
    %v3090 = vmul.f32 %v3086, %v3086
    %3091 = vadd.xlane.f32.xlu0 %v3087
    %v3092 = vpop.xlane.xlu0 %3091
    %3093 = vadd.xlane.f32.xlu0 %v3088
    %v3094 = vpop.xlane.xlu0 %3093
    %3095 = vadd.xlane.f32.xlu0 %v3089
    %v3096 = vpop.xlane.xlu0 %3095
    %3097 = vadd.xlane.f32.xlu0 %v3090
    %v3098 = vpop.xlane.xlu0 %3097
    %v3099 = vmul.f32 %v3092, %v57
    %v3100 = vmul.f32 %v3094, %v57
    %v3101 = vmul.f32 %v3096, %v57
    %v3102 = vmul.f32 %v3098, %v57
    %v3103 = vadd.f32 %v3099, 1e-12
    %v3104 = vadd.f32 %v3100, 1e-12
    %v3105 = vadd.f32 %v3101, 1e-12
    %v3106 = vadd.f32 %v3102, 1e-12
    %v3107 = vrsqrt.pop %v3103
    %v3108 = vrsqrt.pop %v3104
    %v3109 = vrsqrt.pop %v3105
    %v3110 = vrsqrt.pop %v3106
    %v3111 = vmul.f32 %v3083, %v3107
    %v3112 = vmul.f32 %v3084, %v3108
    %v3113 = vmul.f32 %v3085, %v3109
    %v3114 = vmul.f32 %v3086, %v3110
    %v3115 = vlaneseq
    %v3116 = vshrl.u32 %v3115, 7
    %v3117 = vsub.s32 1, %v3116
    %v3118 = vrot.slane %v1867, %v3117
    %v3119 = vmul.f32 %v3111, %v3118
    %v3120 = vmul.f32 %v3112, %v3118
    %v3121 = vmul.f32 %v3113, %v3118
    %v3122 = vmul.f32 %v3114, %v3118
    %v3123 = vlaneseq
    %v3124 = vshrl.u32 %v3123, 7
    %v3125 = vsub.s32 2, %v3124
    %v3126 = vrot.slane %v1867, %v3125
    %v3127 = vadd.f32 %v3119, %v3126
    %v3128 = vadd.f32 %v3120, %v3126
    %v3129 = vadd.f32 %v3121, %v3126
    %v3130 = vadd.f32 %v3122, %v3126
    %v3131 = vpack.c.bf16 %v3128, %v3127
    %v3132 = vpack.c.bf16 %v3130, %v3129
    %s3133 = scalar_lea.vmem %s7, 128
    %v3134 = vld [vmem:[%s3133] sm:$0xff]
    %v3135 = vld [vmem:[%s3133 + $0x8] sm:$0xff]
    %v3136 = vld [vmem:[%s3133 + $0x10] sm:$0xff]
    %v3137 = vld [vmem:[%s3133 + $0x18] sm:$0xff]
    %v3138 = vld [vmem:[%s3133 + $0x20] sm:$0xff]
    %v3139 = vld [vmem:[%s3133 + $0x28] sm:$0xff]
    %v3140 = vld [vmem:[%s3133 + $0x30] sm:$0xff]
    %v3141 = vld [vmem:[%s3133 + $0x38] sm:$0xff]
    %v3142 = vld [vmem:[%s3133 + $0x40] sm:$0xff]
    %v3143 = vld [vmem:[%s3133 + $0x48] sm:$0xff]
    %v3144 = vld [vmem:[%s3133 + $0x50] sm:$0xff]
    %v3145 = vld [vmem:[%s3133 + $0x58] sm:$0xff]
    %v3146 = vld [vmem:[%s3133 + $0x60] sm:$0xff]
    %v3147 = vld [vmem:[%s3133 + $0x68] sm:$0xff]
    %v3148 = vld [vmem:[%s3133 + $0x70] sm:$0xff]
    %v3149 = vld [vmem:[%s3133 + $0x78] sm:$0xff]
    %s3150 = scalar_lea.vmem %s8, 2
    %v3151 = vld [vmem:[%s3150] sm:$0x3]
    %v3153 = vlaneseq
    %v3154 = vshrl.u32 %v3153, 7
    %v3155 = vsub.s32 0, %v3154
    %v3156 = vrot.slane %v3151, %v3155
    %v3157 = vlaneseq
    %v3158 = vshrl.u32 %v3157, 7
    %v3159 = vsub.s32 1, %v3158
    %v3160 = vrot.slane %v3151, %v3159
    %v3179 = vunpack.c.l.b16 %v3134
    %v3180 = vunpack.c.h.b16 %v3134
    %v3181 = vunpack.c.l.b16 %v3135
    %v3182 = vunpack.c.h.b16 %v3135
    %v3183 = vunpack.c.l.b16 %v3136
    %v3184 = vunpack.c.h.b16 %v3136
    %v3185 = vunpack.c.l.b16 %v3137
    %v3186 = vunpack.c.h.b16 %v3137
    %v3187 = vunpack.c.l.b16 %v3138
    %v3188 = vunpack.c.h.b16 %v3138
    %v3189 = vunpack.c.l.b16 %v3139
    %v3190 = vunpack.c.h.b16 %v3139
    %v3191 = vunpack.c.l.b16 %v3140
    %v3192 = vunpack.c.h.b16 %v3140
    %v3193 = vunpack.c.l.b16 %v3141
    %v3194 = vunpack.c.h.b16 %v3141
    %v3195 = vunpack.c.l.b16 %v3142
    %v3196 = vunpack.c.h.b16 %v3142
    %v3197 = vunpack.c.l.b16 %v3143
    %v3198 = vunpack.c.h.b16 %v3143
    %v3199 = vunpack.c.l.b16 %v3144
    %v3200 = vunpack.c.h.b16 %v3144
    %v3201 = vunpack.c.l.b16 %v3145
    %v3202 = vunpack.c.h.b16 %v3145
    %v3203 = vunpack.c.l.b16 %v3146
    %v3204 = vunpack.c.h.b16 %v3146
    %v3205 = vunpack.c.l.b16 %v3147
    %v3206 = vunpack.c.h.b16 %v3147
    %v3207 = vunpack.c.l.b16 %v3148
    %v3208 = vunpack.c.h.b16 %v3148
    %v3209 = vunpack.c.l.b16 %v3149
    %v3210 = vunpack.c.h.b16 %v3149
    %v3211 = vpack.c.b16 %v3181, %v3179
    %v3212 = vpack.c.b16 %v3182, %v3180
    %v3213 = vpack.c.b16 %v3185, %v3183
    %v3214 = vpack.c.b16 %v3186, %v3184
    %v3215 = vpack.c.b16 %v3189, %v3187
    %v3216 = vpack.c.b16 %v3190, %v3188
    %v3217 = vpack.c.b16 %v3193, %v3191
    %v3218 = vpack.c.b16 %v3194, %v3192
    %v3219 = vpack.c.b16 %v3197, %v3195
    %v3220 = vpack.c.b16 %v3198, %v3196
    %v3221 = vpack.c.b16 %v3201, %v3199
    %v3222 = vpack.c.b16 %v3202, %v3200
    %v3223 = vpack.c.b16 %v3205, %v3203
    %v3224 = vpack.c.b16 %v3206, %v3204
    %v3225 = vpack.c.b16 %v3209, %v3207
    %v3226 = vpack.c.b16 %v3210, %v3208
    %3243 = vmatprep.subr.bf16.mxu0 %v3212
    %3244 = vmatpush1.bf16.msra.mxu0 %v3211
    %3245 = vmatprep.subr.bf16.mxu0 %v3214
    %3246 = vmatpush1.bf16.msra.mxu0 %v3213
    %3247 = vmatprep.subr.bf16.mxu0 %v3216
    %3248 = vmatpush1.bf16.msra.mxu0 %v3215
    %3249 = vmatprep.subr.bf16.mxu0 %v3218
    %3250 = vmatpush1.bf16.msra.mxu0 %v3217
    %3251 = vmatprep.subr.bf16.mxu0 %v3220
    %3252 = vmatpush1.bf16.msra.mxu0 %v3219
    %3253 = vmatprep.subr.bf16.mxu0 %v3222
    %3254 = vmatpush1.bf16.msra.mxu0 %v3221
    %3255 = vmatprep.subr.bf16.mxu0 %v3224
    %3256 = vmatpush1.bf16.msra.mxu0 %v3223
    %3257 = vmatprep.subr.bf16.mxu0 %v3226
    %3258 = vmatpush1.bf16.msra.mxu0 %v3225
    %3259 = vmatprep.subr.bf16.mxu0 0
    %3260 = vmatpush1.bf16.msra.mxu0 0
    %3261 = vmatprep.subr.bf16.mxu0 0
    %3262 = vmatpush1.bf16.msra.mxu0 0
    %3263 = vmatprep.subr.bf16.mxu0 0
    %3264 = vmatpush1.bf16.msra.mxu0 0
    %3265 = vmatprep.subr.bf16.mxu0 0
    %3266 = vmatpush1.bf16.msra.mxu0 0
    %3267 = vmatprep.subr.bf16.mxu0 0
    %3268 = vmatpush1.bf16.msra.mxu0 0
    %3269 = vmatprep.subr.bf16.mxu0 0
    %3270 = vmatpush1.bf16.msra.mxu0 0
    %3271 = vmatprep.subr.bf16.mxu0 0
    %3272 = vmatpush1.bf16.msra.mxu0 0
    %3273 = vmatprep.subr.bf16.mxu0 0
    %3274 = vmatpush1.bf16.msra.mxu0 0
    %3275 = vmatprep.mubr.bf16.mxu0 0
    %3276 = vmatmul.mubr.bf16.gmra.mrb[0].mxu0 %v3131
    %v3277 = vpop.f32.mrb[0].mxu0
    %v3278 = vadd.f32 %v3156, %v3277
    %v3279 = vpop.f32.mrb[0].mxu0
    %v3280 = vadd.f32 %v3160, %v3279
    %v3281 = vpop.f32.mrb[0].mxu0
    %v3282 = vadd.f32 %v3156, %v3281
    %v3283 = vpop.f32.mrb[0].mxu0
    %v3284 = vadd.f32 %v3160, %v3283
    %3285 = vmatprep.mubr.bf16.mxu0 0
    %3286 = vmatmul.mubr.bf16.gmra.mrb[0].mxu0 %v3132
    %v3287 = vpop.f32.mrb[0].mxu0
    %v3288 = vadd.f32 %v3156, %v3287
    %v3289 = vpop.f32.mrb[0].mxu0
    %v3290 = vadd.f32 %v3160, %v3289
    %v3291 = vpop.f32.mrb[0].mxu0
    %v3292 = vadd.f32 %v3156, %v3291
    %v3293 = vpop.f32.mrb[0].mxu0
    %v3294 = vadd.f32 %v3160, %v3293
    %3295 = vdwg.mxu0
    %v3296 = vmul.f32 %v3278, %v3278
    %v3297 = vmul.f32 %v3280, %v3280
    %v3298 = vmul.f32 %v3282, %v3282
    %v3299 = vmul.f32 %v3284, %v3284
    %v3300 = vmul.f32 %v3288, %v3288
    %v3301 = vmul.f32 %v3290, %v3290
    %v3302 = vmul.f32 %v3292, %v3292
    %v3303 = vmul.f32 %v3294, %v3294
    %v3304 = vmul.f32 %v3278, %v3296
    %v3305 = vmul.f32 %v3280, %v3297
    %v3306 = vmul.f32 %v3282, %v3298
    %v3307 = vmul.f32 %v3284, %v3299
    %v3308 = vmul.f32 %v3288, %v3300
    %v3309 = vmul.f32 %v3290, %v3301
    %v3310 = vmul.f32 %v3292, %v3302
    %v3311 = vmul.f32 %v3294, %v3303
    %v3312 = vmul.f32 %v3304, 0.044715
    %v3313 = vmul.f32 %v3305, 0.044715
    %v3314 = vmul.f32 %v3306, 0.044715
    %v3315 = vmul.f32 %v3307, 0.044715
    %v3316 = vmul.f32 %v3308, 0.044715
    %v3317 = vmul.f32 %v3309, 0.044715
    %v3318 = vmul.f32 %v3310, 0.044715
    %v3319 = vmul.f32 %v3311, 0.044715
    %v3320 = vadd.f32 %v3278, %v3312
    %v3321 = vadd.f32 %v3280, %v3313
    %v3322 = vadd.f32 %v3282, %v3314
    %v3323 = vadd.f32 %v3284, %v3315
    %v3324 = vadd.f32 %v3288, %v3316
    %v3325 = vadd.f32 %v3290, %v3317
    %v3326 = vadd.f32 %v3292, %v3318
    %v3327 = vadd.f32 %v3294, %v3319
    %v3328 = vmul.f32 %v3320, 0.7978846
    %v3329 = vmul.f32 %v3321, 0.7978846
    %v3330 = vmul.f32 %v3322, 0.7978846
    %v3331 = vmul.f32 %v3323, 0.7978846
    %v3332 = vmul.f32 %v3324, 0.7978846
    %v3333 = vmul.f32 %v3325, 0.7978846
    %v3334 = vmul.f32 %v3326, 0.7978846
    %v3335 = vmul.f32 %v3327, 0.7978846
    %v3336 = vtanh.pop %v3328
    %v3337 = vtanh.pop %v3329
    %v3338 = vtanh.pop %v3330
    %v3339 = vtanh.pop %v3331
    %v3340 = vtanh.pop %v3332
    %v3341 = vtanh.pop %v3333
    %v3342 = vtanh.pop %v3334
    %v3343 = vtanh.pop %v3335
    %v3344 = vadd.f32 %v3336, 1.0
    %v3345 = vadd.f32 %v3337, 1.0
    %v3346 = vadd.f32 %v3338, 1.0
    %v3347 = vadd.f32 %v3339, 1.0
    %v3348 = vadd.f32 %v3340, 1.0
    %v3349 = vadd.f32 %v3341, 1.0
    %v3350 = vadd.f32 %v3342, 1.0
    %v3351 = vadd.f32 %v3343, 1.0
    %v3352 = vmul.f32 %v3344, 0.5
    %v3353 = vmul.f32 %v3345, 0.5
    %v3354 = vmul.f32 %v3346, 0.5
    %v3355 = vmul.f32 %v3347, 0.5
    %v3356 = vmul.f32 %v3348, 0.5
    %v3357 = vmul.f32 %v3349, 0.5
    %v3358 = vmul.f32 %v3350, 0.5
    %v3359 = vmul.f32 %v3351, 0.5
    %v3360 = vmul.f32 %v3278, %v3352
    %v3361 = vmul.f32 %v3280, %v3353
    %v3362 = vmul.f32 %v3282, %v3354
    %v3363 = vmul.f32 %v3284, %v3355
    %v3364 = vmul.f32 %v3288, %v3356
    %v3365 = vmul.f32 %v3290, %v3357
    %v3366 = vmul.f32 %v3292, %v3358
    %v3367 = vmul.f32 %v3294, %v3359
    %v3368 = vpack.c.bf16 %v3362, %v3360
    %v3369 = vpack.c.bf16 %v3363, %v3361
    %v3370 = vpack.c.bf16 %v3366, %v3364
    %v3371 = vpack.c.bf16 %v3367, %v3365
    %s3372 = scalar_lea.vmem %s9, 128
    %v3373 = vld [vmem:[%s3372] sm:$0xf]
    %v3374 = vld [vmem:[%s3372 + $0x4] sm:$0xf]
    %v3375 = vld [vmem:[%s3372 + $0x8] sm:$0xf]
    %v3376 = vld [vmem:[%s3372 + $0xc] sm:$0xf]
    %v3377 = vld [vmem:[%s3372 + $0x10] sm:$0xf]
    %v3378 = vld [vmem:[%s3372 + $0x14] sm:$0xf]
    %v3379 = vld [vmem:[%s3372 + $0x18] sm:$0xf]
    %v3380 = vld [vmem:[%s3372 + $0x1c] sm:$0xf]
    %v3381 = vld [vmem:[%s3372 + $0x20] sm:$0xf]
    %v3382 = vld [vmem:[%s3372 + $0x24] sm:$0xf]
    %v3383 = vld [vmem:[%s3372 + $0x28] sm:$0xf]
    %v3384 = vld [vmem:[%s3372 + $0x2c] sm:$0xf]
    %v3385 = vld [vmem:[%s3372 + $0x30] sm:$0xf]
    %v3386 = vld [vmem:[%s3372 + $0x34] sm:$0xf]
    %v3387 = vld [vmem:[%s3372 + $0x38] sm:$0xf]
    %v3388 = vld [vmem:[%s3372 + $0x3c] sm:$0xf]
    %v3389 = vld [vmem:[%s3372 + $0x40] sm:$0xf]
    %v3390 = vld [vmem:[%s3372 + $0x44] sm:$0xf]
    %v3391 = vld [vmem:[%s3372 + $0x48] sm:$0xf]
    %v3392 = vld [vmem:[%s3372 + $0x4c] sm:$0xf]
    %v3393 = vld [vmem:[%s3372 + $0x50] sm:$0xf]
    %v3394 = vld [vmem:[%s3372 + $0x54] sm:$0xf]
    %v3395 = vld [vmem:[%s3372 + $0x58] sm:$0xf]
    %v3396 = vld [vmem:[%s3372 + $0x5c] sm:$0xf]
    %v3397 = vld [vmem:[%s3372 + $0x60] sm:$0xf]
    %v3398 = vld [vmem:[%s3372 + $0x64] sm:$0xf]
    %v3399 = vld [vmem:[%s3372 + $0x68] sm:$0xf]
    %v3400 = vld [vmem:[%s3372 + $0x6c] sm:$0xf]
    %v3401 = vld [vmem:[%s3372 + $0x70] sm:$0xf]
    %v3402 = vld [vmem:[%s3372 + $0x74] sm:$0xf]
    %v3403 = vld [vmem:[%s3372 + $0x78] sm:$0xf]
    %v3404 = vld [vmem:[%s3372 + $0x7c] sm:$0xf]
    %v3405 = vlaneseq
    %v3406 = vshrl.u32 %v3405, 7
    %v3407 = vsub.s32 3, %v3406
    %v3408 = vrot.slane %v1867, %v3407
    %v3441 = vunpack.c.l.b16 %v3373
    %v3442 = vunpack.c.l.b16 %v3374
    %v3443 = vunpack.c.l.b16 %v3375
    %v3444 = vunpack.c.l.b16 %v3376
    %v3445 = vunpack.c.l.b16 %v3377
    %v3446 = vunpack.c.l.b16 %v3378
    %v3447 = vunpack.c.l.b16 %v3379
    %v3448 = vunpack.c.l.b16 %v3380
    %v3449 = vunpack.c.l.b16 %v3381
    %v3450 = vunpack.c.l.b16 %v3382
    %v3451 = vunpack.c.l.b16 %v3383
    %v3452 = vunpack.c.l.b16 %v3384
    %v3453 = vunpack.c.l.b16 %v3385
    %v3454 = vunpack.c.l.b16 %v3386
    %v3455 = vunpack.c.l.b16 %v3387
    %v3456 = vunpack.c.l.b16 %v3388
    %v3457 = vunpack.c.l.b16 %v3389
    %v3458 = vunpack.c.l.b16 %v3390
    %v3459 = vunpack.c.l.b16 %v3391
    %v3460 = vunpack.c.l.b16 %v3392
    %v3461 = vunpack.c.l.b16 %v3393
    %v3462 = vunpack.c.l.b16 %v3394
    %v3463 = vunpack.c.l.b16 %v3395
    %v3464 = vunpack.c.l.b16 %v3396
    %v3465 = vunpack.c.l.b16 %v3397
    %v3466 = vunpack.c.l.b16 %v3398
    %v3467 = vunpack.c.l.b16 %v3399
    %v3468 = vunpack.c.l.b16 %v3400
    %v3469 = vunpack.c.l.b16 %v3401
    %v3470 = vunpack.c.l.b16 %v3402
    %v3471 = vunpack.c.l.b16 %v3403
    %v3472 = vunpack.c.l.b16 %v3404
    %v3473 = vpack.c.b16 %v3442, %v3441
    %v3474 = vpack.c.b16 %v3444, %v3443
    %v3475 = vpack.c.b16 %v3446, %v3445
    %v3476 = vpack.c.b16 %v3448, %v3447
    %v3477 = vpack.c.b16 %v3450, %v3449
    %v3478 = vpack.c.b16 %v3452, %v3451
    %v3479 = vpack.c.b16 %v3454, %v3453
    %v3480 = vpack.c.b16 %v3456, %v3455
    %v3481 = vpack.c.b16 %v3458, %v3457
    %v3482 = vpack.c.b16 %v3460, %v3459
    %v3483 = vpack.c.b16 %v3462, %v3461
    %v3484 = vpack.c.b16 %v3464, %v3463
    %v3485 = vpack.c.b16 %v3466, %v3465
    %v3486 = vpack.c.b16 %v3468, %v3467
    %v3487 = vpack.c.b16 %v3470, %v3469
    %v3488 = vpack.c.b16 %v3472, %v3471
    %3505 = vmatprep.subr.bf16.mxu0 0
    %3506 = vmatpush1.bf16.msra.mxu0 %v3473
    %3507 = vmatprep.subr.bf16.mxu0 0
    %3508 = vmatpush1.bf16.msra.mxu0 %v3474
    %3509 = vmatprep.subr.bf16.mxu0 0
    %3510 = vmatpush1.bf16.msra.mxu0 %v3475
    %3511 = vmatprep.subr.bf16.mxu0 0
    %3512 = vmatpush1.bf16.msra.mxu0 %v3476
    %3513 = vmatprep.subr.bf16.mxu0 0
    %3514 = vmatpush1.bf16.msra.mxu0 %v3477
    %3515 = vmatprep.subr.bf16.mxu0 0
    %3516 = vmatpush1.bf16.msra.mxu0 %v3478
    %3517 = vmatprep.subr.bf16.mxu0 0
    %3518 = vmatpush1.bf16.msra.mxu0 %v3479
    %3519 = vmatprep.subr.bf16.mxu0 0
    %3520 = vmatpush1.bf16.msra.mxu0 %v3480
    %3521 = vmatprep.subr.bf16.mxu0 0
    %3522 = vmatpush1.bf16.msra.mxu0 %v3481
    %3523 = vmatprep.subr.bf16.mxu0 0
    %3524 = vmatpush1.bf16.msra.mxu0 %v3482
    %3525 = vmatprep.subr.bf16.mxu0 0
    %3526 = vmatpush1.bf16.msra.mxu0 %v3483
    %3527 = vmatprep.subr.bf16.mxu0 0
    %3528 = vmatpush1.bf16.msra.mxu0 %v3484
    %3529 = vmatprep.subr.bf16.mxu0 0
    %3530 = vmatpush1.bf16.msra.mxu0 %v3485
    %3531 = vmatprep.subr.bf16.mxu0 0
    %3532 = vmatpush1.bf16.msra.mxu0 %v3486
    %3533 = vmatprep.subr.bf16.mxu0 0
    %3534 = vmatpush1.bf16.msra.mxu0 %v3487
    %3535 = vmatprep.subr.bf16.mxu0 0
    %3536 = vmatpush1.bf16.msra.mxu0 %v3488
    %3537 = vmatprep.mubr.bf16.mxu0 %v3369
    %3538 = vmatmul.mubr.bf16.gmra.mrb[0].mxu0 %v3368
    %v3539 = vpop.f32.mrb[0].mxu0
    %v3540 = vadd.f32 %v3408, %v3539
    %v3541 = vpop.f32.mrb[0].mxu0
    %v3542 = vpop.f32.mrb[0].mxu0
    %v3543 = vadd.f32 %v3408, %v3542
    %v3544 = vpop.f32.mrb[0].mxu0
    %3545 = vmatprep.mubr.bf16.mxu0 %v3371
    %3546 = vmatmul.mubr.bf16.gmra.mrb[0].mxu0 %v3370
    %v3547 = vpop.f32.mrb[0].mxu0
    %v3548 = vadd.f32 %v3408, %v3547
    %v3549 = vpop.f32.mrb[0].mxu0
    %v3550 = vpop.f32.mrb[0].mxu0
    %v3551 = vadd.f32 %v3408, %v3550
    %v3552 = vpop.f32.mrb[0].mxu0
    %3553 = vdwg.mxu0
    %v3554 = vunpack.c.l.bf16 %v3131
    %v3555 = vunpack.c.h.bf16 %v3131
    %v3556 = vunpack.c.l.bf16 %v3132
    %v3557 = vunpack.c.h.bf16 %v3132
    %v3558 = vadd.f32 %v3540, %v3554
    %v3559 = vadd.f32 %v3543, %v3555
    %v3560 = vadd.f32 %v3548, %v3556
    %v3561 = vadd.f32 %v3551, %v3557
    %3562 = vadd.xlane.f32.xlu0 %v3558
    %v3563 = vpop.xlane.xlu0 %3562
    %3564 = vadd.xlane.f32.xlu0 %v3559
    %v3565 = vpop.xlane.xlu0 %3564
    %3566 = vadd.xlane.f32.xlu0 %v3560
    %v3567 = vpop.xlane.xlu0 %3566
    %3568 = vadd.xlane.f32.xlu0 %v3561
    %v3569 = vpop.xlane.xlu0 %3568
    %v3570 = vmul.f32 %v3563, %v57
    %v3571 = vmul.f32 %v3565, %v57
    %v3572 = vmul.f32 %v3567, %v57
    %v3573 = vmul.f32 %v3569, %v57
    %v3574 = vsub.f32 %v3558, %v3570
    %v3575 = vsub.f32 %v3559, %v3571
    %v3576 = vsub.f32 %v3560, %v3572
    %v3577 = vsub.f32 %v3561, %v3573
    %v3578 = vmul.f32 %v3574, %v3574
    %v3579 = vmul.f32 %v3575, %v3575
    %v3580 = vmul.f32 %v3576, %v3576
    %v3581 = vmul.f32 %v3577, %v3577
    %3582 = vadd.xlane.f32.xlu0 %v3578
    %v3583 = vpop.xlane.xlu0 %3582
    %3584 = vadd.xlane.f32.xlu0 %v3579
    %v3585 = vpop.xlane.xlu0 %3584
    %3586 = vadd.xlane.f32.xlu0 %v3580
    %v3587 = vpop.xlane.xlu0 %3586
    %3588 = vadd.xlane.f32.xlu0 %v3581
    %v3589 = vpop.xlane.xlu0 %3588
    %v3590 = vmul.f32 %v3583, %v57
    %v3591 = vmul.f32 %v3585, %v57
    %v3592 = vmul.f32 %v3587, %v57
    %v3593 = vmul.f32 %v3589, %v57
    %v3594 = vadd.f32 %v3590, 1e-12
    %v3595 = vadd.f32 %v3591, 1e-12
    %v3596 = vadd.f32 %v3592, 1e-12
    %v3597 = vadd.f32 %v3593, 1e-12
    %v3598 = vrsqrt.pop %v3594
    %v3599 = vrsqrt.pop %v3595
    %v3600 = vrsqrt.pop %v3596
    %v3601 = vrsqrt.pop %v3597
    %v3602 = vmul.f32 %v3574, %v3598
    %v3603 = vmul.f32 %v3575, %v3599
    %v3604 = vmul.f32 %v3576, %v3600
    %v3605 = vmul.f32 %v3577, %v3601
    %v3606 = vlaneseq
    %v3607 = vshrl.u32 %v3606, 7
    %v3608 = vsub.s32 4, %v3607
    %v3609 = vrot.slane %v1867, %v3608
    %v3610 = vmul.f32 %v3602, %v3609
    %v3611 = vmul.f32 %v3603, %v3609
    %v3612 = vmul.f32 %v3604, %v3609
    %v3613 = vmul.f32 %v3605, %v3609
    %v3614 = vlaneseq
    %v3615 = vshrl.u32 %v3614, 7
    %v3616 = vsub.s32 5, %v3615
    %v3617 = vrot.slane %v1867, %v3616
    %v3618 = vadd.f32 %v3610, %v3617
    %v3619 = vadd.f32 %v3611, %v3617
    %v3620 = vadd.f32 %v3612, %v3617
    %v3621 = vadd.f32 %v3613, %v3617
    %v3622 = vpack.c.bf16 %v3619, %v3618
    %v3623 = vpack.c.bf16 %v3621, %v3620
    %v3625 = vshll.u32 %v3623, 16
    %vm3628 = vcmask 1040384
    %vm3629 = vsmask.f32 256
    %vm3630 = vmand %vm3628, %vm3629
    %v3631 = vsel %vm3630, %v3622, %v3625
    %v3632 = vld [vmem:[%s10] sm:$0xf]
    %v3633 = vld [vmem:[%s10 + $0x4] sm:$0xf]
    %v3634 = vld [vmem:[%s10 + $0x8] sm:$0xf]
    %v3635 = vld [vmem:[%s10 + $0xc] sm:$0xf]
    %v3636 = vld [vmem:[%s10 + $0x10] sm:$0xf]
    %v3637 = vld [vmem:[%s10 + $0x14] sm:$0xf]
    %v3638 = vld [vmem:[%s10 + $0x18] sm:$0xf]
    %v3639 = vld [vmem:[%s10 + $0x1c] sm:$0xf]
    %v3640 = vld [vmem:[%s10 + $0x20] sm:$0xf]
    %v3641 = vld [vmem:[%s10 + $0x24] sm:$0xf]
    %v3642 = vld [vmem:[%s10 + $0x28] sm:$0xf]
    %v3643 = vld [vmem:[%s10 + $0x2c] sm:$0xf]
    %v3644 = vld [vmem:[%s10 + $0x30] sm:$0xf]
    %v3645 = vld [vmem:[%s10 + $0x34] sm:$0xf]
    %v3646 = vld [vmem:[%s10 + $0x38] sm:$0xf]
    %v3647 = vld [vmem:[%s10 + $0x3c] sm:$0xf]
    %v3648 = vlaneseq
    %v3649 = vshrl.u32 %v3648, 7
    %v3650 = vsub.s32 2, %v3649
    %v3651 = vrot.slane %v44, %v3650
    %v3668 = vunpack.c.l.b16 %v3632
    %v3669 = vunpack.c.l.b16 %v3633
    %v3670 = vunpack.c.l.b16 %v3634
    %v3671 = vunpack.c.l.b16 %v3635
    %v3672 = vunpack.c.l.b16 %v3636
    %v3673 = vunpack.c.l.b16 %v3637
    %v3674 = vunpack.c.l.b16 %v3638
    %v3675 = vunpack.c.l.b16 %v3639
    %v3676 = vunpack.c.l.b16 %v3640
    %v3677 = vunpack.c.l.b16 %v3641
    %v3678 = vunpack.c.l.b16 %v3642
    %v3679 = vunpack.c.l.b16 %v3643
    %v3680 = vunpack.c.l.b16 %v3644
    %v3681 = vunpack.c.l.b16 %v3645
    %v3682 = vunpack.c.l.b16 %v3646
    %v3683 = vunpack.c.l.b16 %v3647
    %v3684 = vpack.c.b16 %v3669, %v3668
    %v3685 = vpack.c.b16 %v3671, %v3670
    %v3686 = vpack.c.b16 %v3673, %v3672
    %v3687 = vpack.c.b16 %v3675, %v3674
    %v3688 = vpack.c.b16 %v3677, %v3676
    %v3689 = vpack.c.b16 %v3679, %v3678
    %v3690 = vpack.c.b16 %v3681, %v3680
    %v3691 = vpack.c.b16 %v3683, %v3682
    %3700 = vmatprep.subr.bf16.mxu0 0
    %3701 = vmatpush1.bf16.msra.mxu0 %v3684
    %3702 = vmatprep.subr.bf16.mxu0 0
    %3703 = vmatpush1.bf16.msra.mxu0 %v3685
    %3704 = vmatprep.subr.bf16.mxu0 0
    %3705 = vmatpush1.bf16.msra.mxu0 %v3686
    %3706 = vmatprep.subr.bf16.mxu0 0
    %3707 = vmatpush1.bf16.msra.mxu0 %v3687
    %3708 = vmatprep.subr.bf16.mxu0 0
    %3709 = vmatpush1.bf16.msra.mxu0 %v3688
    %3710 = vmatprep.subr.bf16.mxu0 0
    %3711 = vmatpush1.bf16.msra.mxu0 %v3689
    %3712 = vmatprep.subr.bf16.mxu0 0
    %3713 = vmatpush1.bf16.msra.mxu0 %v3690
    %3714 = vmatprep.subr.bf16.mxu0 0
    %3715 = vmatpush1.bf16.msra.mxu0 %v3691
    %3716 = vmatprep.subr.bf16.mxu0 0
    %3717 = vmatpush1.bf16.msra.mxu0 0
    %3718 = vmatprep.subr.bf16.mxu0 0
    %3719 = vmatpush1.bf16.msra.mxu0 0
    %3720 = vmatprep.subr.bf16.mxu0 0
    %3721 = vmatpush1.bf16.msra.mxu0 0
    %3722 = vmatprep.subr.bf16.mxu0 0
    %3723 = vmatpush1.bf16.msra.mxu0 0
    %3724 = vmatprep.subr.bf16.mxu0 0
    %3725 = vmatpush1.bf16.msra.mxu0 0
    %3726 = vmatprep.subr.bf16.mxu0 0
    %3727 = vmatpush1.bf16.msra.mxu0 0
    %3728 = vmatprep.subr.bf16.mxu0 0
    %3729 = vmatpush1.bf16.msra.mxu0 0
    %3730 = vmatprep.subr.bf16.mxu0 0
    %3731 = vmatpush1.bf16.msra.mxu0 0
    %3732 = vmatprep.mubr.bf16.mxu0 0
    %3733 = vmatmul.mubr.bf16.gmra.mrb[0].mxu0 %v3631
    %v3734 = vpop.f32.mrb[0].mxu0
    %v3735 = vadd.f32 %v3651, %v3734
    %v3736 = vpop.f32.mrb[0].mxu0
    %v3737 = vpop.f32.mrb[0].mxu0
    %v3738 = vpop.f32.mrb[0].mxu0
    %3739 = vdwg.mxu0
    %3740 = vst [vmem:[#allocation2] sm:$0x3] %v3735
    // Predicated region
    $region46: #{my_model_forward.1} parent=1 // pred_check
      _
    $region47: #{my_model_forward.1} parent=1 // pred_check_branch
      %3742 = sbr.rel (0) target = $region49
    $region48: #{my_model_forward.1} parent=1 // pred_region
      %s3744 = ssub.s32 32, 32
      %3745 = vsyncadd [#allocation3], %s3744
      %s3747 = sshll.u32 [#allocation2], 4
      %s3748 = int_to_ptr.vmem [resolvable:$true] %s3747
      %3750 = dma.vmem_to_hbm [thread:$0]  %s3748, 32, %s11, [#allocation3]
    $region49: #{my_model_forward.1} parent=1 // pred_fallthru
      _
    // Predicated region
    $region50: #{my_model_forward.1} parent=1 // pred_check
      _
    $region51: #{my_model_forward.1} parent=1 // pred_check_branch
      %3752 = sbr.rel (0) target = $region53
    $region52: #{my_model_forward.1} parent=1 // pred_region
      %3753 = dma.done [#allocation3], 32
    $region53: #{my_model_forward.1} parent=1 // pred_fallthru
      _
    %3754 = vsyncpa [#allocation3], 1

</llo_original>
